<compile_context>
chip_gen: v7x
topology: tpu7x:2x2x1
jax: 0.10.0
libtpu: 0.0.40
codegen_flags: <defaults>
</compile_context>

<pallas_src>
import functools

import jax
import jax.numpy as jnp
import numpy as np
from jax.experimental import pallas as pl
from jax.experimental.pallas import tpu as pltpu

BN_EPS = 1e-5


def _round_up(x, m):
    return ((x + m - 1) // m) * m


def _pick_images_per_step(n, m_per_image, target_m=256):
    """Images per grid step: fill MXU rows (M >= ~256) but keep >= 2 grid steps."""
    b = max(1, min(n, -(-target_m // m_per_image)))
    while b > 1 and (n % b != 0 or n // b < 2):
        b -= 1
    return b


# ---------------------------------------------------------------------------
# Fused Pallas kernel: conv1(s=2)+BN1+ReLU -> conv2(d=2)+BN2+ReLU -> conv3+BN3
# All intermediates stay in VMEM scratch; one HBM read + one HBM write total.
# ---------------------------------------------------------------------------
def _fused_block_aa_kernel(patches_ref, w1_ref, s1_ref, w2_ref, s2_ref,
                           w3_ref, s3_ref, o_ref, pad_a, pad_b,
                           *, Ho, Wo, B, group_k):
    cout_p = o_ref.shape[-1]
    M = B * Ho * Wo

    # ---- Stage 1: conv1 (k=3, s=2, p=1) + BN1 + ReLU -------------------------
    # The lane-dense (M, 9*cin_pad) tap slab was prebuilt in the wrapper (the
    # conv1 input is tiny), so the whole stage is ONE MXU dot (K = 9*cin_pad)
    # instead of nine degenerate K=8 dots.
    slab1 = patches_ref[...].reshape(M, patches_ref.shape[-1])
    y1 = jnp.dot(slab1, w1_ref[...], preferred_element_type=jnp.float32)
    y1 = jnp.maximum(y1 + s1_ref[...], 0.0).astype(jnp.bfloat16)

    # Scatter into a zero-padded VMEM scratch (halo = 2 for the dilation-2 convs).
    pad_a[...] = jnp.zeros_like(pad_a)
    pad_a[:, 2:2 + Ho, 2:2 + Wo, :] = y1.reshape(B, Ho, Wo, cout_p)

    def dilated_conv(src, w_ref, s_ref, relu):
        # 3x3 dilation-2 conv read directly from the padded scratch ref.
        # Tap windows are concatenated in pairs along K (128-lane-aligned
        # concat) so each MXU dot runs at K = 2*cout_p (=256 for cout_p=128):
        # 4 dots of K=256 + 1 of K=128 instead of nine K=128 dots.
        def load_tap(t):
            kh, kw = divmod(t, 3)
            win = src[:, 2 * kh:2 * kh + Ho, 2 * kw:2 * kw + Wo, :]
            return win.reshape(M, cout_p)

        acc = None
        row = 0
        t = 0
        while t < 9:
            n_grp = 1
            while t + n_grp < 9 and (n_grp + 1) * cout_p <= group_k:
                n_grp += 1
            k_grp = n_grp * cout_p
            grp = [load_tap(t + j) for j in range(n_grp)]
            lhs = grp[0] if n_grp == 1 else jnp.concatenate(grp, axis=-1)
            part = jnp.dot(lhs, w_ref[row:row + k_grp, :],
                           preferred_element_type=jnp.float32)
            acc = part if acc is None else acc + part
            row += k_grp
            t += n_grp
        y = acc + s_ref[...]
        return jnp.maximum(y, 0.0) if relu else y

    # ---- Stage 2: conv2 (k=3, d=2, p=2) + BN2 + ReLU --------------------------
    y2 = dilated_conv(pad_a, w2_ref, s2_ref, True).astype(jnp.bfloat16)
    pad_b[...] = jnp.zeros_like(pad_b)
    pad_b[:, 2:2 + Ho, 2:2 + Wo, :] = y2.reshape(B, Ho, Wo, cout_p)

    # ---- Stage 3: conv3 (k=3, d=2, p=2) + BN3 (no ReLU) -----------------------
    # Dropout2d(p=0.1) is identity in eval mode.
    y3 = dilated_conv(pad_b, w3_ref, s3_ref, False)
    o_ref[...] = y3.astype(o_ref.dtype).reshape(B, Ho * Wo, cout_p)


# ---------------------------------------------------------------------------
# JAX wrapper: fold BN into weights, build the (tiny) conv1 tap slab, call
# the fused kernel once.
# ---------------------------------------------------------------------------
def _fold_conv_bn(conv_p, bn_p, cin_pad, cout_pad):
    w, b = conv_p                                     # torch (Cout, Cin, 3, 3)
    gamma, beta, mean, var = bn_p
    scale = gamma / jnp.sqrt(var + BN_EPS)
    shift = (b - mean) * scale + beta
    wt = jnp.transpose(w, (2, 3, 1, 0)) * scale[None, None, None, :]
    cin, cout = wt.shape[2], wt.shape[3]
    wt = jnp.pad(wt, ((0, 0), (0, 0), (0, cin_pad - cin), (0, cout_pad - cout)))
    w_mat = wt.reshape(9 * cin_pad, cout_pad).astype(jnp.bfloat16)
    shift_p = jnp.pad(shift, (0, cout_pad - cout)).reshape(1, cout_pad)
    return w_mat, shift_p.astype(jnp.float32)


def block_aa_forward(x_nchw, params):
    N, Cin, H, W = x_nchw.shape
    Cout = params["conv1"][0].shape[0]

    # conv1: k=3, s=2, p=1, d=1; conv2/conv3 (k=3, s=1, p=2, d=2) preserve size.
    Ho = (H + 2 - 2 - 1) // 2 + 1
    Wo = (W + 2 - 2 - 1) // 2 + 1

    cin_pad = _round_up(Cin, 8)
    cout_p = _round_up(Cout, 128)          # lane-dense outputs -> unmasked vst

    # NCHW -> NHWC once; bf16 once (halves input DMA, removes in-kernel casts).
    x = jnp.transpose(x_nchw, (0, 2, 3, 1)).astype(jnp.bfloat16)
    xp = jnp.pad(x, ((0, 0), (1, 1), (1, 1), (0, cin_pad - Cin)))

    # conv1 tap slab (wrapper-side, tiny): (N, Ho*Wo, 9*cin_pad).  Same HBM
    # bytes as the raw padded input at these channel counts; lets stage 1 run
    # as a single well-shaped MXU dot with zero in-kernel relayout.
    taps = []
    for kh in range(3):
        for kw in range(3):
            win = xp[:, kh:kh + 2 * Ho:2, kw:kw + 2 * Wo:2, :]
            taps.append(win.reshape(N, Ho * Wo, cin_pad))
    patches = jnp.concatenate(taps, axis=-1)

    w1m, s1 = _fold_conv_bn(params["conv1"], params["bn1"], cin_pad, cout_p)
    w2m, s2 = _fold_conv_bn(params["conv2"], params["bn2"], cout_p, cout_p)
    w3m, s3 = _fold_conv_bn(params["conv3"], params["bn3"], cout_p, cout_p)

    B = _pick_images_per_step(N, Ho * Wo)
    Wpad = _round_up(Wo + 4, 8)

    kernel = functools.partial(_fused_block_aa_kernel,
                               Ho=Ho, Wo=Wo, B=B, group_k=256)

    out = pl.pallas_call(
        kernel,
        out_shape=jax.ShapeDtypeStruct((N, Ho * Wo, cout_p), jnp.float32),
        grid=(N // B,),
        in_specs=[
            pl.BlockSpec((B, Ho * Wo, 9 * cin_pad), lambda n: (n, 0, 0)),
            pl.BlockSpec(w1m.shape, lambda n: (0, 0)),
            pl.BlockSpec(s1.shape, lambda n: (0, 0)),
            pl.BlockSpec(w2m.shape, lambda n: (0, 0)),
            pl.BlockSpec(s2.shape, lambda n: (0, 0)),
            pl.BlockSpec(w3m.shape, lambda n: (0, 0)),
            pl.BlockSpec(s3.shape, lambda n: (0, 0)),
        ],
        out_specs=pl.BlockSpec((B, Ho * Wo, cout_p), lambda n: (n, 0, 0)),
        scratch_shapes=[
            pltpu.VMEM((B, Ho + 4, Wpad, cout_p), jnp.bfloat16),  # conv1 out (padded)
            pltpu.VMEM((B, Ho + 4, Wpad, cout_p), jnp.bfloat16),  # conv2 out (padded)
        ],
        compiler_params=pltpu.CompilerParams(
            dimension_semantics=("parallel",),
            # Working set per step is well under 1 MiB at these shapes; 32 MiB
            # is safe on every generation (v5e scoped default is only 16 MiB,
            # v7x physical VMEM is 64 MiB).
            vmem_limit_bytes=32 * 1024 * 1024,
        ),
    )(patches, w1m, s1, w2m, s2, w3m, s3)

    out = out.reshape(N, Ho, Wo, cout_p)[..., :Cout]   # drop lane-pad channels
    return jnp.transpose(out, (0, 3, 1, 2))            # NHWC -> NCHW (once)


# ----------------------------------------------------------------------------
# Pure-JAX reference (lax.conv, f32) for a sanity check
# ----------------------------------------------------------------------------
def _ref_forward(x_nchw, params):
    def conv(x, w, b, stride, dilation, padding):
        y = jax.lax.conv_general_dilated(
            x, w, (stride, stride), [(padding, padding)] * 2,
            rhs_dilation=(dilation, dilation),
            dimension_numbers=("NCHW", "OIHW", "NCHW"),
        )
        return y + b[None, :, None, None]

    def bn(x, p):
        gamma, beta, mean, var = p
        s = gamma / jnp.sqrt(var + BN_EPS)
        return x * s[None, :, None, None] + (beta - mean * s)[None, :, None, None]

    x = x_nchw
    x = jnp.maximum(bn(conv(x, *params["conv1"], 2, 1, 1), params["bn1"]), 0.0)
    x = jnp.maximum(bn(conv(x, *params["conv2"], 1, 2, 2), params["bn2"]), 0.0)
    x = bn(conv(x, *params["conv3"], 1, 2, 2), params["bn3"])
    return x


# ----------------------------------------------------------------------------
# Deterministic parameter init (shapes follow nn.Conv2d / nn.BatchNorm2d)
# ----------------------------------------------------------------------------
def init_params(key, in_channel, out_channel):
    ks = jax.random.split(key, 12)

    def conv_p(kw, kb, cin, cout):
        w = 0.1 * jax.random.normal(kw, (cout, cin, 3, 3), jnp.float32)
        b = 0.05 * jax.random.normal(kb, (cout,), jnp.float32)
        return (w, b)

    def bn_p(kg, kb2, km, kv, c):
        gamma = 1.0 + 0.1 * jax.random.normal(kg, (c,), jnp.float32)
        beta = 0.1 * jax.random.normal(kb2, (c,), jnp.float32)
        mean = 0.1 * jax.random.normal(km, (c,), jnp.float32)
        var = 0.5 + jnp.abs(jax.random.normal(kv, (c,), jnp.float32)) * 0.5
        return (gamma, beta, mean, var)

    return {
        "conv1": conv_p(ks[0], ks[1], in_channel, out_channel),
        "bn1": bn_p(ks[2], ks[3], ks[4], ks[5], out_channel),
        "conv2": conv_p(ks[6], ks[7], out_channel, out_channel),
        "bn2": bn_p(ks[8], ks[9], ks[10], ks[11], out_channel),
        "conv3": conv_p(jax.random.fold_in(key, 101), jax.random.fold_in(key, 102),
                        out_channel, out_channel),
        "bn3": bn_p(jax.random.fold_in(key, 103), jax.random.fold_in(key, 104),
                    jax.random.fold_in(key, 105), jax.random.fold_in(key, 106),
                    out_channel),
    }


if __name__ == "__main__":
    key = jax.random.PRNGKey(0)
    k_x, k_p = jax.random.split(key)

    N, Cin, H, W = 2, 4, 16, 16
    Cout = 8
    x = jax.random.normal(k_x, (N, Cin, H, W), jnp.float32)
    params = init_params(k_p, Cin, Cout)

    out = jax.jit(block_aa_forward)(x, params)
    out = jax.block_until_ready(out)

    # Shape check: conv1 stride-2 halves spatial dims, conv2/conv3 preserve them.
    assert out.shape == (N, Cout, H // 2, W // 2), out.shape

    # Numerical sanity check against a pure-JAX f32 (lax.conv) reference.
    ref = jax.block_until_ready(_ref_forward(x, params))
    np.testing.assert_allclose(np.asarray(out), np.asarray(ref), rtol=5e-2, atol=5e-2)

    print("KERNEL_OK")
</pallas_src>

<mosaic_0001>
module attributes {stable_mosaic.version = 11 : i64} {
  func.func @_fused_block_aa_kernel(%arg0: i32, %arg1: memref<1x64x72xbf16, #tpu.memory_space<vmem>>, %arg2: memref<72x128xbf16, #tpu.memory_space<vmem>>, %arg3: memref<1x128xf32, #tpu.memory_space<vmem>>, %arg4: memref<1152x128xbf16, #tpu.memory_space<vmem>>, %arg5: memref<1x128xf32, #tpu.memory_space<vmem>>, %arg6: memref<1152x128xbf16, #tpu.memory_space<vmem>>, %arg7: memref<1x128xf32, #tpu.memory_space<vmem>>, %arg8: memref<1x64x128xf32, #tpu.memory_space<vmem>>, %arg9: memref<1x12x16x128xbf16, #tpu.memory_space<vmem>>, %arg10: memref<1x12x16x128xbf16, #tpu.memory_space<vmem>>) attributes {dimension_semantics = [#tpu.dimension_semantics<parallel>], iteration_bounds = array<i64: 2>, scalar_prefetch = 0 : i64, scratch_operands = 2 : i64, tpu.core_type = #tpu.core_type<tc>, window_params = [{transform_indices = @transform_0, window_bounds = array<i64: 1, 64, 72>}, {pipeline_mode = #tpu.pipeline_mode<synchronous>, transform_indices = @transform_1, window_bounds = array<i64: 72, 128>}, {pipeline_mode = #tpu.pipeline_mode<synchronous>, transform_indices = @transform_2, window_bounds = array<i64: 1, 128>}, {pipeline_mode = #tpu.pipeline_mode<synchronous>, transform_indices = @transform_3, window_bounds = array<i64: 1152, 128>}, {pipeline_mode = #tpu.pipeline_mode<synchronous>, transform_indices = @transform_4, window_bounds = array<i64: 1, 128>}, {pipeline_mode = #tpu.pipeline_mode<synchronous>, transform_indices = @transform_5, window_bounds = array<i64: 1152, 128>}, {pipeline_mode = #tpu.pipeline_mode<synchronous>, transform_indices = @transform_6, window_bounds = array<i64: 1, 128>}, {transform_indices = @transform_7, window_bounds = array<i64: 1, 64, 128>}]} {
    %c0 = arith.constant 0 : index
    %c0_0 = arith.constant 0 : index
    %c0_1 = arith.constant 0 : index
    %0 = vector.load %arg1[%c0, %c0_0, %c0_1] : memref<1x64x72xbf16, #tpu.memory_space<vmem>>, vector<1x64x72xbf16>
    %1 = vector.shape_cast %0 : vector<1x64x72xbf16> to vector<64x72xbf16>
    %c0_2 = arith.constant 0 : index
    %c0_3 = arith.constant 0 : index
    %2 = vector.load %arg2[%c0_2, %c0_3] : memref<72x128xbf16, #tpu.memory_space<vmem>>, vector<72x128xbf16>
    %cst = arith.constant dense<0.000000e+00> : vector<64x128xf32>
    %3 = tpu.matmul %1, %2, %cst {dimension_numbers = #tpu.dot_dimension_numbers<[1], [0], [0], [1], [0, 0, 1, 1], [], []>} : vector<64x72xbf16>, vector<72x128xbf16>, vector<64x128xf32> -> vector<64x128xf32>
    %c0_4 = arith.constant 0 : index
    %c0_5 = arith.constant 0 : index
    %4 = vector.load %arg3[%c0_4, %c0_5] : memref<1x128xf32, #tpu.memory_space<vmem>>, vector<1x128xf32>
    %5 = vector.broadcast %4 : vector<1x128xf32> to vector<64x128xf32>
    %6 = arith.addf %3, %5 : vector<64x128xf32>
    %cst_6 = arith.constant 0.000000e+00 : f32
    %7 = vector.broadcast %cst_6 : f32 to vector<64x128xf32>
    %8 = arith.maximumf %6, %7 : vector<64x128xf32>
    %9 = arith.truncf %8 : vector<64x128xf32> to vector<64x128xbf16>
    %cst_7 = arith.constant 0.000000e+00 : bf16
    %10 = vector.broadcast %cst_7 : bf16 to vector<1x12x16x128xbf16>
    %c0_8 = arith.constant 0 : index
    %c0_9 = arith.constant 0 : index
    %c0_10 = arith.constant 0 : index
    %c0_11 = arith.constant 0 : index
    %11 = vector.load %arg9[%c0_8, %c0_9, %c0_10, %c0_11] : memref<1x12x16x128xbf16, #tpu.memory_space<vmem>>, vector<1x12x16x128xbf16>
    tpu.vector_store %arg9[%c0_8, %c0_9, %c0_10, %c0_11], %10 {strides = array<i32>} : memref<1x12x16x128xbf16, #tpu.memory_space<vmem>>, vector<1x12x16x128xbf16>,
    %12 = vector.shape_cast %9 : vector<64x128xbf16> to vector<1x8x8x128xbf16>
    %c0_12 = arith.constant 0 : index
    %c2 = arith.constant 2 : index
    %c2_13 = arith.constant 2 : index
    %c0_14 = arith.constant 0 : index
    %13 = vector.load %arg9[%c0_12, %c2, %c2_13, %c0_14] : memref<1x12x16x128xbf16, #tpu.memory_space<vmem>>, vector<1x8x8x128xbf16>
    tpu.vector_store %arg9[%c0_12, %c2, %c2_13, %c0_14], %12 {strides = array<i32>} : memref<1x12x16x128xbf16, #tpu.memory_space<vmem>>, vector<1x8x8x128xbf16>,
    %c0_15 = arith.constant 0 : index
    %c0_16 = arith.constant 0 : index
    %c0_17 = arith.constant 0 : index
    %c0_18 = arith.constant 0 : index
    %14 = vector.load %arg9[%c0_15, %c0_16, %c0_17, %c0_18] : memref<1x12x16x128xbf16, #tpu.memory_space<vmem>>, vector<1x8x8x128xbf16>
    %15 = vector.shape_cast %14 : vector<1x8x8x128xbf16> to vector<64x128xbf16>
    %c0_19 = arith.constant 0 : index
    %c0_20 = arith.constant 0 : index
    %c2_21 = arith.constant 2 : index
    %c0_22 = arith.constant 0 : index
    %16 = vector.load %arg9[%c0_19, %c0_20, %c2_21, %c0_22] : memref<1x12x16x128xbf16, #tpu.memory_space<vmem>>, vector<1x8x8x128xbf16>
    %17 = vector.shape_cast %16 : vector<1x8x8x128xbf16> to vector<64x128xbf16>
    %18 = tpu.concatenate %15, %17 in 1 : vector<64x128xbf16>, vector<64x128xbf16> -> vector<64x256xbf16>
    %c0_23 = arith.constant 0 : index
    %c0_24 = arith.constant 0 : index
    %19 = vector.load %arg4[%c0_23, %c0_24] : memref<1152x128xbf16, #tpu.memory_space<vmem>>, vector<256x128xbf16>
    %cst_25 = arith.constant dense<0.000000e+00> : vector<64x128xf32>
    %20 = tpu.matmul %18, %19, %cst_25 {dimension_numbers = #tpu.dot_dimension_numbers<[1], [0], [0], [1], [0, 0, 1, 1], [], []>} : vector<64x256xbf16>, vector<256x128xbf16>, vector<64x128xf32> -> vector<64x128xf32>
    %c0_26 = arith.constant 0 : index
    %c0_27 = arith.constant 0 : index
    %c4 = arith.constant 4 : index
    %c0_28 = arith.constant 0 : index
    %21 = vector.load %arg9[%c0_26, %c0_27, %c4, %c0_28] : memref<1x12x16x128xbf16, #tpu.memory_space<vmem>>, vector<1x8x8x128xbf16>
    %22 = vector.shape_cast %21 : vector<1x8x8x128xbf16> to vector<64x128xbf16>
    %c0_29 = arith.constant 0 : index
    %c2_30 = arith.constant 2 : index
    %c0_31 = arith.constant 0 : index
    %c0_32 = arith.constant 0 : index
    %23 = vector.load %arg9[%c0_29, %c2_30, %c0_31, %c0_32] : memref<1x12x16x128xbf16, #tpu.memory_space<vmem>>, vector<1x8x8x128xbf16>
    %24 = vector.shape_cast %23 : vector<1x8x8x128xbf16> to vector<64x128xbf16>
    %25 = tpu.concatenate %22, %24 in 1 : vector<64x128xbf16>, vector<64x128xbf16> -> vector<64x256xbf16>
    %c256 = arith.constant 256 : index
    %c0_33 = arith.constant 0 : index
    %26 = vector.load %arg4[%c256, %c0_33] : memref<1152x128xbf16, #tpu.memory_space<vmem>>, vector<256x128xbf16>
    %cst_34 = arith.constant dense<0.000000e+00> : vector<64x128xf32>
    %27 = tpu.matmul %25, %26, %cst_34 {dimension_numbers = #tpu.dot_dimension_numbers<[1], [0], [0], [1], [0, 0, 1, 1], [], []>} : vector<64x256xbf16>, vector<256x128xbf16>, vector<64x128xf32> -> vector<64x128xf32>
    %28 = arith.addf %20, %27 : vector<64x128xf32>
    %c0_35 = arith.constant 0 : index
    %c2_36 = arith.constant 2 : index
    %c2_37 = arith.constant 2 : index
    %c0_38 = arith.constant 0 : index
    %29 = vector.load %arg9[%c0_35, %c2_36, %c2_37, %c0_38] : memref<1x12x16x128xbf16, #tpu.memory_space<vmem>>, vector<1x8x8x128xbf16>
    %30 = vector.shape_cast %29 : vector<1x8x8x128xbf16> to vector<64x128xbf16>
    %c0_39 = arith.constant 0 : index
    %c2_40 = arith.constant 2 : index
    %c4_41 = arith.constant 4 : index
    %c0_42 = arith.constant 0 : index
    %31 = vector.load %arg9[%c0_39, %c2_40, %c4_41, %c0_42] : memref<1x12x16x128xbf16, #tpu.memory_space<vmem>>, vector<1x8x8x128xbf16>
    %32 = vector.shape_cast %31 : vector<1x8x8x128xbf16> to vector<64x128xbf16>
    %33 = tpu.concatenate %30, %32 in 1 : vector<64x128xbf16>, vector<64x128xbf16> -> vector<64x256xbf16>
    %c512 = arith.constant 512 : index
    %c0_43 = arith.constant 0 : index
    %34 = vector.load %arg4[%c512, %c0_43] : memref<1152x128xbf16, #tpu.memory_space<vmem>>, vector<256x128xbf16>
    %cst_44 = arith.constant dense<0.000000e+00> : vector<64x128xf32>
    %35 = tpu.matmul %33, %34, %cst_44 {dimension_numbers = #tpu.dot_dimension_numbers<[1], [0], [0], [1], [0, 0, 1, 1], [], []>} : vector<64x256xbf16>, vector<256x128xbf16>, vector<64x128xf32> -> vector<64x128xf32>
    %36 = arith.addf %28, %35 : vector<64x128xf32>
    %c0_45 = arith.constant 0 : index
    %c4_46 = arith.constant 4 : index
    %c0_47 = arith.constant 0 : index
    %c0_48 = arith.constant 0 : index
    %37 = vector.load %arg9[%c0_45, %c4_46, %c0_47, %c0_48] : memref<1x12x16x128xbf16, #tpu.memory_space<vmem>>, vector<1x8x8x128xbf16>
    %38 = vector.shape_cast %37 : vector<1x8x8x128xbf16> to vector<64x128xbf16>
    %c0_49 = arith.constant 0 : index
    %c4_50 = arith.constant 4 : index
    %c2_51 = arith.constant 2 : index
    %c0_52 = arith.constant 0 : index
    %39 = vector.load %arg9[%c0_49, %c4_50, %c2_51, %c0_52] : memref<1x12x16x128xbf16, #tpu.memory_space<vmem>>, vector<1x8x8x128xbf16>
    %40 = vector.shape_cast %39 : vector<1x8x8x128xbf16> to vector<64x128xbf16>
    %41 = tpu.concatenate %38, %40 in 1 : vector<64x128xbf16>, vector<64x128xbf16> -> vector<64x256xbf16>
    %c768 = arith.constant 768 : index
    %c0_53 = arith.constant 0 : index
    %42 = vector.load %arg4[%c768, %c0_53] : memref<1152x128xbf16, #tpu.memory_space<vmem>>, vector<256x128xbf16>
    %cst_54 = arith.constant dense<0.000000e+00> : vector<64x128xf32>
    %43 = tpu.matmul %41, %42, %cst_54 {dimension_numbers = #tpu.dot_dimension_numbers<[1], [0], [0], [1], [0, 0, 1, 1], [], []>} : vector<64x256xbf16>, vector<256x128xbf16>, vector<64x128xf32> -> vector<64x128xf32>
    %44 = arith.addf %36, %43 : vector<64x128xf32>
    %c0_55 = arith.constant 0 : index
    %c4_56 = arith.constant 4 : index
    %c4_57 = arith.constant 4 : index
    %c0_58 = arith.constant 0 : index
    %45 = vector.load %arg9[%c0_55, %c4_56, %c4_57, %c0_58] : memref<1x12x16x128xbf16, #tpu.memory_space<vmem>>, vector<1x8x8x128xbf16>
    %46 = vector.shape_cast %45 : vector<1x8x8x128xbf16> to vector<64x128xbf16>
    %c1024 = arith.constant 1024 : index
    %c0_59 = arith.constant 0 : index
    %47 = vector.load %arg4[%c1024, %c0_59] : memref<1152x128xbf16, #tpu.memory_space<vmem>>, vector<128x128xbf16>
    %cst_60 = arith.constant dense<0.000000e+00> : vector<64x128xf32>
    %48 = tpu.matmul %46, %47, %cst_60 {dimension_numbers = #tpu.dot_dimension_numbers<[1], [0], [0], [1], [0, 0, 1, 1], [], []>} : vector<64x128xbf16>, vector<128x128xbf16>, vector<64x128xf32> -> vector<64x128xf32>
    %49 = arith.addf %44, %48 : vector<64x128xf32>
    %c0_61 = arith.constant 0 : index
    %c0_62 = arith.constant 0 : index
    %50 = vector.load %arg5[%c0_61, %c0_62] : memref<1x128xf32, #tpu.memory_space<vmem>>, vector<1x128xf32>
    %51 = vector.broadcast %50 : vector<1x128xf32> to vector<64x128xf32>
    %52 = arith.addf %49, %51 : vector<64x128xf32>
    %cst_63 = arith.constant 0.000000e+00 : f32
    %53 = vector.broadcast %cst_63 : f32 to vector<64x128xf32>
    %54 = arith.maximumf %52, %53 : vector<64x128xf32>
    %55 = arith.truncf %54 : vector<64x128xf32> to vector<64x128xbf16>
    %cst_64 = arith.constant 0.000000e+00 : bf16
    %56 = vector.broadcast %cst_64 : bf16 to vector<1x12x16x128xbf16>
    %c0_65 = arith.constant 0 : index
    %c0_66 = arith.constant 0 : index
    %c0_67 = arith.constant 0 : index
    %c0_68 = arith.constant 0 : index
    %57 = vector.load %arg10[%c0_65, %c0_66, %c0_67, %c0_68] : memref<1x12x16x128xbf16, #tpu.memory_space<vmem>>, vector<1x12x16x128xbf16>
    tpu.vector_store %arg10[%c0_65, %c0_66, %c0_67, %c0_68], %56 {strides = array<i32>} : memref<1x12x16x128xbf16, #tpu.memory_space<vmem>>, vector<1x12x16x128xbf16>,
    %58 = vector.shape_cast %55 : vector<64x128xbf16> to vector<1x8x8x128xbf16>
    %c0_69 = arith.constant 0 : index
    %c2_70 = arith.constant 2 : index
    %c2_71 = arith.constant 2 : index
    %c0_72 = arith.constant 0 : index
    %59 = vector.load %arg10[%c0_69, %c2_70, %c2_71, %c0_72] : memref<1x12x16x128xbf16, #tpu.memory_space<vmem>>, vector<1x8x8x128xbf16>
    tpu.vector_store %arg10[%c0_69, %c2_70, %c2_71, %c0_72], %58 {strides = array<i32>} : memref<1x12x16x128xbf16, #tpu.memory_space<vmem>>, vector<1x8x8x128xbf16>,
    %c0_73 = arith.constant 0 : index
    %c0_74 = arith.constant 0 : index
    %c0_75 = arith.constant 0 : index
    %c0_76 = arith.constant 0 : index
    %60 = vector.load %arg10[%c0_73, %c0_74, %c0_75, %c0_76] : memref<1x12x16x128xbf16, #tpu.memory_space<vmem>>, vector<1x8x8x128xbf16>
    %61 = vector.shape_cast %60 : vector<1x8x8x128xbf16> to vector<64x128xbf16>
    %c0_77 = arith.constant 0 : index
    %c0_78 = arith.constant 0 : index
    %c2_79 = arith.constant 2 : index
    %c0_80 = arith.constant 0 : index
    %62 = vector.load %arg10[%c0_77, %c0_78, %c2_79, %c0_80] : memref<1x12x16x128xbf16, #tpu.memory_space<vmem>>, vector<1x8x8x128xbf16>
    %63 = vector.shape_cast %62 : vector<1x8x8x128xbf16> to vector<64x128xbf16>
    %64 = tpu.concatenate %61, %63 in 1 : vector<64x128xbf16>, vector<64x128xbf16> -> vector<64x256xbf16>
    %c0_81 = arith.constant 0 : index
    %c0_82 = arith.constant 0 : index
    %65 = vector.load %arg6[%c0_81, %c0_82] : memref<1152x128xbf16, #tpu.memory_space<vmem>>, vector<256x128xbf16>
    %cst_83 = arith.constant dense<0.000000e+00> : vector<64x128xf32>
    %66 = tpu.matmul %64, %65, %cst_83 {dimension_numbers = #tpu.dot_dimension_numbers<[1], [0], [0], [1], [0, 0, 1, 1], [], []>} : vector<64x256xbf16>, vector<256x128xbf16>, vector<64x128xf32> -> vector<64x128xf32>
    %c0_84 = arith.constant 0 : index
    %c0_85 = arith.constant 0 : index
    %c4_86 = arith.constant 4 : index
    %c0_87 = arith.constant 0 : index
    %67 = vector.load %arg10[%c0_84, %c0_85, %c4_86, %c0_87] : memref<1x12x16x128xbf16, #tpu.memory_space<vmem>>, vector<1x8x8x128xbf16>
    %68 = vector.shape_cast %67 : vector<1x8x8x128xbf16> to vector<64x128xbf16>
    %c0_88 = arith.constant 0 : index
    %c2_89 = arith.constant 2 : index
    %c0_90 = arith.constant 0 : index
    %c0_91 = arith.constant 0 : index
    %69 = vector.load %arg10[%c0_88, %c2_89, %c0_90, %c0_91] : memref<1x12x16x128xbf16, #tpu.memory_space<vmem>>, vector<1x8x8x128xbf16>
    %70 = vector.shape_cast %69 : vector<1x8x8x128xbf16> to vector<64x128xbf16>
    %71 = tpu.concatenate %68, %70 in 1 : vector<64x128xbf16>, vector<64x128xbf16> -> vector<64x256xbf16>
    %c256_92 = arith.constant 256 : index
    %c0_93 = arith.constant 0 : index
    %72 = vector.load %arg6[%c256_92, %c0_93] : memref<1152x128xbf16, #tpu.memory_space<vmem>>, vector<256x128xbf16>
    %cst_94 = arith.constant dense<0.000000e+00> : vector<64x128xf32>
    %73 = tpu.matmul %71, %72, %cst_94 {dimension_numbers = #tpu.dot_dimension_numbers<[1], [0], [0], [1], [0, 0, 1, 1], [], []>} : vector<64x256xbf16>, vector<256x128xbf16>, vector<64x128xf32> -> vector<64x128xf32>
    %74 = arith.addf %66, %73 : vector<64x128xf32>
    %c0_95 = arith.constant 0 : index
    %c2_96 = arith.constant 2 : index
    %c2_97 = arith.constant 2 : index
    %c0_98 = arith.constant 0 : index
    %75 = vector.load %arg10[%c0_95, %c2_96, %c2_97, %c0_98] : memref<1x12x16x128xbf16, #tpu.memory_space<vmem>>, vector<1x8x8x128xbf16>
    %76 = vector.shape_cast %75 : vector<1x8x8x128xbf16> to vector<64x128xbf16>
    %c0_99 = arith.constant 0 : index
    %c2_100 = arith.constant 2 : index
    %c4_101 = arith.constant 4 : index
    %c0_102 = arith.constant 0 : index
    %77 = vector.load %arg10[%c0_99, %c2_100, %c4_101, %c0_102] : memref<1x12x16x128xbf16, #tpu.memory_space<vmem>>, vector<1x8x8x128xbf16>
    %78 = vector.shape_cast %77 : vector<1x8x8x128xbf16> to vector<64x128xbf16>
    %79 = tpu.concatenate %76, %78 in 1 : vector<64x128xbf16>, vector<64x128xbf16> -> vector<64x256xbf16>
    %c512_103 = arith.constant 512 : index
    %c0_104 = arith.constant 0 : index
    %80 = vector.load %arg6[%c512_103, %c0_104] : memref<1152x128xbf16, #tpu.memory_space<vmem>>, vector<256x128xbf16>
    %cst_105 = arith.constant dense<0.000000e+00> : vector<64x128xf32>
    %81 = tpu.matmul %79, %80, %cst_105 {dimension_numbers = #tpu.dot_dimension_numbers<[1], [0], [0], [1], [0, 0, 1, 1], [], []>} : vector<64x256xbf16>, vector<256x128xbf16>, vector<64x128xf32> -> vector<64x128xf32>
    %82 = arith.addf %74, %81 : vector<64x128xf32>
    %c0_106 = arith.constant 0 : index
    %c4_107 = arith.constant 4 : index
    %c0_108 = arith.constant 0 : index
    %c0_109 = arith.constant 0 : index
    %83 = vector.load %arg10[%c0_106, %c4_107, %c0_108, %c0_109] : memref<1x12x16x128xbf16, #tpu.memory_space<vmem>>, vector<1x8x8x128xbf16>
    %84 = vector.shape_cast %83 : vector<1x8x8x128xbf16> to vector<64x128xbf16>
    %c0_110 = arith.constant 0 : index
    %c4_111 = arith.constant 4 : index
    %c2_112 = arith.constant 2 : index
    %c0_113 = arith.constant 0 : index
    %85 = vector.load %arg10[%c0_110, %c4_111, %c2_112, %c0_113] : memref<1x12x16x128xbf16, #tpu.memory_space<vmem>>, vector<1x8x8x128xbf16>
    %86 = vector.shape_cast %85 : vector<1x8x8x128xbf16> to vector<64x128xbf16>
    %87 = tpu.concatenate %84, %86 in 1 : vector<64x128xbf16>, vector<64x128xbf16> -> vector<64x256xbf16>
    %c768_114 = arith.constant 768 : index
    %c0_115 = arith.constant 0 : index
    %88 = vector.load %arg6[%c768_114, %c0_115] : memref<1152x128xbf16, #tpu.memory_space<vmem>>, vector<256x128xbf16>
    %cst_116 = arith.constant dense<0.000000e+00> : vector<64x128xf32>
    %89 = tpu.matmul %87, %88, %cst_116 {dimension_numbers = #tpu.dot_dimension_numbers<[1], [0], [0], [1], [0, 0, 1, 1], [], []>} : vector<64x256xbf16>, vector<256x128xbf16>, vector<64x128xf32> -> vector<64x128xf32>
    %90 = arith.addf %82, %89 : vector<64x128xf32>
    %c0_117 = arith.constant 0 : index
    %c4_118 = arith.constant 4 : index
    %c4_119 = arith.constant 4 : index
    %c0_120 = arith.constant 0 : index
    %91 = vector.load %arg10[%c0_117, %c4_118, %c4_119, %c0_120] : memref<1x12x16x128xbf16, #tpu.memory_space<vmem>>, vector<1x8x8x128xbf16>
    %92 = vector.shape_cast %91 : vector<1x8x8x128xbf16> to vector<64x128xbf16>
    %c1024_121 = arith.constant 1024 : index
    %c0_122 = arith.constant 0 : index
    %93 = vector.load %arg6[%c1024_121, %c0_122] : memref<1152x128xbf16, #tpu.memory_space<vmem>>, vector<128x128xbf16>
    %cst_123 = arith.constant dense<0.000000e+00> : vector<64x128xf32>
    %94 = tpu.matmul %92, %93, %cst_123 {dimension_numbers = #tpu.dot_dimension_numbers<[1], [0], [0], [1], [0, 0, 1, 1], [], []>} : vector<64x128xbf16>, vector<128x128xbf16>, vector<64x128xf32> -> vector<64x128xf32>
    %95 = arith.addf %90, %94 : vector<64x128xf32>
    %c0_124 = arith.constant 0 : index
    %c0_125 = arith.constant 0 : index
    %96 = vector.load %arg7[%c0_124, %c0_125] : memref<1x128xf32, #tpu.memory_space<vmem>>, vector<1x128xf32>
    %97 = vector.broadcast %96 : vector<1x128xf32> to vector<64x128xf32>
    %98 = arith.addf %95, %97 : vector<64x128xf32>
    %99 = vector.shape_cast %98 : vector<64x128xf32> to vector<1x64x128xf32>
    %c0_126 = arith.constant 0 : index
    %c0_127 = arith.constant 0 : index
    %c0_128 = arith.constant 0 : index
    %100 = vector.load %arg8[%c0_126, %c0_127, %c0_128] : memref<1x64x128xf32, #tpu.memory_space<vmem>>, vector<1x64x128xf32>
    tpu.vector_store %arg8[%c0_126, %c0_127, %c0_128], %99 {strides = array<i32>} : memref<1x64x128xf32, #tpu.memory_space<vmem>>, vector<1x64x128xf32>,
    return
  }
  func.func @transform_0(%arg0: i32) -> (i32, i32, i32) {
    %c0_i32 = arith.constant 0 : i32
    %c0_i32_0 = arith.constant 0 : i32
    %c0_i32_1 = arith.constant 0 : i32
    return %arg0, %c0_i32, %c0_i32_0 : i32, i32, i32
  }
  func.func @transform_1(%arg0: i32) -> (i32, i32) {
    %c0_i32 = arith.constant 0 : i32
    %c0_i32_0 = arith.constant 0 : i32
    %c0_i32_1 = arith.constant 0 : i32
    return %c0_i32, %c0_i32_0 : i32, i32
  }
  func.func @transform_2(%arg0: i32) -> (i32, i32) {
    %c0_i32 = arith.constant 0 : i32
    %c0_i32_0 = arith.constant 0 : i32
    %c0_i32_1 = arith.constant 0 : i32
    return %c0_i32, %c0_i32_0 : i32, i32
  }
  func.func @transform_3(%arg0: i32) -> (i32, i32) {
    %c0_i32 = arith.constant 0 : i32
    %c0_i32_0 = arith.constant 0 : i32
    %c0_i32_1 = arith.constant 0 : i32
    return %c0_i32, %c0_i32_0 : i32, i32
  }
  func.func @transform_4(%arg0: i32) -> (i32, i32) {
    %c0_i32 = arith.constant 0 : i32
    %c0_i32_0 = arith.constant 0 : i32
    %c0_i32_1 = arith.constant 0 : i32
    return %c0_i32, %c0_i32_0 : i32, i32
  }
  func.func @transform_5(%arg0: i32) -> (i32, i32) {
    %c0_i32 = arith.constant 0 : i32
    %c0_i32_0 = arith.constant 0 : i32
    %c0_i32_1 = arith.constant 0 : i32
    return %c0_i32, %c0_i32_0 : i32, i32
  }
  func.func @transform_6(%arg0: i32) -> (i32, i32) {
    %c0_i32 = arith.constant 0 : i32
    %c0_i32_0 = arith.constant 0 : i32
    %c0_i32_1 = arith.constant 0 : i32
    return %c0_i32, %c0_i32_0 : i32, i32
  }
  func.func @transform_7(%arg0: i32) -> (i32, i32, i32) {
    %c0_i32 = arith.constant 0 : i32
    %c0_i32_0 = arith.constant 0 : i32
    %c0_i32_1 = arith.constant 0 : i32
    return %arg0, %c0_i32, %c0_i32_0 : i32, i32, i32
  }
}

</mosaic_0001>

<llo_original>
// kernel: block_aa_forward.1
$region0: #{block_aa_forward.1}
  #allocation0 [shape = 'u32[]', space=smem, size = 0x4, offset = 0x4, fixed_abs, tag = 'smem constant byte address 0x4 - core index']
  #allocation1 [shape = 'u32[144,128]{1,0:T(1,128)}', space=vmem, size = 0x12000, scoped, tag = 'internal scratch']
  #allocation2 [shape = 'bf16[1,12,16,128]{3,2,1,0:T(16,128)(2,1)}', space=vmem, size = 0xc000, scoped, tag = 'scratch operand']
  #allocation3 [shape = 'bf16[1,12,16,128]{3,2,1,0:T(16,128)(2,1)}', space=vmem, size = 0xc000, scoped, tag = 'scratch operand']
  %s0 = inlined_call_operand.vmem [shape: bf16[2,64,72], index: 0, kind: input, shape index: {}]
  %s1 = inlined_call_operand.vmem [shape: bf16[72,128], index: 1, kind: input, shape index: {}]
  %s2 = inlined_call_operand.vmem [shape: f32[1,128], index: 2, kind: input, shape index: {}]
  %s3 = inlined_call_operand.vmem [shape: bf16[1152,128], index: 3, kind: input, shape index: {}]
  %s4 = inlined_call_operand.vmem [shape: f32[1,128], index: 4, kind: input, shape index: {}]
  %s5 = inlined_call_operand.vmem [shape: bf16[1152,128], index: 5, kind: input, shape index: {}]
  %s6 = inlined_call_operand.vmem [shape: f32[1,128], index: 6, kind: input, shape index: {}]
  %s7 = inlined_call_operand.vmem [shape: f32[2,64,128], index: 7, kind: output, shape index: {}]
  %s8 = sld [smem:[#allocation0]]
  $region61: #{block_aa_forward.1} parent=0
    _
  %s10 = ssub.s32 1, %s8
  %s11 = scalar_select 0, %s10, %s8
  loop: start=0, step=1, limit=4
  $region2: #{block_aa_forward.1} parent=0 // loop_pre_header
    _
  $region3: #{block_aa_forward.1} parent=0 // loop_header
    %s13 = sphi 0, %s17
    %p14 = scmp.ge.s32.totalorder %s13, 4
    %s23 = sphi 0, %s25
    %s26 = sphi 0, %s23
    %s27 = sphi 0, %s26
    %s43 = sphi 0, %s27
    %s47 = sphi 0, %s47
    %s49 = sphi 0, %s47
    %s50 = sphi 0, %s49
    %s64 = sphi 0, %s50
    %s68 = sphi 0, %s68
    %s70 = sphi 0, %s68
    %s71 = sphi 0, %s70
    %s85 = sphi 0, %s71
    %s89 = sphi 0, %s89
    %s91 = sphi 0, %s89
    %s92 = sphi 0, %s91
    %s106 = sphi 0, %s92
    %s110 = sphi 0, %s110
    %s112 = sphi 0, %s110
    %s113 = sphi 0, %s112
    %s127 = sphi 0, %s113
    %s131 = sphi 0, %s131
    %s133 = sphi 0, %s131
    %s134 = sphi 0, %s133
    %s148 = sphi 0, %s134
    %s152 = sphi 0, %s152
    %s154 = sphi 0, %s152
    %s155 = sphi 0, %s154
    %s169 = sphi 0, %s155
    %s175 = sphi 0, %s177
    %s178 = sphi 0, %s175
    %s179 = sphi 0, %s178
    %s195 = sphi 0, %s179
  $region4: #{block_aa_forward.1} parent=0 // loop_header_branch
    %16 = sbr.rel (%p14) target = $region8
  $region5: #{block_aa_forward.1} parent=0 // loop_body
    %s18 = ssub.s32 %s13, 1
    %s19 = ssub.s32 %s13, 2
    %s20 = sadd.s32 %s13, 1
    %s21 = ssub.s32 %s13, %s20
    %p22 = scmp.eq.s32.totalorder %s21, 0
    %s24 = sadd.s32 %s23, 1
    %s25 = scalar_select %p22, %s23, %s24
    %p28 = pneg %p22
    %p29 = scmp.eq.s32.totalorder %s13, 1
    %p30 = por %p28, %p29
    %p31 = scmp.ne.s32.totalorder %s23, %s26
    %p32 = scmp.eq.s32.totalorder %s13, 0
    %p33 = por %p31, %p32
    %p34 = scmp.ne.s32.totalorder %s23, %s26
    %p35 = scmp.eq.s32.totalorder %s18, 1
    %p36 = por %p34, %p35
    %p37 = scmp.ne.s32.totalorder %s26, %s27
    %p38 = scmp.eq.s32.totalorder %s18, 0
    %p39 = por %p37, %p38
    %p40 = scmp.ne.s32.totalorder %s26, %s27
    %p41 = scmp.eq.s32.totalorder %s19, 1
    %p42 = por %p40, %p41
    %p44 = scmp.ne.s32.totalorder %s27, %s43
    %p45 = scmp.eq.s32.totalorder %s19, 0
    %p46 = por %p44, %p45
    %s48 = sadd.s32 %s47, 1
    %p51 = scmp.eq.s32.totalorder %s13, 1
    %p52 = scmp.ne.s32.totalorder %s47, %s49
    %p53 = scmp.eq.s32.totalorder %s13, 0
    %p54 = por %p52, %p53
    %p55 = scmp.ne.s32.totalorder %s47, %s49
    %p56 = scmp.eq.s32.totalorder %s18, 1
    %p57 = por %p55, %p56
    %p58 = scmp.ne.s32.totalorder %s49, %s50
    %p59 = scmp.eq.s32.totalorder %s18, 0
    %p60 = por %p58, %p59
    %p61 = scmp.ne.s32.totalorder %s49, %s50
    %p62 = scmp.eq.s32.totalorder %s19, 1
    %p63 = por %p61, %p62
    %p65 = scmp.ne.s32.totalorder %s50, %s64
    %p66 = scmp.eq.s32.totalorder %s19, 0
    %p67 = por %p65, %p66
    %s69 = sadd.s32 %s68, 1
    %p72 = scmp.eq.s32.totalorder %s13, 1
    %p73 = scmp.ne.s32.totalorder %s68, %s70
    %p74 = scmp.eq.s32.totalorder %s13, 0
    %p75 = por %p73, %p74
    %p76 = scmp.ne.s32.totalorder %s68, %s70
    %p77 = scmp.eq.s32.totalorder %s18, 1
    %p78 = por %p76, %p77
    %p79 = scmp.ne.s32.totalorder %s70, %s71
    %p80 = scmp.eq.s32.totalorder %s18, 0
    %p81 = por %p79, %p80
    %p82 = scmp.ne.s32.totalorder %s70, %s71
    %p83 = scmp.eq.s32.totalorder %s19, 1
    %p84 = por %p82, %p83
    %p86 = scmp.ne.s32.totalorder %s71, %s85
    %p87 = scmp.eq.s32.totalorder %s19, 0
    %p88 = por %p86, %p87
    %s90 = sadd.s32 %s89, 1
    %p93 = scmp.eq.s32.totalorder %s13, 1
    %p94 = scmp.ne.s32.totalorder %s89, %s91
    %p95 = scmp.eq.s32.totalorder %s13, 0
    %p96 = por %p94, %p95
    %p97 = scmp.ne.s32.totalorder %s89, %s91
    %p98 = scmp.eq.s32.totalorder %s18, 1
    %p99 = por %p97, %p98
    %p100 = scmp.ne.s32.totalorder %s91, %s92
    %p101 = scmp.eq.s32.totalorder %s18, 0
    %p102 = por %p100, %p101
    %p103 = scmp.ne.s32.totalorder %s91, %s92
    %p104 = scmp.eq.s32.totalorder %s19, 1
    %p105 = por %p103, %p104
    %p107 = scmp.ne.s32.totalorder %s92, %s106
    %p108 = scmp.eq.s32.totalorder %s19, 0
    %p109 = por %p107, %p108
    %s111 = sadd.s32 %s110, 1
    %p114 = scmp.eq.s32.totalorder %s13, 1
    %p115 = scmp.ne.s32.totalorder %s110, %s112
    %p116 = scmp.eq.s32.totalorder %s13, 0
    %p117 = por %p115, %p116
    %p118 = scmp.ne.s32.totalorder %s110, %s112
    %p119 = scmp.eq.s32.totalorder %s18, 1
    %p120 = por %p118, %p119
    %p121 = scmp.ne.s32.totalorder %s112, %s113
    %p122 = scmp.eq.s32.totalorder %s18, 0
    %p123 = por %p121, %p122
    %p124 = scmp.ne.s32.totalorder %s112, %s113
    %p125 = scmp.eq.s32.totalorder %s19, 1
    %p126 = por %p124, %p125
    %p128 = scmp.ne.s32.totalorder %s113, %s127
    %p129 = scmp.eq.s32.totalorder %s19, 0
    %p130 = por %p128, %p129
    %s132 = sadd.s32 %s131, 1
    %p135 = scmp.eq.s32.totalorder %s13, 1
    %p136 = scmp.ne.s32.totalorder %s131, %s133
    %p137 = scmp.eq.s32.totalorder %s13, 0
    %p138 = por %p136, %p137
    %p139 = scmp.ne.s32.totalorder %s131, %s133
    %p140 = scmp.eq.s32.totalorder %s18, 1
    %p141 = por %p139, %p140
    %p142 = scmp.ne.s32.totalorder %s133, %s134
    %p143 = scmp.eq.s32.totalorder %s18, 0
    %p144 = por %p142, %p143
    %p145 = scmp.ne.s32.totalorder %s133, %s134
    %p146 = scmp.eq.s32.totalorder %s19, 1
    %p147 = por %p145, %p146
    %p149 = scmp.ne.s32.totalorder %s134, %s148
    %p150 = scmp.eq.s32.totalorder %s19, 0
    %p151 = por %p149, %p150
    %s153 = sadd.s32 %s152, 1
    %p156 = scmp.eq.s32.totalorder %s13, 1
    %p157 = scmp.ne.s32.totalorder %s152, %s154
    %p158 = scmp.eq.s32.totalorder %s13, 0
    %p159 = por %p157, %p158
    %p160 = scmp.ne.s32.totalorder %s152, %s154
    %p161 = scmp.eq.s32.totalorder %s18, 1
    %p162 = por %p160, %p161
    %p163 = scmp.ne.s32.totalorder %s154, %s155
    %p164 = scmp.eq.s32.totalorder %s18, 0
    %p165 = por %p163, %p164
    %p166 = scmp.ne.s32.totalorder %s154, %s155
    %p167 = scmp.eq.s32.totalorder %s19, 1
    %p168 = por %p166, %p167
    %p170 = scmp.ne.s32.totalorder %s155, %s169
    %p171 = scmp.eq.s32.totalorder %s19, 0
    %p172 = por %p170, %p171
    %s173 = ssub.s32 %s13, %s20
    %p174 = scmp.eq.s32.totalorder %s173, 0
    %s176 = sadd.s32 %s175, 1
    %s177 = scalar_select %p174, %s175, %s176
    %p180 = pneg %p174
    %p181 = scmp.eq.s32.totalorder %s13, 1
    %p182 = por %p180, %p181
    %p183 = scmp.ne.s32.totalorder %s175, %s178
    %p184 = scmp.eq.s32.totalorder %s13, 0
    %p185 = por %p183, %p184
    %p186 = scmp.ne.s32.totalorder %s175, %s178
    %p187 = scmp.eq.s32.totalorder %s18, 1
    %p188 = por %p186, %p187
    %p189 = scmp.ne.s32.totalorder %s178, %s179
    %p190 = scmp.eq.s32.totalorder %s18, 0
    %p191 = por %p189, %p190
    %p192 = scmp.ne.s32.totalorder %s178, %s179
    %p193 = scmp.eq.s32.totalorder %s19, 1
    %p194 = por %p192, %p193
    %p196 = scmp.ne.s32.totalorder %s179, %s195
    %p197 = scmp.eq.s32.totalorder %s19, 0
    %p198 = por %p196, %p197
    %p199 = scmp.le.s32.totalorder 1, %s13
    %p200 = scmp.lt.s32.totalorder %s13, 3
    %p201 = pnand %p199, %p200
    %p202 = pneg %p201
    // Predicated region
    $region9: #{block_aa_forward.1} parent=5 // pred_check
      _
    $region10: #{block_aa_forward.1} parent=5 // pred_check_branch
      %204 = sbr.rel (%p201) target = $region12
    $region11: #{block_aa_forward.1} parent=5 // pred_region
      %s205 = ssub.s32 %s13, 1
      // Predicated region
      $region13: #{block_aa_forward.1} parent=11 // pred_check
        %p206 = pneg %p60
      $region14: #{block_aa_forward.1} parent=11 // pred_check_branch
        %208 = sbr.rel (%p206) target = $region16
      $region15: #{block_aa_forward.1} parent=11 // pred_region
        _
      $region16: #{block_aa_forward.1} parent=11 // pred_fallthru
        _
      // Predicated region
      $region17: #{block_aa_forward.1} parent=11 // pred_check
        %p209 = pneg %p81
      $region18: #{block_aa_forward.1} parent=11 // pred_check_branch
        %211 = sbr.rel (%p209) target = $region20
      $region19: #{block_aa_forward.1} parent=11 // pred_region
        _
      $region20: #{block_aa_forward.1} parent=11 // pred_fallthru
        _
      // Predicated region
      $region21: #{block_aa_forward.1} parent=11 // pred_check
        %p212 = pneg %p102
      $region22: #{block_aa_forward.1} parent=11 // pred_check_branch
        %214 = sbr.rel (%p212) target = $region24
      $region23: #{block_aa_forward.1} parent=11 // pred_region
        _
      $region24: #{block_aa_forward.1} parent=11 // pred_fallthru
        _
      // Predicated region
      $region25: #{block_aa_forward.1} parent=11 // pred_check
        %p215 = pneg %p123
      $region26: #{block_aa_forward.1} parent=11 // pred_check_branch
        %217 = sbr.rel (%p215) target = $region28
      $region27: #{block_aa_forward.1} parent=11 // pred_region
        _
      $region28: #{block_aa_forward.1} parent=11 // pred_fallthru
        _
      // Predicated region
      $region29: #{block_aa_forward.1} parent=11 // pred_check
        %p218 = pneg %p144
      $region30: #{block_aa_forward.1} parent=11 // pred_check_branch
        %220 = sbr.rel (%p218) target = $region32
      $region31: #{block_aa_forward.1} parent=11 // pred_region
        _
      $region32: #{block_aa_forward.1} parent=11 // pred_fallthru
        _
      // Predicated region
      $region33: #{block_aa_forward.1} parent=11 // pred_check
        %p221 = pneg %p165
      $region34: #{block_aa_forward.1} parent=11 // pred_check_branch
        %223 = sbr.rel (%p221) target = $region36
      $region35: #{block_aa_forward.1} parent=11 // pred_region
        _
      $region36: #{block_aa_forward.1} parent=11 // pred_fallthru
        _
    $region12: #{block_aa_forward.1} parent=5 // pred_fallthru
      _
    %p224 = scmp.lt.s32.totalorder %s13, 2
    // Predicated region
    $region37: #{block_aa_forward.1} parent=5 // pred_check
      %p225 = pneg %p224
    $region38: #{block_aa_forward.1} parent=5 // pred_check_branch
      %227 = sbr.rel (%p225) target = $region40
    $region39: #{block_aa_forward.1} parent=5 // pred_region
      // Predicated region
      $region41: #{block_aa_forward.1} parent=39 // pred_check
        %p228 = pneg %p33
      $region42: #{block_aa_forward.1} parent=39 // pred_check_branch
        %230 = sbr.rel (%p228) target = $region44
      $region43: #{block_aa_forward.1} parent=39 // pred_region
        %p231 = scmp.lt.s32.totalorder %s13, 1
        %s232 = scalar_select %p231, %s13, 1
        %s233 = smul.addr %s232, 8
        %s234 = smul.addr %s233, 4
        %s235 = scalar_lea.vmem %s0, %s234
      $region44: #{block_aa_forward.1} parent=39 // pred_fallthru
        _
    $region40: #{block_aa_forward.1} parent=5 // pred_fallthru
      _
    %p236 = scmp.le.s32.totalorder 1, %s13
    %p237 = scmp.lt.s32.totalorder %s13, 3
    %p238 = pnand %p236, %p237
    %p239 = pneg %p238
    // Predicated region
    $region45: #{block_aa_forward.1} parent=5 // pred_check
      _
    $region46: #{block_aa_forward.1} parent=5 // pred_check_branch
      %241 = sbr.rel (%p238) target = $region48
    $region47: #{block_aa_forward.1} parent=5 // pred_region
      %s242 = ssub.s32 %s13, 1
      %p243 = scmp.lt.s32.totalorder %s18, 1
      %s244 = scalar_select %p243, %s18, 1
      %s245 = smul.addr %s244, 8
      %s246 = smul.addr %s245, 4
      %s247 = scalar_lea.vmem %s0, %s246
      %p248 = pneg %p39
      %p249 = pneg %p36
      %p250 = pneg %p60
      %p251 = pneg %p57
      %p252 = pneg %p81
      %p253 = pneg %p78
      %p254 = pneg %p102
      %p255 = pneg %p99
      %p256 = pneg %p123
      %p257 = pneg %p120
      %p258 = pneg %p144
      %p259 = pneg %p141
      %p260 = pneg %p165
      %p261 = pneg %p162
      %p262 = pneg %p191
      %p263 = pneg %p188
      %p264 = scmp.lt.s32.totalorder %s18, 1
      %s265 = scalar_select %p264, %s18, 1
      %s266 = smul.addr %s265, 8
      %s267 = smul.addr %s266, 8
      %s268 = scalar_lea.vmem %s7, %s267
      %p269 = scmp.lt.s32.totalorder %s18, 1
      %s270 = scalar_select %p269, %s18, 1
      %s271 = smul.addr %s270, 8
      %s272 = smul.addr %s271, 4
      %s273 = scalar_lea.vmem %s0, %s272
      %p274 = scmp.lt.s32.totalorder %s18, 1
      %s275 = scalar_select %p274, %s18, 1
      %s276 = smul.addr %s275, 8
      %s277 = smul.addr %s276, 8
      %s278 = scalar_lea.vmem %s7, %s277
      %v280 = vld [vmem:[%s273] sm:$0xf]
      %v281 = vld [vmem:[%s273 + $0x4] sm:$0xf]
      %v282 = vld [vmem:[%s273 + $0x8] sm:$0xf]
      %v283 = vld [vmem:[%s273 + $0xc] sm:$0xf]
      %v284 = vld [vmem:[%s273 + $0x10] sm:$0xf]
      %v285 = vld [vmem:[%s273 + $0x14] sm:$0xf]
      %v286 = vld [vmem:[%s273 + $0x18] sm:$0xf]
      %v287 = vld [vmem:[%s273 + $0x1c] sm:$0xf]
      %v288 = vld [vmem:[%s1] sm:$0xf]
      %v289 = vld [vmem:[%s1 + $0x4] sm:$0xf]
      %v290 = vld [vmem:[%s1 + $0x8] sm:$0xf]
      %v291 = vld [vmem:[%s1 + $0xc] sm:$0xf]
      %v292 = vld [vmem:[%s1 + $0x10] sm:$0xf]
      %v293 = vld [vmem:[%s1 + $0x14] sm:$0xf]
      %v294 = vld [vmem:[%s1 + $0x18] sm:$0xf]
      %v295 = vld [vmem:[%s1 + $0x1c] sm:$0xf]
      %v296 = vld [vmem:[%s1 + $0x20] sm:$0xf]
      %v297 = vld [vmem:[%s2] sm:$0x1]
      %v299 = vlaneseq
      %v300 = vshrl.u32 %v299, 7
      %v301 = vsub.s32 0, %v300
      %v302 = vrot.slane %v297, %v301
      %v312 = vunpack.c.l.b16 %v280
      %v313 = vunpack.c.l.b16 %v281
      %v314 = vunpack.c.l.b16 %v282
      %v315 = vunpack.c.l.b16 %v283
      %v316 = vunpack.c.l.b16 %v284
      %v317 = vunpack.c.l.b16 %v285
      %v318 = vunpack.c.l.b16 %v286
      %v319 = vunpack.c.l.b16 %v287
      %v320 = vpack.c.b16 %v313, %v312
      %v321 = vpack.c.b16 %v315, %v314
      %v322 = vpack.c.b16 %v317, %v316
      %v323 = vpack.c.b16 %v319, %v318
      %v333 = vunpack.c.l.b16 %v288
      %v334 = vunpack.c.l.b16 %v289
      %v335 = vunpack.c.l.b16 %v290
      %v336 = vunpack.c.l.b16 %v291
      %v337 = vunpack.c.l.b16 %v292
      %v338 = vunpack.c.l.b16 %v293
      %v339 = vunpack.c.l.b16 %v294
      %v340 = vunpack.c.l.b16 %v295
      %v341 = vunpack.c.l.b16 %v296
      %v342 = vpack.c.b16 %v334, %v333
      %v343 = vpack.c.b16 %v336, %v335
      %v344 = vpack.c.b16 %v338, %v337
      %v345 = vpack.c.b16 %v340, %v339
      %v346 = vpack.c.b16 %v341, %v341
      %vm351 = vcmask 588800
      %v353 = vsel %vm351, %v320, 0
      %v356 = vsel %vm351, %v321, 0
      %v359 = vsel %vm351, %v322, 0
      %v362 = vsel %vm351, %v323, 0
      %vm364 = vcmask 1043456
      %v366 = vsel %vm364, %v346, 0
      %368 = vmatprep.subr.bf16.mxu0 0
      %369 = vmatpush1.bf16.msra.mxu0 %v342
      %370 = vmatprep.subr.bf16.mxu0 0
      %371 = vmatpush1.bf16.msra.mxu0 %v343
      %372 = vmatprep.subr.bf16.mxu0 0
      %373 = vmatpush1.bf16.msra.mxu0 %v344
      %374 = vmatprep.subr.bf16.mxu0 0
      %375 = vmatpush1.bf16.msra.mxu0 %v345
      %376 = vmatprep.subr.bf16.mxu0 0
      %377 = vmatpush1.bf16.msra.mxu0 %v366
      %378 = vmatprep.subr.bf16.mxu0 0
      %379 = vmatpush1.bf16.msra.mxu0 0
      %380 = vmatprep.subr.bf16.mxu0 0
      %381 = vmatpush1.bf16.msra.mxu0 0
      %382 = vmatprep.subr.bf16.mxu0 0
      %383 = vmatpush1.bf16.msra.mxu0 0
      %384 = vmatprep.subr.bf16.mxu0 0
      %385 = vmatpush1.bf16.msra.mxu0 0
      %386 = vmatprep.subr.bf16.mxu0 0
      %387 = vmatpush1.bf16.msra.mxu0 0
      %388 = vmatprep.subr.bf16.mxu0 0
      %389 = vmatpush1.bf16.msra.mxu0 0
      %390 = vmatprep.subr.bf16.mxu0 0
      %391 = vmatpush1.bf16.msra.mxu0 0
      %392 = vmatprep.subr.bf16.mxu0 0
      %393 = vmatpush1.bf16.msra.mxu0 0
      %394 = vmatprep.subr.bf16.mxu0 0
      %395 = vmatpush1.bf16.msra.mxu0 0
      %396 = vmatprep.subr.bf16.mxu0 0
      %397 = vmatpush1.bf16.msra.mxu0 0
      %398 = vmatprep.subr.bf16.mxu0 0
      %399 = vmatpush1.bf16.msra.mxu0 0
      %400 = vmatprep.mubr.bf16.mxu0 0
      %401 = vmatmul.mubr.bf16.gmra.mrb[0].mxu0 %v353
      %v402 = vpop.f32.mrb[0].mxu0
      %v403 = vadd.f32 %v302, %v402
      %v404 = vpop.f32.mrb[0].mxu0
      %v405 = vpop.f32.mrb[0].mxu0
      %v406 = vadd.f32 %v302, %v405
      %v407 = vpop.f32.mrb[0].mxu0
      %408 = vmatprep.mubr.bf16.mxu0 0
      %409 = vmatmul.mubr.bf16.gmra.mrb[0].mxu0 %v356
      %v410 = vpop.f32.mrb[0].mxu0
      %v411 = vadd.f32 %v302, %v410
      %v412 = vpop.f32.mrb[0].mxu0
      %v413 = vpop.f32.mrb[0].mxu0
      %v414 = vadd.f32 %v302, %v413
      %v415 = vpop.f32.mrb[0].mxu0
      %416 = vmatprep.mubr.bf16.mxu0 0
      %417 = vmatmul.mubr.bf16.gmra.mrb[0].mxu0 %v359
      %v418 = vpop.f32.mrb[0].mxu0
      %v419 = vadd.f32 %v302, %v418
      %v420 = vpop.f32.mrb[0].mxu0
      %v421 = vpop.f32.mrb[0].mxu0
      %v422 = vadd.f32 %v302, %v421
      %v423 = vpop.f32.mrb[0].mxu0
      %424 = vmatprep.mubr.bf16.mxu0 0
      %425 = vmatmul.mubr.bf16.gmra.mrb[0].mxu0 %v362
      %v426 = vpop.f32.mrb[0].mxu0
      %v427 = vadd.f32 %v302, %v426
      %v428 = vpop.f32.mrb[0].mxu0
      %v429 = vpop.f32.mrb[0].mxu0
      %v430 = vadd.f32 %v302, %v429
      %v431 = vpop.f32.mrb[0].mxu0
      %432 = vdwg.mxu0
      %v433 = vmax.f32 %v403, 0.0
      %v434 = vmax.f32 %v406, 0.0
      %v435 = vmax.f32 %v411, 0.0
      %v436 = vmax.f32 %v414, 0.0
      %v437 = vmax.f32 %v419, 0.0
      %v438 = vmax.f32 %v422, 0.0
      %v439 = vmax.f32 %v427, 0.0
      %v440 = vmax.f32 %v430, 0.0
      %v441 = vpack.c.bf16 %v434, %v433
      %v442 = vpack.c.bf16 %v436, %v435
      %v443 = vpack.c.bf16 %v438, %v437
      %v444 = vpack.c.bf16 %v440, %v439
      %445 = vst [vmem:[#allocation2] sm:$0xff] 0
      %446 = vst [vmem:[#allocation2 + $0x8] sm:$0xff] 0
      %447 = vst [vmem:[#allocation2 + $0x10] sm:$0xff] 0
      %448 = vst [vmem:[#allocation2 + $0x18] sm:$0xff] 0
      %449 = vst [vmem:[#allocation2 + $0x20] sm:$0xff] 0
      %450 = vst [vmem:[#allocation2 + $0x28] sm:$0xff] 0
      %451 = vst [vmem:[#allocation2 + $0x30] sm:$0xff] 0
      %452 = vst [vmem:[#allocation2 + $0x38] sm:$0xff] 0
      %453 = vst [vmem:[#allocation2 + $0x40] sm:$0xff] 0
      %454 = vst [vmem:[#allocation2 + $0x48] sm:$0xff] 0
      %455 = vst [vmem:[#allocation2 + $0x50] sm:$0xff] 0
      %456 = vst [vmem:[#allocation2 + $0x58] sm:$0xff] 0
      %v461 = vunpack.c.l.b16 %v441
      %v462 = vunpack.c.h.b16 %v441
      %v463 = vunpack.c.l.b16 %v442
      %v464 = vunpack.c.h.b16 %v442
      %v465 = vunpack.c.l.b16 %v443
      %v466 = vunpack.c.h.b16 %v443
      %v467 = vunpack.c.l.b16 %v444
      %v468 = vunpack.c.h.b16 %v444
      %v469 = vpack.c.b16 %v461, %v461
      %v470 = vpack.c.b16 %v462, %v462
      %v471 = vpack.c.b16 %v463, %v463
      %v472 = vpack.c.b16 %v464, %v464
      %v473 = vpack.c.b16 %v465, %v465
      %v474 = vpack.c.b16 %v466, %v466
      %v475 = vpack.c.b16 %v467, %v467
      %v476 = vpack.c.b16 %v468, %v468
      %v477 = vrot.slane %v469, 7
      %v478 = vrot.slane %v470, 7
      %v479 = vrot.slane %v471, 7
      %v480 = vrot.slane %v472, 7
      %v481 = vrot.slane %v473, 7
      %v482 = vrot.slane %v474, 7
      %v483 = vrot.slane %v475, 7
      %v484 = vrot.slane %v476, 7
      %s493 = scalar_lea.vmem [#allocation2], 16
      %494 = vst [vmem:[%s493] sm:$0x1e] %v477
      %495 = vst [vmem:[%s493 + $0x8] sm:$0x1e] %v478
      %496 = vst [vmem:[%s493 + $0x10] sm:$0x1e] %v479
      %497 = vst [vmem:[%s493 + $0x18] sm:$0x1e] %v480
      %498 = vst [vmem:[%s493 + $0x20] sm:$0x1e] %v481
      %499 = vst [vmem:[%s493 + $0x28] sm:$0x1e] %v482
      %500 = vst [vmem:[%s493 + $0x30] sm:$0x1e] %v483
      %501 = vst [vmem:[%s493 + $0x38] sm:$0x1e] %v484
      %v502 = vld [vmem:[#allocation2] sm:$0xf]
      %v503 = vld [vmem:[#allocation2 + $0x8] sm:$0xf]
      %v504 = vld [vmem:[#allocation2 + $0x10] sm:$0xf]
      %v505 = vld [vmem:[#allocation2 + $0x18] sm:$0xf]
      %v506 = vld [vmem:[#allocation2 + $0x20] sm:$0xf]
      %v507 = vld [vmem:[#allocation2 + $0x28] sm:$0xf]
      %v508 = vld [vmem:[#allocation2 + $0x30] sm:$0xf]
      %v509 = vld [vmem:[#allocation2 + $0x38] sm:$0xf]
      %v510 = vld [vmem:[#allocation2] sm:$0x1e]
      %v511 = vld [vmem:[#allocation2 + $0x8] sm:$0x1e]
      %v512 = vld [vmem:[#allocation2 + $0x10] sm:$0x1e]
      %v513 = vld [vmem:[#allocation2 + $0x18] sm:$0x1e]
      %v514 = vld [vmem:[#allocation2 + $0x20] sm:$0x1e]
      %v515 = vld [vmem:[#allocation2 + $0x28] sm:$0x1e]
      %v516 = vld [vmem:[#allocation2 + $0x30] sm:$0x1e]
      %v517 = vld [vmem:[#allocation2 + $0x38] sm:$0x1e]
      %v526 = vunpack.c.l.b16 %v510
      %v527 = vunpack.c.h.b16 %v510
      %v528 = vunpack.c.l.b16 %v511
      %v529 = vunpack.c.h.b16 %v511
      %v530 = vunpack.c.l.b16 %v512
      %v531 = vunpack.c.h.b16 %v512
      %v532 = vunpack.c.l.b16 %v513
      %v533 = vunpack.c.h.b16 %v513
      %v534 = vunpack.c.l.b16 %v514
      %v535 = vunpack.c.h.b16 %v514
      %v536 = vunpack.c.l.b16 %v515
      %v537 = vunpack.c.h.b16 %v515
      %v538 = vunpack.c.l.b16 %v516
      %v539 = vunpack.c.h.b16 %v516
      %v540 = vunpack.c.l.b16 %v517
      %v541 = vunpack.c.h.b16 %v517
      %v542 = vpack.c.b16 %v526, %v526
      %v543 = vpack.c.b16 %v527, %v527
      %v544 = vpack.c.b16 %v528, %v528
      %v545 = vpack.c.b16 %v529, %v529
      %v546 = vpack.c.b16 %v530, %v530
      %v547 = vpack.c.b16 %v531, %v531
      %v548 = vpack.c.b16 %v532, %v532
      %v549 = vpack.c.b16 %v533, %v533
      %v550 = vpack.c.b16 %v534, %v534
      %v551 = vpack.c.b16 %v535, %v535
      %v552 = vpack.c.b16 %v536, %v536
      %v553 = vpack.c.b16 %v537, %v537
      %v554 = vpack.c.b16 %v538, %v538
      %v555 = vpack.c.b16 %v539, %v539
      %v556 = vpack.c.b16 %v540, %v540
      %v557 = vpack.c.b16 %v541, %v541
      %vm558 = vcmask 1042432
      %vm559 = vcmask 1046532
      %vm560 = vmor %vm558, %vm559
      %v561 = vrot.slane %v542, 5
      %v562 = vrot.slane %v561, 4
      %v563 = vrot.slane %v543, 5
      %v564 = vsel %vm560, %v562, %v563
      %v565 = vrot.slane %v544, 5
      %v566 = vrot.slane %v565, 4
      %v567 = vrot.slane %v545, 5
      %v568 = vsel %vm560, %v566, %v567
      %v569 = vrot.slane %v546, 5
      %v570 = vrot.slane %v569, 4
      %v571 = vrot.slane %v547, 5
      %v572 = vsel %vm560, %v570, %v571
      %v573 = vrot.slane %v548, 5
      %v574 = vrot.slane %v573, 4
      %v575 = vrot.slane %v549, 5
      %v576 = vsel %vm560, %v574, %v575
      %v577 = vrot.slane %v550, 5
      %v578 = vrot.slane %v577, 4
      %v579 = vrot.slane %v551, 5
      %v580 = vsel %vm560, %v578, %v579
      %v581 = vrot.slane %v552, 5
      %v582 = vrot.slane %v581, 4
      %v583 = vrot.slane %v553, 5
      %v584 = vsel %vm560, %v582, %v583
      %v585 = vrot.slane %v554, 5
      %v586 = vrot.slane %v585, 4
      %v587 = vrot.slane %v555, 5
      %v588 = vsel %vm560, %v586, %v587
      %v589 = vrot.slane %v556, 5
      %v590 = vrot.slane %v589, 4
      %v591 = vrot.slane %v557, 5
      %v592 = vsel %vm560, %v590, %v591
      %v601 = vunpack.c.l.b16 %v502
      %v602 = vunpack.c.l.b16 %v503
      %v603 = vunpack.c.l.b16 %v504
      %v604 = vunpack.c.l.b16 %v505
      %v605 = vunpack.c.l.b16 %v506
      %v606 = vunpack.c.l.b16 %v507
      %v607 = vunpack.c.l.b16 %v508
      %v608 = vunpack.c.l.b16 %v509
      %v609 = vpack.c.b16 %v602, %v601
      %v610 = vpack.c.b16 %v604, %v603
      %v611 = vpack.c.b16 %v606, %v605
      %v612 = vpack.c.b16 %v608, %v607
      %v617 = vunpack.c.l.b16 %v564
      %v618 = vunpack.c.l.b16 %v568
      %v619 = vunpack.c.l.b16 %v572
      %v620 = vunpack.c.l.b16 %v576
      %v621 = vunpack.c.l.b16 %v580
      %v622 = vunpack.c.l.b16 %v584
      %v623 = vunpack.c.l.b16 %v588
      %v624 = vunpack.c.l.b16 %v592
      %v625 = vpack.c.b16 %v618, %v617
      %v626 = vpack.c.b16 %v620, %v619
      %v627 = vpack.c.b16 %v622, %v621
      %v628 = vpack.c.b16 %v624, %v623
      %v633 = vld [vmem:[%s3] sm:$0xf]
      %v634 = vld [vmem:[%s3 + $0x4] sm:$0xf]
      %v635 = vld [vmem:[%s3 + $0x8] sm:$0xf]
      %v636 = vld [vmem:[%s3 + $0xc] sm:$0xf]
      %v637 = vld [vmem:[%s3 + $0x10] sm:$0xf]
      %v638 = vld [vmem:[%s3 + $0x14] sm:$0xf]
      %v639 = vld [vmem:[%s3 + $0x18] sm:$0xf]
      %v640 = vld [vmem:[%s3 + $0x1c] sm:$0xf]
      %v641 = vld [vmem:[%s3 + $0x20] sm:$0xf]
      %v642 = vld [vmem:[%s3 + $0x24] sm:$0xf]
      %v643 = vld [vmem:[%s3 + $0x28] sm:$0xf]
      %v644 = vld [vmem:[%s3 + $0x2c] sm:$0xf]
      %v645 = vld [vmem:[%s3 + $0x30] sm:$0xf]
      %v646 = vld [vmem:[%s3 + $0x34] sm:$0xf]
      %v647 = vld [vmem:[%s3 + $0x38] sm:$0xf]
      %v648 = vld [vmem:[%s3 + $0x3c] sm:$0xf]
      %v649 = vld [vmem:[%s3 + $0x40] sm:$0xf]
      %v650 = vld [vmem:[%s3 + $0x44] sm:$0xf]
      %v651 = vld [vmem:[%s3 + $0x48] sm:$0xf]
      %v652 = vld [vmem:[%s3 + $0x4c] sm:$0xf]
      %v653 = vld [vmem:[%s3 + $0x50] sm:$0xf]
      %v654 = vld [vmem:[%s3 + $0x54] sm:$0xf]
      %v655 = vld [vmem:[%s3 + $0x58] sm:$0xf]
      %v656 = vld [vmem:[%s3 + $0x5c] sm:$0xf]
      %v657 = vld [vmem:[%s3 + $0x60] sm:$0xf]
      %v658 = vld [vmem:[%s3 + $0x64] sm:$0xf]
      %v659 = vld [vmem:[%s3 + $0x68] sm:$0xf]
      %v660 = vld [vmem:[%s3 + $0x6c] sm:$0xf]
      %v661 = vld [vmem:[%s3 + $0x70] sm:$0xf]
      %v662 = vld [vmem:[%s3 + $0x74] sm:$0xf]
      %v663 = vld [vmem:[%s3 + $0x78] sm:$0xf]
      %v664 = vld [vmem:[%s3 + $0x7c] sm:$0xf]
      %v665 = vld [vmem:[#allocation2] sm:$0x3c]
      %v666 = vld [vmem:[#allocation2 + $0x8] sm:$0x3c]
      %v667 = vld [vmem:[#allocation2 + $0x10] sm:$0x3c]
      %v668 = vld [vmem:[#allocation2 + $0x18] sm:$0x3c]
      %v669 = vld [vmem:[#allocation2 + $0x20] sm:$0x3c]
      %v670 = vld [vmem:[#allocation2 + $0x28] sm:$0x3c]
      %v671 = vld [vmem:[#allocation2 + $0x30] sm:$0x3c]
      %v672 = vld [vmem:[#allocation2 + $0x38] sm:$0x3c]
      %v681 = vunpack.c.l.b16 %v665
      %v682 = vunpack.c.h.b16 %v665
      %v683 = vunpack.c.l.b16 %v666
      %v684 = vunpack.c.h.b16 %v666
      %v685 = vunpack.c.l.b16 %v667
      %v686 = vunpack.c.h.b16 %v667
      %v687 = vunpack.c.l.b16 %v668
      %v688 = vunpack.c.h.b16 %v668
      %v689 = vunpack.c.l.b16 %v669
      %v690 = vunpack.c.h.b16 %v669
      %v691 = vunpack.c.l.b16 %v670
      %v692 = vunpack.c.h.b16 %v670
      %v693 = vunpack.c.l.b16 %v671
      %v694 = vunpack.c.h.b16 %v671
      %v695 = vunpack.c.l.b16 %v672
      %v696 = vunpack.c.h.b16 %v672
      %v697 = vpack.c.b16 %v681, %v681
      %v698 = vpack.c.b16 %v682, %v682
      %v699 = vpack.c.b16 %v683, %v683
      %v700 = vpack.c.b16 %v684, %v684
      %v701 = vpack.c.b16 %v685, %v685
      %v702 = vpack.c.b16 %v686, %v686
      %v703 = vpack.c.b16 %v687, %v687
      %v704 = vpack.c.b16 %v688, %v688
      %v705 = vpack.c.b16 %v689, %v689
      %v706 = vpack.c.b16 %v690, %v690
      %v707 = vpack.c.b16 %v691, %v691
      %v708 = vpack.c.b16 %v692, %v692
      %v709 = vpack.c.b16 %v693, %v693
      %v710 = vpack.c.b16 %v694, %v694
      %v711 = vpack.c.b16 %v695, %v695
      %v712 = vpack.c.b16 %v696, %v696
      %vm713 = vcmask 1041408
      %vm714 = vcmask 1045508
      %vm715 = vmor %vm713, %vm714
      %v716 = vrot.slane %v697, 6
      %v717 = vrot.slane %v716, 4
      %v718 = vrot.slane %v698, 6
      %v719 = vsel %vm715, %v717, %v718
      %v720 = vrot.slane %v699, 6
      %v721 = vrot.slane %v720, 4
      %v722 = vrot.slane %v700, 6
      %v723 = vsel %vm715, %v721, %v722
      %v724 = vrot.slane %v701, 6
      %v725 = vrot.slane %v724, 4
      %v726 = vrot.slane %v702, 6
      %v727 = vsel %vm715, %v725, %v726
      %v728 = vrot.slane %v703, 6
      %v729 = vrot.slane %v728, 4
      %v730 = vrot.slane %v704, 6
      %v731 = vsel %vm715, %v729, %v730
      %v732 = vrot.slane %v705, 6
      %v733 = vrot.slane %v732, 4
      %v734 = vrot.slane %v706, 6
      %v735 = vsel %vm715, %v733, %v734
      %v736 = vrot.slane %v707, 6
      %v737 = vrot.slane %v736, 4
      %v738 = vrot.slane %v708, 6
      %v739 = vsel %vm715, %v737, %v738
      %v740 = vrot.slane %v709, 6
      %v741 = vrot.slane %v740, 4
      %v742 = vrot.slane %v710, 6
      %v743 = vsel %vm715, %v741, %v742
      %v744 = vrot.slane %v711, 6
      %v745 = vrot.slane %v744, 4
      %v746 = vrot.slane %v712, 6
      %v747 = vsel %vm715, %v745, %v746
      %v748 = vld [vmem:[%s493] sm:$0xf]
      %v749 = vld [vmem:[%s493 + $0x8] sm:$0xf]
      %v750 = vld [vmem:[%s493 + $0x10] sm:$0xf]
      %v751 = vld [vmem:[%s493 + $0x18] sm:$0xf]
      %v752 = vld [vmem:[%s493 + $0x20] sm:$0xf]
      %v753 = vld [vmem:[%s493 + $0x28] sm:$0xf]
      %v754 = vld [vmem:[%s493 + $0x30] sm:$0xf]
      %v755 = vld [vmem:[%s493 + $0x38] sm:$0xf]
      %v756 = vunpack.c.l.b16 %v719
      %v757 = vunpack.c.l.b16 %v723
      %v758 = vunpack.c.l.b16 %v727
      %v759 = vunpack.c.l.b16 %v731
      %v760 = vunpack.c.l.b16 %v735
      %v761 = vunpack.c.l.b16 %v739
      %v762 = vunpack.c.l.b16 %v743
      %v763 = vunpack.c.l.b16 %v747
      %v764 = vpack.c.b16 %v757, %v756
      %v765 = vpack.c.b16 %v759, %v758
      %v766 = vpack.c.b16 %v761, %v760
      %v767 = vpack.c.b16 %v763, %v762
      %v780 = vunpack.c.l.b16 %v748
      %v781 = vunpack.c.l.b16 %v749
      %v782 = vunpack.c.l.b16 %v750
      %v783 = vunpack.c.l.b16 %v751
      %v784 = vunpack.c.l.b16 %v752
      %v785 = vunpack.c.l.b16 %v753
      %v786 = vunpack.c.l.b16 %v754
      %v787 = vunpack.c.l.b16 %v755
      %v788 = vpack.c.b16 %v781, %v780
      %v789 = vpack.c.b16 %v783, %v782
      %v790 = vpack.c.b16 %v785, %v784
      %v791 = vpack.c.b16 %v787, %v786
      %v796 = vld [vmem:[%s3 + $0x80] sm:$0xf]
      %v797 = vld [vmem:[%s3 + $0x84] sm:$0xf]
      %v798 = vld [vmem:[%s3 + $0x88] sm:$0xf]
      %v799 = vld [vmem:[%s3 + $0x8c] sm:$0xf]
      %v800 = vld [vmem:[%s3 + $0x90] sm:$0xf]
      %v801 = vld [vmem:[%s3 + $0x94] sm:$0xf]
      %v802 = vld [vmem:[%s3 + $0x98] sm:$0xf]
      %v803 = vld [vmem:[%s3 + $0x9c] sm:$0xf]
      %v804 = vld [vmem:[%s3 + $0xa0] sm:$0xf]
      %v805 = vld [vmem:[%s3 + $0xa4] sm:$0xf]
      %v806 = vld [vmem:[%s3 + $0xa8] sm:$0xf]
      %v807 = vld [vmem:[%s3 + $0xac] sm:$0xf]
      %v808 = vld [vmem:[%s3 + $0xb0] sm:$0xf]
      %v809 = vld [vmem:[%s3 + $0xb4] sm:$0xf]
      %v810 = vld [vmem:[%s3 + $0xb8] sm:$0xf]
      %v811 = vld [vmem:[%s3 + $0xbc] sm:$0xf]
      %v812 = vld [vmem:[%s3 + $0xc0] sm:$0xf]
      %v813 = vld [vmem:[%s3 + $0xc4] sm:$0xf]
      %v814 = vld [vmem:[%s3 + $0xc8] sm:$0xf]
      %v815 = vld [vmem:[%s3 + $0xcc] sm:$0xf]
      %v816 = vld [vmem:[%s3 + $0xd0] sm:$0xf]
      %v817 = vld [vmem:[%s3 + $0xd4] sm:$0xf]
      %v818 = vld [vmem:[%s3 + $0xd8] sm:$0xf]
      %v819 = vld [vmem:[%s3 + $0xdc] sm:$0xf]
      %v820 = vld [vmem:[%s3 + $0xe0] sm:$0xf]
      %v821 = vld [vmem:[%s3 + $0xe4] sm:$0xf]
      %v822 = vld [vmem:[%s3 + $0xe8] sm:$0xf]
      %v823 = vld [vmem:[%s3 + $0xec] sm:$0xf]
      %v824 = vld [vmem:[%s3 + $0xf0] sm:$0xf]
      %v825 = vld [vmem:[%s3 + $0xf4] sm:$0xf]
      %v826 = vld [vmem:[%s3 + $0xf8] sm:$0xf]
      %v827 = vld [vmem:[%s3 + $0xfc] sm:$0xf]
      %v860 = vunpack.c.l.b16 %v796
      %v861 = vunpack.c.l.b16 %v797
      %v862 = vunpack.c.l.b16 %v798
      %v863 = vunpack.c.l.b16 %v799
      %v864 = vunpack.c.l.b16 %v800
      %v865 = vunpack.c.l.b16 %v801
      %v866 = vunpack.c.l.b16 %v802
      %v867 = vunpack.c.l.b16 %v803
      %v868 = vunpack.c.l.b16 %v804
      %v869 = vunpack.c.l.b16 %v805
      %v870 = vunpack.c.l.b16 %v806
      %v871 = vunpack.c.l.b16 %v807
      %v872 = vunpack.c.l.b16 %v808
      %v873 = vunpack.c.l.b16 %v809
      %v874 = vunpack.c.l.b16 %v810
      %v875 = vunpack.c.l.b16 %v811
      %v876 = vunpack.c.l.b16 %v812
      %v877 = vunpack.c.l.b16 %v813
      %v878 = vunpack.c.l.b16 %v814
      %v879 = vunpack.c.l.b16 %v815
      %v880 = vunpack.c.l.b16 %v816
      %v881 = vunpack.c.l.b16 %v817
      %v882 = vunpack.c.l.b16 %v818
      %v883 = vunpack.c.l.b16 %v819
      %v884 = vunpack.c.l.b16 %v820
      %v885 = vunpack.c.l.b16 %v821
      %v886 = vunpack.c.l.b16 %v822
      %v887 = vunpack.c.l.b16 %v823
      %v888 = vunpack.c.l.b16 %v824
      %v889 = vunpack.c.l.b16 %v825
      %v890 = vunpack.c.l.b16 %v826
      %v891 = vunpack.c.l.b16 %v827
      %v892 = vpack.c.b16 %v861, %v860
      %v893 = vpack.c.b16 %v863, %v862
      %v894 = vpack.c.b16 %v865, %v864
      %v895 = vpack.c.b16 %v867, %v866
      %v896 = vpack.c.b16 %v869, %v868
      %v897 = vpack.c.b16 %v871, %v870
      %v898 = vpack.c.b16 %v873, %v872
      %v899 = vpack.c.b16 %v875, %v874
      %v900 = vpack.c.b16 %v877, %v876
      %v901 = vpack.c.b16 %v879, %v878
      %v902 = vpack.c.b16 %v881, %v880
      %v903 = vpack.c.b16 %v883, %v882
      %v904 = vpack.c.b16 %v885, %v884
      %v905 = vpack.c.b16 %v887, %v886
      %v906 = vpack.c.b16 %v889, %v888
      %v907 = vpack.c.b16 %v891, %v890
      %924 = vmatprep.subr.bf16.mxu0 0
      %925 = vmatpush1.bf16.msra.mxu0 %v892
      %926 = vmatprep.subr.bf16.mxu0 0
      %927 = vmatpush1.bf16.msra.mxu0 %v893
      %928 = vmatprep.subr.bf16.mxu0 0
      %929 = vmatpush1.bf16.msra.mxu0 %v894
      %930 = vmatprep.subr.bf16.mxu0 0
      %931 = vmatpush1.bf16.msra.mxu0 %v895
      %932 = vmatprep.subr.bf16.mxu0 0
      %933 = vmatpush1.bf16.msra.mxu0 %v896
      %934 = vmatprep.subr.bf16.mxu0 0
      %935 = vmatpush1.bf16.msra.mxu0 %v897
      %936 = vmatprep.subr.bf16.mxu0 0
      %937 = vmatpush1.bf16.msra.mxu0 %v898
      %938 = vmatprep.subr.bf16.mxu0 0
      %939 = vmatpush1.bf16.msra.mxu0 %v899
      %940 = vmatprep.subr.bf16.mxu0 0
      %941 = vmatpush1.bf16.msra.mxu0 %v900
      %942 = vmatprep.subr.bf16.mxu0 0
      %943 = vmatpush1.bf16.msra.mxu0 %v901
      %944 = vmatprep.subr.bf16.mxu0 0
      %945 = vmatpush1.bf16.msra.mxu0 %v902
      %946 = vmatprep.subr.bf16.mxu0 0
      %947 = vmatpush1.bf16.msra.mxu0 %v903
      %948 = vmatprep.subr.bf16.mxu0 0
      %949 = vmatpush1.bf16.msra.mxu0 %v904
      %950 = vmatprep.subr.bf16.mxu0 0
      %951 = vmatpush1.bf16.msra.mxu0 %v905
      %952 = vmatprep.subr.bf16.mxu0 0
      %953 = vmatpush1.bf16.msra.mxu0 %v906
      %954 = vmatprep.subr.bf16.mxu0 0
      %955 = vmatpush1.bf16.msra.mxu0 %v907
      %956 = vmatprep.mubr.bf16.mxu0 %v788
      %957 = vmatmul.mubr.bf16.gmra.mrb[0].mxu0 %v764
      %v958 = vpop.f32.mrb[0].mxu0
      %v959 = vadd.f32 0.0, %v958
      %v960 = vpop.f32.mrb[0].mxu0
      %v961 = vpop.f32.mrb[0].mxu0
      %v962 = vadd.f32 0.0, %v961
      %v963 = vpop.f32.mrb[0].mxu0
      %964 = vmatprep.mubr.bf16.mxu0 %v789
      %965 = vmatmul.mubr.bf16.gmra.mrb[0].mxu0 %v765
      %v966 = vpop.f32.mrb[0].mxu0
      %v967 = vadd.f32 0.0, %v966
      %v968 = vpop.f32.mrb[0].mxu0
      %v969 = vpop.f32.mrb[0].mxu0
      %v970 = vadd.f32 0.0, %v969
      %v971 = vpop.f32.mrb[0].mxu0
      %972 = vmatprep.mubr.bf16.mxu0 %v790
      %973 = vmatmul.mubr.bf16.gmra.mrb[0].mxu0 %v766
      %v974 = vpop.f32.mrb[0].mxu0
      %v975 = vadd.f32 0.0, %v974
      %v976 = vpop.f32.mrb[0].mxu0
      %v977 = vpop.f32.mrb[0].mxu0
      %v978 = vadd.f32 0.0, %v977
      %v979 = vpop.f32.mrb[0].mxu0
      %980 = vmatprep.mubr.bf16.mxu0 %v791
      %981 = vmatmul.mubr.bf16.gmra.mrb[0].mxu0 %v767
      %v982 = vpop.f32.mrb[0].mxu0
      %v983 = vadd.f32 0.0, %v982
      %v984 = vpop.f32.mrb[0].mxu0
      %v985 = vpop.f32.mrb[0].mxu0
      %v986 = vadd.f32 0.0, %v985
      %v987 = vpop.f32.mrb[0].mxu0
      %988 = vdwg.mxu0
      %v1021 = vunpack.c.l.b16 %v633
      %v1022 = vunpack.c.l.b16 %v634
      %v1023 = vunpack.c.l.b16 %v635
      %v1024 = vunpack.c.l.b16 %v636
      %v1025 = vunpack.c.l.b16 %v637
      %v1026 = vunpack.c.l.b16 %v638
      %v1027 = vunpack.c.l.b16 %v639
      %v1028 = vunpack.c.l.b16 %v640
      %v1029 = vunpack.c.l.b16 %v641
      %v1030 = vunpack.c.l.b16 %v642
      %v1031 = vunpack.c.l.b16 %v643
      %v1032 = vunpack.c.l.b16 %v644
      %v1033 = vunpack.c.l.b16 %v645
      %v1034 = vunpack.c.l.b16 %v646
      %v1035 = vunpack.c.l.b16 %v647
      %v1036 = vunpack.c.l.b16 %v648
      %v1037 = vunpack.c.l.b16 %v649
      %v1038 = vunpack.c.l.b16 %v650
      %v1039 = vunpack.c.l.b16 %v651
      %v1040 = vunpack.c.l.b16 %v652
      %v1041 = vunpack.c.l.b16 %v653
      %v1042 = vunpack.c.l.b16 %v654
      %v1043 = vunpack.c.l.b16 %v655
      %v1044 = vunpack.c.l.b16 %v656
      %v1045 = vunpack.c.l.b16 %v657
      %v1046 = vunpack.c.l.b16 %v658
      %v1047 = vunpack.c.l.b16 %v659
      %v1048 = vunpack.c.l.b16 %v660
      %v1049 = vunpack.c.l.b16 %v661
      %v1050 = vunpack.c.l.b16 %v662
      %v1051 = vunpack.c.l.b16 %v663
      %v1052 = vunpack.c.l.b16 %v664
      %v1053 = vpack.c.b16 %v1022, %v1021
      %v1054 = vpack.c.b16 %v1024, %v1023
      %v1055 = vpack.c.b16 %v1026, %v1025
      %v1056 = vpack.c.b16 %v1028, %v1027
      %v1057 = vpack.c.b16 %v1030, %v1029
      %v1058 = vpack.c.b16 %v1032, %v1031
      %v1059 = vpack.c.b16 %v1034, %v1033
      %v1060 = vpack.c.b16 %v1036, %v1035
      %v1061 = vpack.c.b16 %v1038, %v1037
      %v1062 = vpack.c.b16 %v1040, %v1039
      %v1063 = vpack.c.b16 %v1042, %v1041
      %v1064 = vpack.c.b16 %v1044, %v1043
      %v1065 = vpack.c.b16 %v1046, %v1045
      %v1066 = vpack.c.b16 %v1048, %v1047
      %v1067 = vpack.c.b16 %v1050, %v1049
      %v1068 = vpack.c.b16 %v1052, %v1051
      %1085 = vmatprep.subr.bf16.mxu0 0
      %1086 = vmatpush1.bf16.msra.mxu0 %v1053
      %1087 = vmatprep.subr.bf16.mxu0 0
      %1088 = vmatpush1.bf16.msra.mxu0 %v1054
      %1089 = vmatprep.subr.bf16.mxu0 0
      %1090 = vmatpush1.bf16.msra.mxu0 %v1055
      %1091 = vmatprep.subr.bf16.mxu0 0
      %1092 = vmatpush1.bf16.msra.mxu0 %v1056
      %1093 = vmatprep.subr.bf16.mxu0 0
      %1094 = vmatpush1.bf16.msra.mxu0 %v1057
      %1095 = vmatprep.subr.bf16.mxu0 0
      %1096 = vmatpush1.bf16.msra.mxu0 %v1058
      %1097 = vmatprep.subr.bf16.mxu0 0
      %1098 = vmatpush1.bf16.msra.mxu0 %v1059
      %1099 = vmatprep.subr.bf16.mxu0 0
      %1100 = vmatpush1.bf16.msra.mxu0 %v1060
      %1101 = vmatprep.subr.bf16.mxu0 0
      %1102 = vmatpush1.bf16.msra.mxu0 %v1061
      %1103 = vmatprep.subr.bf16.mxu0 0
      %1104 = vmatpush1.bf16.msra.mxu0 %v1062
      %1105 = vmatprep.subr.bf16.mxu0 0
      %1106 = vmatpush1.bf16.msra.mxu0 %v1063
      %1107 = vmatprep.subr.bf16.mxu0 0
      %1108 = vmatpush1.bf16.msra.mxu0 %v1064
      %1109 = vmatprep.subr.bf16.mxu0 0
      %1110 = vmatpush1.bf16.msra.mxu0 %v1065
      %1111 = vmatprep.subr.bf16.mxu0 0
      %1112 = vmatpush1.bf16.msra.mxu0 %v1066
      %1113 = vmatprep.subr.bf16.mxu0 0
      %1114 = vmatpush1.bf16.msra.mxu0 %v1067
      %1115 = vmatprep.subr.bf16.mxu0 0
      %1116 = vmatpush1.bf16.msra.mxu0 %v1068
      %1117 = vmatprep.mubr.bf16.mxu0 %v625
      %1118 = vmatmul.mubr.bf16.gmra.mrb[0].mxu0 %v609
      %v1119 = vpop.f32.mrb[0].mxu0
      %v1120 = vadd.f32 %v959, %v1119
      %v1121 = vpop.f32.mrb[0].mxu0
      %v1122 = vpop.f32.mrb[0].mxu0
      %v1123 = vadd.f32 %v962, %v1122
      %v1124 = vpop.f32.mrb[0].mxu0
      %1125 = vmatprep.mubr.bf16.mxu0 %v626
      %1126 = vmatmul.mubr.bf16.gmra.mrb[0].mxu0 %v610
      %v1127 = vpop.f32.mrb[0].mxu0
      %v1128 = vadd.f32 %v967, %v1127
      %v1129 = vpop.f32.mrb[0].mxu0
      %v1130 = vpop.f32.mrb[0].mxu0
      %v1131 = vadd.f32 %v970, %v1130
      %v1132 = vpop.f32.mrb[0].mxu0
      %1133 = vmatprep.mubr.bf16.mxu0 %v627
      %1134 = vmatmul.mubr.bf16.gmra.mrb[0].mxu0 %v611
      %v1135 = vpop.f32.mrb[0].mxu0
      %v1136 = vadd.f32 %v975, %v1135
      %v1137 = vpop.f32.mrb[0].mxu0
      %v1138 = vpop.f32.mrb[0].mxu0
      %v1139 = vadd.f32 %v978, %v1138
      %v1140 = vpop.f32.mrb[0].mxu0
      %1141 = vmatprep.mubr.bf16.mxu0 %v628
      %1142 = vmatmul.mubr.bf16.gmra.mrb[0].mxu0 %v612
      %v1143 = vpop.f32.mrb[0].mxu0
      %v1144 = vadd.f32 %v983, %v1143
      %v1145 = vpop.f32.mrb[0].mxu0
      %v1146 = vpop.f32.mrb[0].mxu0
      %v1147 = vadd.f32 %v986, %v1146
      %v1148 = vpop.f32.mrb[0].mxu0
      %1149 = vdwg.mxu0
      %v1150 = vld [vmem:[%s493] sm:$0x1e]
      %v1151 = vld [vmem:[%s493 + $0x8] sm:$0x1e]
      %v1152 = vld [vmem:[%s493 + $0x10] sm:$0x1e]
      %v1153 = vld [vmem:[%s493 + $0x18] sm:$0x1e]
      %v1154 = vld [vmem:[%s493 + $0x20] sm:$0x1e]
      %v1155 = vld [vmem:[%s493 + $0x28] sm:$0x1e]
      %v1156 = vld [vmem:[%s493 + $0x30] sm:$0x1e]
      %v1157 = vld [vmem:[%s493 + $0x38] sm:$0x1e]
      %v1166 = vunpack.c.l.b16 %v1150
      %v1167 = vunpack.c.h.b16 %v1150
      %v1168 = vunpack.c.l.b16 %v1151
      %v1169 = vunpack.c.h.b16 %v1151
      %v1170 = vunpack.c.l.b16 %v1152
      %v1171 = vunpack.c.h.b16 %v1152
      %v1172 = vunpack.c.l.b16 %v1153
      %v1173 = vunpack.c.h.b16 %v1153
      %v1174 = vunpack.c.l.b16 %v1154
      %v1175 = vunpack.c.h.b16 %v1154
      %v1176 = vunpack.c.l.b16 %v1155
      %v1177 = vunpack.c.h.b16 %v1155
      %v1178 = vunpack.c.l.b16 %v1156
      %v1179 = vunpack.c.h.b16 %v1156
      %v1180 = vunpack.c.l.b16 %v1157
      %v1181 = vunpack.c.h.b16 %v1157
      %v1182 = vpack.c.b16 %v1166, %v1166
      %v1183 = vpack.c.b16 %v1167, %v1167
      %v1184 = vpack.c.b16 %v1168, %v1168
      %v1185 = vpack.c.b16 %v1169, %v1169
      %v1186 = vpack.c.b16 %v1170, %v1170
      %v1187 = vpack.c.b16 %v1171, %v1171
      %v1188 = vpack.c.b16 %v1172, %v1172
      %v1189 = vpack.c.b16 %v1173, %v1173
      %v1190 = vpack.c.b16 %v1174, %v1174
      %v1191 = vpack.c.b16 %v1175, %v1175
      %v1192 = vpack.c.b16 %v1176, %v1176
      %v1193 = vpack.c.b16 %v1177, %v1177
      %v1194 = vpack.c.b16 %v1178, %v1178
      %v1195 = vpack.c.b16 %v1179, %v1179
      %v1196 = vpack.c.b16 %v1180, %v1180
      %v1197 = vpack.c.b16 %v1181, %v1181
      %v1198 = vrot.slane %v1182, 5
      %v1199 = vrot.slane %v1198, 4
      %v1200 = vrot.slane %v1183, 5
      %v1201 = vsel %vm560, %v1199, %v1200
      %v1202 = vrot.slane %v1184, 5
      %v1203 = vrot.slane %v1202, 4
      %v1204 = vrot.slane %v1185, 5
      %v1205 = vsel %vm560, %v1203, %v1204
      %v1206 = vrot.slane %v1186, 5
      %v1207 = vrot.slane %v1206, 4
      %v1208 = vrot.slane %v1187, 5
      %v1209 = vsel %vm560, %v1207, %v1208
      %v1210 = vrot.slane %v1188, 5
      %v1211 = vrot.slane %v1210, 4
      %v1212 = vrot.slane %v1189, 5
      %v1213 = vsel %vm560, %v1211, %v1212
      %v1214 = vrot.slane %v1190, 5
      %v1215 = vrot.slane %v1214, 4
      %v1216 = vrot.slane %v1191, 5
      %v1217 = vsel %vm560, %v1215, %v1216
      %v1218 = vrot.slane %v1192, 5
      %v1219 = vrot.slane %v1218, 4
      %v1220 = vrot.slane %v1193, 5
      %v1221 = vsel %vm560, %v1219, %v1220
      %v1222 = vrot.slane %v1194, 5
      %v1223 = vrot.slane %v1222, 4
      %v1224 = vrot.slane %v1195, 5
      %v1225 = vsel %vm560, %v1223, %v1224
      %v1226 = vrot.slane %v1196, 5
      %v1227 = vrot.slane %v1226, 4
      %v1228 = vrot.slane %v1197, 5
      %v1229 = vsel %vm560, %v1227, %v1228
      %v1230 = vld [vmem:[%s493] sm:$0x3c]
      %v1231 = vld [vmem:[%s493 + $0x8] sm:$0x3c]
      %v1232 = vld [vmem:[%s493 + $0x10] sm:$0x3c]
      %v1233 = vld [vmem:[%s493 + $0x18] sm:$0x3c]
      %v1234 = vld [vmem:[%s493 + $0x20] sm:$0x3c]
      %v1235 = vld [vmem:[%s493 + $0x28] sm:$0x3c]
      %v1236 = vld [vmem:[%s493 + $0x30] sm:$0x3c]
      %v1237 = vld [vmem:[%s493 + $0x38] sm:$0x3c]
      %v1246 = vunpack.c.l.b16 %v1230
      %v1247 = vunpack.c.h.b16 %v1230
      %v1248 = vunpack.c.l.b16 %v1231
      %v1249 = vunpack.c.h.b16 %v1231
      %v1250 = vunpack.c.l.b16 %v1232
      %v1251 = vunpack.c.h.b16 %v1232
      %v1252 = vunpack.c.l.b16 %v1233
      %v1253 = vunpack.c.h.b16 %v1233
      %v1254 = vunpack.c.l.b16 %v1234
      %v1255 = vunpack.c.h.b16 %v1234
      %v1256 = vunpack.c.l.b16 %v1235
      %v1257 = vunpack.c.h.b16 %v1235
      %v1258 = vunpack.c.l.b16 %v1236
      %v1259 = vunpack.c.h.b16 %v1236
      %v1260 = vunpack.c.l.b16 %v1237
      %v1261 = vunpack.c.h.b16 %v1237
      %v1262 = vpack.c.b16 %v1246, %v1246
      %v1263 = vpack.c.b16 %v1247, %v1247
      %v1264 = vpack.c.b16 %v1248, %v1248
      %v1265 = vpack.c.b16 %v1249, %v1249
      %v1266 = vpack.c.b16 %v1250, %v1250
      %v1267 = vpack.c.b16 %v1251, %v1251
      %v1268 = vpack.c.b16 %v1252, %v1252
      %v1269 = vpack.c.b16 %v1253, %v1253
      %v1270 = vpack.c.b16 %v1254, %v1254
      %v1271 = vpack.c.b16 %v1255, %v1255
      %v1272 = vpack.c.b16 %v1256, %v1256
      %v1273 = vpack.c.b16 %v1257, %v1257
      %v1274 = vpack.c.b16 %v1258, %v1258
      %v1275 = vpack.c.b16 %v1259, %v1259
      %v1276 = vpack.c.b16 %v1260, %v1260
      %v1277 = vpack.c.b16 %v1261, %v1261
      %v1278 = vrot.slane %v1262, 6
      %v1279 = vrot.slane %v1278, 4
      %v1280 = vrot.slane %v1263, 6
      %v1281 = vsel %vm715, %v1279, %v1280
      %v1282 = vrot.slane %v1264, 6
      %v1283 = vrot.slane %v1282, 4
      %v1284 = vrot.slane %v1265, 6
      %v1285 = vsel %vm715, %v1283, %v1284
      %v1286 = vrot.slane %v1266, 6
      %v1287 = vrot.slane %v1286, 4
      %v1288 = vrot.slane %v1267, 6
      %v1289 = vsel %vm715, %v1287, %v1288
      %v1290 = vrot.slane %v1268, 6
      %v1291 = vrot.slane %v1290, 4
      %v1292 = vrot.slane %v1269, 6
      %v1293 = vsel %vm715, %v1291, %v1292
      %v1294 = vrot.slane %v1270, 6
      %v1295 = vrot.slane %v1294, 4
      %v1296 = vrot.slane %v1271, 6
      %v1297 = vsel %vm715, %v1295, %v1296
      %v1298 = vrot.slane %v1272, 6
      %v1299 = vrot.slane %v1298, 4
      %v1300 = vrot.slane %v1273, 6
      %v1301 = vsel %vm715, %v1299, %v1300
      %v1302 = vrot.slane %v1274, 6
      %v1303 = vrot.slane %v1302, 4
      %v1304 = vrot.slane %v1275, 6
      %v1305 = vsel %vm715, %v1303, %v1304
      %v1306 = vrot.slane %v1276, 6
      %v1307 = vrot.slane %v1306, 4
      %v1308 = vrot.slane %v1277, 6
      %v1309 = vsel %vm715, %v1307, %v1308
      %v1310 = vunpack.c.l.b16 %v1201
      %v1311 = vunpack.c.l.b16 %v1205
      %v1312 = vunpack.c.l.b16 %v1209
      %v1313 = vunpack.c.l.b16 %v1213
      %v1314 = vunpack.c.l.b16 %v1217
      %v1315 = vunpack.c.l.b16 %v1221
      %v1316 = vunpack.c.l.b16 %v1225
      %v1317 = vunpack.c.l.b16 %v1229
      %v1318 = vpack.c.b16 %v1311, %v1310
      %v1319 = vpack.c.b16 %v1313, %v1312
      %v1320 = vpack.c.b16 %v1315, %v1314
      %v1321 = vpack.c.b16 %v1317, %v1316
      %v1326 = vunpack.c.l.b16 %v1281
      %v1327 = vunpack.c.l.b16 %v1285
      %v1328 = vunpack.c.l.b16 %v1289
      %v1329 = vunpack.c.l.b16 %v1293
      %v1330 = vunpack.c.l.b16 %v1297
      %v1331 = vunpack.c.l.b16 %v1301
      %v1332 = vunpack.c.l.b16 %v1305
      %v1333 = vunpack.c.l.b16 %v1309
      %v1334 = vpack.c.b16 %v1327, %v1326
      %v1335 = vpack.c.b16 %v1329, %v1328
      %v1336 = vpack.c.b16 %v1331, %v1330
      %v1337 = vpack.c.b16 %v1333, %v1332
      %v1342 = vld [vmem:[%s3 + $0x100] sm:$0xf]
      %v1343 = vld [vmem:[%s3 + $0x104] sm:$0xf]
      %v1344 = vld [vmem:[%s3 + $0x108] sm:$0xf]
      %v1345 = vld [vmem:[%s3 + $0x10c] sm:$0xf]
      %v1346 = vld [vmem:[%s3 + $0x110] sm:$0xf]
      %v1347 = vld [vmem:[%s3 + $0x114] sm:$0xf]
      %v1348 = vld [vmem:[%s3 + $0x118] sm:$0xf]
      %v1349 = vld [vmem:[%s3 + $0x11c] sm:$0xf]
      %v1350 = vld [vmem:[%s3 + $0x120] sm:$0xf]
      %v1351 = vld [vmem:[%s3 + $0x124] sm:$0xf]
      %v1352 = vld [vmem:[%s3 + $0x128] sm:$0xf]
      %v1353 = vld [vmem:[%s3 + $0x12c] sm:$0xf]
      %v1354 = vld [vmem:[%s3 + $0x130] sm:$0xf]
      %v1355 = vld [vmem:[%s3 + $0x134] sm:$0xf]
      %v1356 = vld [vmem:[%s3 + $0x138] sm:$0xf]
      %v1357 = vld [vmem:[%s3 + $0x13c] sm:$0xf]
      %v1358 = vld [vmem:[%s3 + $0x140] sm:$0xf]
      %v1359 = vld [vmem:[%s3 + $0x144] sm:$0xf]
      %v1360 = vld [vmem:[%s3 + $0x148] sm:$0xf]
      %v1361 = vld [vmem:[%s3 + $0x14c] sm:$0xf]
      %v1362 = vld [vmem:[%s3 + $0x150] sm:$0xf]
      %v1363 = vld [vmem:[%s3 + $0x154] sm:$0xf]
      %v1364 = vld [vmem:[%s3 + $0x158] sm:$0xf]
      %v1365 = vld [vmem:[%s3 + $0x15c] sm:$0xf]
      %v1366 = vld [vmem:[%s3 + $0x160] sm:$0xf]
      %v1367 = vld [vmem:[%s3 + $0x164] sm:$0xf]
      %v1368 = vld [vmem:[%s3 + $0x168] sm:$0xf]
      %v1369 = vld [vmem:[%s3 + $0x16c] sm:$0xf]
      %v1370 = vld [vmem:[%s3 + $0x170] sm:$0xf]
      %v1371 = vld [vmem:[%s3 + $0x174] sm:$0xf]
      %v1372 = vld [vmem:[%s3 + $0x178] sm:$0xf]
      %v1373 = vld [vmem:[%s3 + $0x17c] sm:$0xf]
      %v1406 = vunpack.c.l.b16 %v1342
      %v1407 = vunpack.c.l.b16 %v1343
      %v1408 = vunpack.c.l.b16 %v1344
      %v1409 = vunpack.c.l.b16 %v1345
      %v1410 = vunpack.c.l.b16 %v1346
      %v1411 = vunpack.c.l.b16 %v1347
      %v1412 = vunpack.c.l.b16 %v1348
      %v1413 = vunpack.c.l.b16 %v1349
      %v1414 = vunpack.c.l.b16 %v1350
      %v1415 = vunpack.c.l.b16 %v1351
      %v1416 = vunpack.c.l.b16 %v1352
      %v1417 = vunpack.c.l.b16 %v1353
      %v1418 = vunpack.c.l.b16 %v1354
      %v1419 = vunpack.c.l.b16 %v1355
      %v1420 = vunpack.c.l.b16 %v1356
      %v1421 = vunpack.c.l.b16 %v1357
      %v1422 = vunpack.c.l.b16 %v1358
      %v1423 = vunpack.c.l.b16 %v1359
      %v1424 = vunpack.c.l.b16 %v1360
      %v1425 = vunpack.c.l.b16 %v1361
      %v1426 = vunpack.c.l.b16 %v1362
      %v1427 = vunpack.c.l.b16 %v1363
      %v1428 = vunpack.c.l.b16 %v1364
      %v1429 = vunpack.c.l.b16 %v1365
      %v1430 = vunpack.c.l.b16 %v1366
      %v1431 = vunpack.c.l.b16 %v1367
      %v1432 = vunpack.c.l.b16 %v1368
      %v1433 = vunpack.c.l.b16 %v1369
      %v1434 = vunpack.c.l.b16 %v1370
      %v1435 = vunpack.c.l.b16 %v1371
      %v1436 = vunpack.c.l.b16 %v1372
      %v1437 = vunpack.c.l.b16 %v1373
      %v1438 = vpack.c.b16 %v1407, %v1406
      %v1439 = vpack.c.b16 %v1409, %v1408
      %v1440 = vpack.c.b16 %v1411, %v1410
      %v1441 = vpack.c.b16 %v1413, %v1412
      %v1442 = vpack.c.b16 %v1415, %v1414
      %v1443 = vpack.c.b16 %v1417, %v1416
      %v1444 = vpack.c.b16 %v1419, %v1418
      %v1445 = vpack.c.b16 %v1421, %v1420
      %v1446 = vpack.c.b16 %v1423, %v1422
      %v1447 = vpack.c.b16 %v1425, %v1424
      %v1448 = vpack.c.b16 %v1427, %v1426
      %v1449 = vpack.c.b16 %v1429, %v1428
      %v1450 = vpack.c.b16 %v1431, %v1430
      %v1451 = vpack.c.b16 %v1433, %v1432
      %v1452 = vpack.c.b16 %v1435, %v1434
      %v1453 = vpack.c.b16 %v1437, %v1436
      %1470 = vmatprep.subr.bf16.mxu0 0
      %1471 = vmatpush1.bf16.msra.mxu0 %v1438
      %1472 = vmatprep.subr.bf16.mxu0 0
      %1473 = vmatpush1.bf16.msra.mxu0 %v1439
      %1474 = vmatprep.subr.bf16.mxu0 0
      %1475 = vmatpush1.bf16.msra.mxu0 %v1440
      %1476 = vmatprep.subr.bf16.mxu0 0
      %1477 = vmatpush1.bf16.msra.mxu0 %v1441
      %1478 = vmatprep.subr.bf16.mxu0 0
      %1479 = vmatpush1.bf16.msra.mxu0 %v1442
      %1480 = vmatprep.subr.bf16.mxu0 0
      %1481 = vmatpush1.bf16.msra.mxu0 %v1443
      %1482 = vmatprep.subr.bf16.mxu0 0
      %1483 = vmatpush1.bf16.msra.mxu0 %v1444
      %1484 = vmatprep.subr.bf16.mxu0 0
      %1485 = vmatpush1.bf16.msra.mxu0 %v1445
      %1486 = vmatprep.subr.bf16.mxu0 0
      %1487 = vmatpush1.bf16.msra.mxu0 %v1446
      %1488 = vmatprep.subr.bf16.mxu0 0
      %1489 = vmatpush1.bf16.msra.mxu0 %v1447
      %1490 = vmatprep.subr.bf16.mxu0 0
      %1491 = vmatpush1.bf16.msra.mxu0 %v1448
      %1492 = vmatprep.subr.bf16.mxu0 0
      %1493 = vmatpush1.bf16.msra.mxu0 %v1449
      %1494 = vmatprep.subr.bf16.mxu0 0
      %1495 = vmatpush1.bf16.msra.mxu0 %v1450
      %1496 = vmatprep.subr.bf16.mxu0 0
      %1497 = vmatpush1.bf16.msra.mxu0 %v1451
      %1498 = vmatprep.subr.bf16.mxu0 0
      %1499 = vmatpush1.bf16.msra.mxu0 %v1452
      %1500 = vmatprep.subr.bf16.mxu0 0
      %1501 = vmatpush1.bf16.msra.mxu0 %v1453
      %1502 = vmatprep.mubr.bf16.mxu0 %v1334
      %1503 = vmatmul.mubr.bf16.gmra.mrb[0].mxu0 %v1318
      %v1504 = vpop.f32.mrb[0].mxu0
      %v1505 = vadd.f32 0.0, %v1504
      %v1506 = vpop.f32.mrb[0].mxu0
      %v1507 = vpop.f32.mrb[0].mxu0
      %v1508 = vadd.f32 0.0, %v1507
      %v1509 = vpop.f32.mrb[0].mxu0
      %1510 = vmatprep.mubr.bf16.mxu0 %v1335
      %1511 = vmatmul.mubr.bf16.gmra.mrb[0].mxu0 %v1319
      %v1512 = vpop.f32.mrb[0].mxu0
      %v1513 = vadd.f32 0.0, %v1512
      %v1514 = vpop.f32.mrb[0].mxu0
      %v1515 = vpop.f32.mrb[0].mxu0
      %v1516 = vadd.f32 0.0, %v1515
      %v1517 = vpop.f32.mrb[0].mxu0
      %1518 = vmatprep.mubr.bf16.mxu0 %v1336
      %1519 = vmatmul.mubr.bf16.gmra.mrb[0].mxu0 %v1320
      %v1520 = vpop.f32.mrb[0].mxu0
      %v1521 = vadd.f32 0.0, %v1520
      %v1522 = vpop.f32.mrb[0].mxu0
      %v1523 = vpop.f32.mrb[0].mxu0
      %v1524 = vadd.f32 0.0, %v1523
      %v1525 = vpop.f32.mrb[0].mxu0
      %1526 = vmatprep.mubr.bf16.mxu0 %v1337
      %1527 = vmatmul.mubr.bf16.gmra.mrb[0].mxu0 %v1321
      %v1528 = vpop.f32.mrb[0].mxu0
      %v1529 = vadd.f32 0.0, %v1528
      %v1530 = vpop.f32.mrb[0].mxu0
      %v1531 = vpop.f32.mrb[0].mxu0
      %v1532 = vadd.f32 0.0, %v1531
      %v1533 = vpop.f32.mrb[0].mxu0
      %1534 = vdwg.mxu0
      %v1535 = vadd.f32 %v1120, %v1505
      %v1536 = vadd.f32 %v1123, %v1508
      %v1537 = vadd.f32 %v1128, %v1513
      %v1538 = vadd.f32 %v1131, %v1516
      %v1539 = vadd.f32 %v1136, %v1521
      %v1540 = vadd.f32 %v1139, %v1524
      %v1541 = vadd.f32 %v1144, %v1529
      %v1542 = vadd.f32 %v1147, %v1532
      %s1543 = scalar_lea.vmem [#allocation2], 32
      %v1544 = vld [vmem:[%s1543] sm:$0xf]
      %v1545 = vld [vmem:[%s1543 + $0x8] sm:$0xf]
      %v1546 = vld [vmem:[%s1543 + $0x10] sm:$0xf]
      %v1547 = vld [vmem:[%s1543 + $0x18] sm:$0xf]
      %v1548 = vld [vmem:[%s1543 + $0x20] sm:$0xf]
      %v1549 = vld [vmem:[%s1543 + $0x28] sm:$0xf]
      %v1550 = vld [vmem:[%s1543 + $0x30] sm:$0xf]
      %v1551 = vld [vmem:[%s1543 + $0x38] sm:$0xf]
      %v1552 = vld [vmem:[%s1543] sm:$0x1e]
      %v1553 = vld [vmem:[%s1543 + $0x8] sm:$0x1e]
      %v1554 = vld [vmem:[%s1543 + $0x10] sm:$0x1e]
      %v1555 = vld [vmem:[%s1543 + $0x18] sm:$0x1e]
      %v1556 = vld [vmem:[%s1543 + $0x20] sm:$0x1e]
      %v1557 = vld [vmem:[%s1543 + $0x28] sm:$0x1e]
      %v1558 = vld [vmem:[%s1543 + $0x30] sm:$0x1e]
      %v1559 = vld [vmem:[%s1543 + $0x38] sm:$0x1e]
      %v1568 = vunpack.c.l.b16 %v1552
      %v1569 = vunpack.c.h.b16 %v1552
      %v1570 = vunpack.c.l.b16 %v1553
      %v1571 = vunpack.c.h.b16 %v1553
      %v1572 = vunpack.c.l.b16 %v1554
      %v1573 = vunpack.c.h.b16 %v1554
      %v1574 = vunpack.c.l.b16 %v1555
      %v1575 = vunpack.c.h.b16 %v1555
      %v1576 = vunpack.c.l.b16 %v1556
      %v1577 = vunpack.c.h.b16 %v1556
      %v1578 = vunpack.c.l.b16 %v1557
      %v1579 = vunpack.c.h.b16 %v1557
      %v1580 = vunpack.c.l.b16 %v1558
      %v1581 = vunpack.c.h.b16 %v1558
      %v1582 = vunpack.c.l.b16 %v1559
      %v1583 = vunpack.c.h.b16 %v1559
      %v1584 = vpack.c.b16 %v1568, %v1568
      %v1585 = vpack.c.b16 %v1569, %v1569
      %v1586 = vpack.c.b16 %v1570, %v1570
      %v1587 = vpack.c.b16 %v1571, %v1571
      %v1588 = vpack.c.b16 %v1572, %v1572
      %v1589 = vpack.c.b16 %v1573, %v1573
      %v1590 = vpack.c.b16 %v1574, %v1574
      %v1591 = vpack.c.b16 %v1575, %v1575
      %v1592 = vpack.c.b16 %v1576, %v1576
      %v1593 = vpack.c.b16 %v1577, %v1577
      %v1594 = vpack.c.b16 %v1578, %v1578
      %v1595 = vpack.c.b16 %v1579, %v1579
      %v1596 = vpack.c.b16 %v1580, %v1580
      %v1597 = vpack.c.b16 %v1581, %v1581
      %v1598 = vpack.c.b16 %v1582, %v1582
      %v1599 = vpack.c.b16 %v1583, %v1583
      %v1600 = vrot.slane %v1584, 5
      %v1601 = vrot.slane %v1600, 4
      %v1602 = vrot.slane %v1585, 5
      %v1603 = vsel %vm560, %v1601, %v1602
      %v1604 = vrot.slane %v1586, 5
      %v1605 = vrot.slane %v1604, 4
      %v1606 = vrot.slane %v1587, 5
      %v1607 = vsel %vm560, %v1605, %v1606
      %v1608 = vrot.slane %v1588, 5
      %v1609 = vrot.slane %v1608, 4
      %v1610 = vrot.slane %v1589, 5
      %v1611 = vsel %vm560, %v1609, %v1610
      %v1612 = vrot.slane %v1590, 5
      %v1613 = vrot.slane %v1612, 4
      %v1614 = vrot.slane %v1591, 5
      %v1615 = vsel %vm560, %v1613, %v1614
      %v1616 = vrot.slane %v1592, 5
      %v1617 = vrot.slane %v1616, 4
      %v1618 = vrot.slane %v1593, 5
      %v1619 = vsel %vm560, %v1617, %v1618
      %v1620 = vrot.slane %v1594, 5
      %v1621 = vrot.slane %v1620, 4
      %v1622 = vrot.slane %v1595, 5
      %v1623 = vsel %vm560, %v1621, %v1622
      %v1624 = vrot.slane %v1596, 5
      %v1625 = vrot.slane %v1624, 4
      %v1626 = vrot.slane %v1597, 5
      %v1627 = vsel %vm560, %v1625, %v1626
      %v1628 = vrot.slane %v1598, 5
      %v1629 = vrot.slane %v1628, 4
      %v1630 = vrot.slane %v1599, 5
      %v1631 = vsel %vm560, %v1629, %v1630
      %v1640 = vunpack.c.l.b16 %v1544
      %v1641 = vunpack.c.l.b16 %v1545
      %v1642 = vunpack.c.l.b16 %v1546
      %v1643 = vunpack.c.l.b16 %v1547
      %v1644 = vunpack.c.l.b16 %v1548
      %v1645 = vunpack.c.l.b16 %v1549
      %v1646 = vunpack.c.l.b16 %v1550
      %v1647 = vunpack.c.l.b16 %v1551
      %v1648 = vpack.c.b16 %v1641, %v1640
      %v1649 = vpack.c.b16 %v1643, %v1642
      %v1650 = vpack.c.b16 %v1645, %v1644
      %v1651 = vpack.c.b16 %v1647, %v1646
      %v1656 = vunpack.c.l.b16 %v1603
      %v1657 = vunpack.c.l.b16 %v1607
      %v1658 = vunpack.c.l.b16 %v1611
      %v1659 = vunpack.c.l.b16 %v1615
      %v1660 = vunpack.c.l.b16 %v1619
      %v1661 = vunpack.c.l.b16 %v1623
      %v1662 = vunpack.c.l.b16 %v1627
      %v1663 = vunpack.c.l.b16 %v1631
      %v1664 = vpack.c.b16 %v1657, %v1656
      %v1665 = vpack.c.b16 %v1659, %v1658
      %v1666 = vpack.c.b16 %v1661, %v1660
      %v1667 = vpack.c.b16 %v1663, %v1662
      %v1672 = vld [vmem:[%s3 + $0x180] sm:$0xf]
      %v1673 = vld [vmem:[%s3 + $0x184] sm:$0xf]
      %v1674 = vld [vmem:[%s3 + $0x188] sm:$0xf]
      %v1675 = vld [vmem:[%s3 + $0x18c] sm:$0xf]
      %v1676 = vld [vmem:[%s3 + $0x190] sm:$0xf]
      %v1677 = vld [vmem:[%s3 + $0x194] sm:$0xf]
      %v1678 = vld [vmem:[%s3 + $0x198] sm:$0xf]
      %v1679 = vld [vmem:[%s3 + $0x19c] sm:$0xf]
      %v1680 = vld [vmem:[%s3 + $0x1a0] sm:$0xf]
      %v1681 = vld [vmem:[%s3 + $0x1a4] sm:$0xf]
      %v1682 = vld [vmem:[%s3 + $0x1a8] sm:$0xf]
      %v1683 = vld [vmem:[%s3 + $0x1ac] sm:$0xf]
      %v1684 = vld [vmem:[%s3 + $0x1b0] sm:$0xf]
      %v1685 = vld [vmem:[%s3 + $0x1b4] sm:$0xf]
      %v1686 = vld [vmem:[%s3 + $0x1b8] sm:$0xf]
      %v1687 = vld [vmem:[%s3 + $0x1bc] sm:$0xf]
      %v1688 = vld [vmem:[%s3 + $0x1c0] sm:$0xf]
      %v1689 = vld [vmem:[%s3 + $0x1c4] sm:$0xf]
      %v1690 = vld [vmem:[%s3 + $0x1c8] sm:$0xf]
      %v1691 = vld [vmem:[%s3 + $0x1cc] sm:$0xf]
      %v1692 = vld [vmem:[%s3 + $0x1d0] sm:$0xf]
      %v1693 = vld [vmem:[%s3 + $0x1d4] sm:$0xf]
      %v1694 = vld [vmem:[%s3 + $0x1d8] sm:$0xf]
      %v1695 = vld [vmem:[%s3 + $0x1dc] sm:$0xf]
      %v1696 = vld [vmem:[%s3 + $0x1e0] sm:$0xf]
      %v1697 = vld [vmem:[%s3 + $0x1e4] sm:$0xf]
      %v1698 = vld [vmem:[%s3 + $0x1e8] sm:$0xf]
      %v1699 = vld [vmem:[%s3 + $0x1ec] sm:$0xf]
      %v1700 = vld [vmem:[%s3 + $0x1f0] sm:$0xf]
      %v1701 = vld [vmem:[%s3 + $0x1f4] sm:$0xf]
      %v1702 = vld [vmem:[%s3 + $0x1f8] sm:$0xf]
      %v1703 = vld [vmem:[%s3 + $0x1fc] sm:$0xf]
      %v1736 = vunpack.c.l.b16 %v1672
      %v1737 = vunpack.c.l.b16 %v1673
      %v1738 = vunpack.c.l.b16 %v1674
      %v1739 = vunpack.c.l.b16 %v1675
      %v1740 = vunpack.c.l.b16 %v1676
      %v1741 = vunpack.c.l.b16 %v1677
      %v1742 = vunpack.c.l.b16 %v1678
      %v1743 = vunpack.c.l.b16 %v1679
      %v1744 = vunpack.c.l.b16 %v1680
      %v1745 = vunpack.c.l.b16 %v1681
      %v1746 = vunpack.c.l.b16 %v1682
      %v1747 = vunpack.c.l.b16 %v1683
      %v1748 = vunpack.c.l.b16 %v1684
      %v1749 = vunpack.c.l.b16 %v1685
      %v1750 = vunpack.c.l.b16 %v1686
      %v1751 = vunpack.c.l.b16 %v1687
      %v1752 = vunpack.c.l.b16 %v1688
      %v1753 = vunpack.c.l.b16 %v1689
      %v1754 = vunpack.c.l.b16 %v1690
      %v1755 = vunpack.c.l.b16 %v1691
      %v1756 = vunpack.c.l.b16 %v1692
      %v1757 = vunpack.c.l.b16 %v1693
      %v1758 = vunpack.c.l.b16 %v1694
      %v1759 = vunpack.c.l.b16 %v1695
      %v1760 = vunpack.c.l.b16 %v1696
      %v1761 = vunpack.c.l.b16 %v1697
      %v1762 = vunpack.c.l.b16 %v1698
      %v1763 = vunpack.c.l.b16 %v1699
      %v1764 = vunpack.c.l.b16 %v1700
      %v1765 = vunpack.c.l.b16 %v1701
      %v1766 = vunpack.c.l.b16 %v1702
      %v1767 = vunpack.c.l.b16 %v1703
      %v1768 = vpack.c.b16 %v1737, %v1736
      %v1769 = vpack.c.b16 %v1739, %v1738
      %v1770 = vpack.c.b16 %v1741, %v1740
      %v1771 = vpack.c.b16 %v1743, %v1742
      %v1772 = vpack.c.b16 %v1745, %v1744
      %v1773 = vpack.c.b16 %v1747, %v1746
      %v1774 = vpack.c.b16 %v1749, %v1748
      %v1775 = vpack.c.b16 %v1751, %v1750
      %v1776 = vpack.c.b16 %v1753, %v1752
      %v1777 = vpack.c.b16 %v1755, %v1754
      %v1778 = vpack.c.b16 %v1757, %v1756
      %v1779 = vpack.c.b16 %v1759, %v1758
      %v1780 = vpack.c.b16 %v1761, %v1760
      %v1781 = vpack.c.b16 %v1763, %v1762
      %v1782 = vpack.c.b16 %v1765, %v1764
      %v1783 = vpack.c.b16 %v1767, %v1766
      %1800 = vmatprep.subr.bf16.mxu0 0
      %1801 = vmatpush1.bf16.msra.mxu0 %v1768
      %1802 = vmatprep.subr.bf16.mxu0 0
      %1803 = vmatpush1.bf16.msra.mxu0 %v1769
      %1804 = vmatprep.subr.bf16.mxu0 0
      %1805 = vmatpush1.bf16.msra.mxu0 %v1770
      %1806 = vmatprep.subr.bf16.mxu0 0
      %1807 = vmatpush1.bf16.msra.mxu0 %v1771
      %1808 = vmatprep.subr.bf16.mxu0 0
      %1809 = vmatpush1.bf16.msra.mxu0 %v1772
      %1810 = vmatprep.subr.bf16.mxu0 0
      %1811 = vmatpush1.bf16.msra.mxu0 %v1773
      %1812 = vmatprep.subr.bf16.mxu0 0
      %1813 = vmatpush1.bf16.msra.mxu0 %v1774
      %1814 = vmatprep.subr.bf16.mxu0 0
      %1815 = vmatpush1.bf16.msra.mxu0 %v1775
      %1816 = vmatprep.subr.bf16.mxu0 0
      %1817 = vmatpush1.bf16.msra.mxu0 %v1776
      %1818 = vmatprep.subr.bf16.mxu0 0
      %1819 = vmatpush1.bf16.msra.mxu0 %v1777
      %1820 = vmatprep.subr.bf16.mxu0 0
      %1821 = vmatpush1.bf16.msra.mxu0 %v1778
      %1822 = vmatprep.subr.bf16.mxu0 0
      %1823 = vmatpush1.bf16.msra.mxu0 %v1779
      %1824 = vmatprep.subr.bf16.mxu0 0
      %1825 = vmatpush1.bf16.msra.mxu0 %v1780
      %1826 = vmatprep.subr.bf16.mxu0 0
      %1827 = vmatpush1.bf16.msra.mxu0 %v1781
      %1828 = vmatprep.subr.bf16.mxu0 0
      %1829 = vmatpush1.bf16.msra.mxu0 %v1782
      %1830 = vmatprep.subr.bf16.mxu0 0
      %1831 = vmatpush1.bf16.msra.mxu0 %v1783
      %1832 = vmatprep.mubr.bf16.mxu0 %v1664
      %1833 = vmatmul.mubr.bf16.gmra.mrb[0].mxu0 %v1648
      %v1834 = vpop.f32.mrb[0].mxu0
      %v1835 = vadd.f32 0.0, %v1834
      %v1836 = vpop.f32.mrb[0].mxu0
      %v1837 = vpop.f32.mrb[0].mxu0
      %v1838 = vadd.f32 0.0, %v1837
      %v1839 = vpop.f32.mrb[0].mxu0
      %1840 = vmatprep.mubr.bf16.mxu0 %v1665
      %1841 = vmatmul.mubr.bf16.gmra.mrb[0].mxu0 %v1649
      %v1842 = vpop.f32.mrb[0].mxu0
      %v1843 = vadd.f32 0.0, %v1842
      %v1844 = vpop.f32.mrb[0].mxu0
      %v1845 = vpop.f32.mrb[0].mxu0
      %v1846 = vadd.f32 0.0, %v1845
      %v1847 = vpop.f32.mrb[0].mxu0
      %1848 = vmatprep.mubr.bf16.mxu0 %v1666
      %1849 = vmatmul.mubr.bf16.gmra.mrb[0].mxu0 %v1650
      %v1850 = vpop.f32.mrb[0].mxu0
      %v1851 = vadd.f32 0.0, %v1850
      %v1852 = vpop.f32.mrb[0].mxu0
      %v1853 = vpop.f32.mrb[0].mxu0
      %v1854 = vadd.f32 0.0, %v1853
      %v1855 = vpop.f32.mrb[0].mxu0
      %1856 = vmatprep.mubr.bf16.mxu0 %v1667
      %1857 = vmatmul.mubr.bf16.gmra.mrb[0].mxu0 %v1651
      %v1858 = vpop.f32.mrb[0].mxu0
      %v1859 = vadd.f32 0.0, %v1858
      %v1860 = vpop.f32.mrb[0].mxu0
      %v1861 = vpop.f32.mrb[0].mxu0
      %v1862 = vadd.f32 0.0, %v1861
      %v1863 = vpop.f32.mrb[0].mxu0
      %1864 = vdwg.mxu0
      %v1865 = vadd.f32 %v1535, %v1835
      %v1866 = vadd.f32 %v1536, %v1838
      %v1867 = vadd.f32 %v1537, %v1843
      %v1868 = vadd.f32 %v1538, %v1846
      %v1869 = vadd.f32 %v1539, %v1851
      %v1870 = vadd.f32 %v1540, %v1854
      %v1871 = vadd.f32 %v1541, %v1859
      %v1872 = vadd.f32 %v1542, %v1862
      %v1873 = vld [vmem:[%s1543] sm:$0x3c]
      %v1874 = vld [vmem:[%s1543 + $0x8] sm:$0x3c]
      %v1875 = vld [vmem:[%s1543 + $0x10] sm:$0x3c]
      %v1876 = vld [vmem:[%s1543 + $0x18] sm:$0x3c]
      %v1877 = vld [vmem:[%s1543 + $0x20] sm:$0x3c]
      %v1878 = vld [vmem:[%s1543 + $0x28] sm:$0x3c]
      %v1879 = vld [vmem:[%s1543 + $0x30] sm:$0x3c]
      %v1880 = vld [vmem:[%s1543 + $0x38] sm:$0x3c]
      %v1889 = vunpack.c.l.b16 %v1873
      %v1890 = vunpack.c.h.b16 %v1873
      %v1891 = vunpack.c.l.b16 %v1874
      %v1892 = vunpack.c.h.b16 %v1874
      %v1893 = vunpack.c.l.b16 %v1875
      %v1894 = vunpack.c.h.b16 %v1875
      %v1895 = vunpack.c.l.b16 %v1876
      %v1896 = vunpack.c.h.b16 %v1876
      %v1897 = vunpack.c.l.b16 %v1877
      %v1898 = vunpack.c.h.b16 %v1877
      %v1899 = vunpack.c.l.b16 %v1878
      %v1900 = vunpack.c.h.b16 %v1878
      %v1901 = vunpack.c.l.b16 %v1879
      %v1902 = vunpack.c.h.b16 %v1879
      %v1903 = vunpack.c.l.b16 %v1880
      %v1904 = vunpack.c.h.b16 %v1880
      %v1905 = vpack.c.b16 %v1889, %v1889
      %v1906 = vpack.c.b16 %v1890, %v1890
      %v1907 = vpack.c.b16 %v1891, %v1891
      %v1908 = vpack.c.b16 %v1892, %v1892
      %v1909 = vpack.c.b16 %v1893, %v1893
      %v1910 = vpack.c.b16 %v1894, %v1894
      %v1911 = vpack.c.b16 %v1895, %v1895
      %v1912 = vpack.c.b16 %v1896, %v1896
      %v1913 = vpack.c.b16 %v1897, %v1897
      %v1914 = vpack.c.b16 %v1898, %v1898
      %v1915 = vpack.c.b16 %v1899, %v1899
      %v1916 = vpack.c.b16 %v1900, %v1900
      %v1917 = vpack.c.b16 %v1901, %v1901
      %v1918 = vpack.c.b16 %v1902, %v1902
      %v1919 = vpack.c.b16 %v1903, %v1903
      %v1920 = vpack.c.b16 %v1904, %v1904
      %v1921 = vrot.slane %v1905, 6
      %v1922 = vrot.slane %v1921, 4
      %v1923 = vrot.slane %v1906, 6
      %v1924 = vsel %vm715, %v1922, %v1923
      %v1925 = vrot.slane %v1907, 6
      %v1926 = vrot.slane %v1925, 4
      %v1927 = vrot.slane %v1908, 6
      %v1928 = vsel %vm715, %v1926, %v1927
      %v1929 = vrot.slane %v1909, 6
      %v1930 = vrot.slane %v1929, 4
      %v1931 = vrot.slane %v1910, 6
      %v1932 = vsel %vm715, %v1930, %v1931
      %v1933 = vrot.slane %v1911, 6
      %v1934 = vrot.slane %v1933, 4
      %v1935 = vrot.slane %v1912, 6
      %v1936 = vsel %vm715, %v1934, %v1935
      %v1937 = vrot.slane %v1913, 6
      %v1938 = vrot.slane %v1937, 4
      %v1939 = vrot.slane %v1914, 6
      %v1940 = vsel %vm715, %v1938, %v1939
      %v1941 = vrot.slane %v1915, 6
      %v1942 = vrot.slane %v1941, 4
      %v1943 = vrot.slane %v1916, 6
      %v1944 = vsel %vm715, %v1942, %v1943
      %v1945 = vrot.slane %v1917, 6
      %v1946 = vrot.slane %v1945, 4
      %v1947 = vrot.slane %v1918, 6
      %v1948 = vsel %vm715, %v1946, %v1947
      %v1949 = vrot.slane %v1919, 6
      %v1950 = vrot.slane %v1949, 4
      %v1951 = vrot.slane %v1920, 6
      %v1952 = vsel %vm715, %v1950, %v1951
      %v1953 = vld [vmem:[%s3 + $0x200] sm:$0xf]
      %v1954 = vld [vmem:[%s3 + $0x204] sm:$0xf]
      %v1955 = vld [vmem:[%s3 + $0x208] sm:$0xf]
      %v1956 = vld [vmem:[%s3 + $0x20c] sm:$0xf]
      %v1957 = vld [vmem:[%s3 + $0x210] sm:$0xf]
      %v1958 = vld [vmem:[%s3 + $0x214] sm:$0xf]
      %v1959 = vld [vmem:[%s3 + $0x218] sm:$0xf]
      %v1960 = vld [vmem:[%s3 + $0x21c] sm:$0xf]
      %v1961 = vld [vmem:[%s3 + $0x220] sm:$0xf]
      %v1962 = vld [vmem:[%s3 + $0x224] sm:$0xf]
      %v1963 = vld [vmem:[%s3 + $0x228] sm:$0xf]
      %v1964 = vld [vmem:[%s3 + $0x22c] sm:$0xf]
      %v1965 = vld [vmem:[%s3 + $0x230] sm:$0xf]
      %v1966 = vld [vmem:[%s3 + $0x234] sm:$0xf]
      %v1967 = vld [vmem:[%s3 + $0x238] sm:$0xf]
      %v1968 = vld [vmem:[%s3 + $0x23c] sm:$0xf]
      %v1969 = vunpack.c.l.b16 %v1924
      %v1970 = vunpack.c.l.b16 %v1928
      %v1971 = vunpack.c.l.b16 %v1932
      %v1972 = vunpack.c.l.b16 %v1936
      %v1973 = vunpack.c.l.b16 %v1940
      %v1974 = vunpack.c.l.b16 %v1944
      %v1975 = vunpack.c.l.b16 %v1948
      %v1976 = vunpack.c.l.b16 %v1952
      %v1977 = vpack.c.b16 %v1970, %v1969
      %v1978 = vpack.c.b16 %v1972, %v1971
      %v1979 = vpack.c.b16 %v1974, %v1973
      %v1980 = vpack.c.b16 %v1976, %v1975
      %v2001 = vunpack.c.l.b16 %v1953
      %v2002 = vunpack.c.l.b16 %v1954
      %v2003 = vunpack.c.l.b16 %v1955
      %v2004 = vunpack.c.l.b16 %v1956
      %v2005 = vunpack.c.l.b16 %v1957
      %v2006 = vunpack.c.l.b16 %v1958
      %v2007 = vunpack.c.l.b16 %v1959
      %v2008 = vunpack.c.l.b16 %v1960
      %v2009 = vunpack.c.l.b16 %v1961
      %v2010 = vunpack.c.l.b16 %v1962
      %v2011 = vunpack.c.l.b16 %v1963
      %v2012 = vunpack.c.l.b16 %v1964
      %v2013 = vunpack.c.l.b16 %v1965
      %v2014 = vunpack.c.l.b16 %v1966
      %v2015 = vunpack.c.l.b16 %v1967
      %v2016 = vunpack.c.l.b16 %v1968
      %v2017 = vpack.c.b16 %v2002, %v2001
      %v2018 = vpack.c.b16 %v2004, %v2003
      %v2019 = vpack.c.b16 %v2006, %v2005
      %v2020 = vpack.c.b16 %v2008, %v2007
      %v2021 = vpack.c.b16 %v2010, %v2009
      %v2022 = vpack.c.b16 %v2012, %v2011
      %v2023 = vpack.c.b16 %v2014, %v2013
      %v2024 = vpack.c.b16 %v2016, %v2015
      %2033 = vmatprep.subr.bf16.mxu0 0
      %2034 = vmatpush1.bf16.msra.mxu0 %v2017
      %2035 = vmatprep.subr.bf16.mxu0 0
      %2036 = vmatpush1.bf16.msra.mxu0 %v2018
      %2037 = vmatprep.subr.bf16.mxu0 0
      %2038 = vmatpush1.bf16.msra.mxu0 %v2019
      %2039 = vmatprep.subr.bf16.mxu0 0
      %2040 = vmatpush1.bf16.msra.mxu0 %v2020
      %2041 = vmatprep.subr.bf16.mxu0 0
      %2042 = vmatpush1.bf16.msra.mxu0 %v2021
      %2043 = vmatprep.subr.bf16.mxu0 0
      %2044 = vmatpush1.bf16.msra.mxu0 %v2022
      %2045 = vmatprep.subr.bf16.mxu0 0
      %2046 = vmatpush1.bf16.msra.mxu0 %v2023
      %2047 = vmatprep.subr.bf16.mxu0 0
      %2048 = vmatpush1.bf16.msra.mxu0 %v2024
      %2049 = vmatprep.subr.bf16.mxu0 0
      %2050 = vmatpush1.bf16.msra.mxu0 0
      %2051 = vmatprep.subr.bf16.mxu0 0
      %2052 = vmatpush1.bf16.msra.mxu0 0
      %2053 = vmatprep.subr.bf16.mxu0 0
      %2054 = vmatpush1.bf16.msra.mxu0 0
      %2055 = vmatprep.subr.bf16.mxu0 0
      %2056 = vmatpush1.bf16.msra.mxu0 0
      %2057 = vmatprep.subr.bf16.mxu0 0
      %2058 = vmatpush1.bf16.msra.mxu0 0
      %2059 = vmatprep.subr.bf16.mxu0 0
      %2060 = vmatpush1.bf16.msra.mxu0 0
      %2061 = vmatprep.subr.bf16.mxu0 0
      %2062 = vmatpush1.bf16.msra.mxu0 0
      %2063 = vmatprep.subr.bf16.mxu0 0
      %2064 = vmatpush1.bf16.msra.mxu0 0
      %2065 = vmatprep.mubr.bf16.mxu0 0
      %2066 = vmatmul.mubr.bf16.gmra.mrb[0].mxu0 %v1977
      %v2067 = vpop.f32.mrb[0].mxu0
      %v2068 = vadd.f32 0.0, %v2067
      %v2069 = vpop.f32.mrb[0].mxu0
      %v2070 = vpop.f32.mrb[0].mxu0
      %v2071 = vadd.f32 0.0, %v2070
      %v2072 = vpop.f32.mrb[0].mxu0
      %2073 = vmatprep.mubr.bf16.mxu0 0
      %2074 = vmatmul.mubr.bf16.gmra.mrb[0].mxu0 %v1978
      %v2075 = vpop.f32.mrb[0].mxu0
      %v2076 = vadd.f32 0.0, %v2075
      %v2077 = vpop.f32.mrb[0].mxu0
      %v2078 = vpop.f32.mrb[0].mxu0
      %v2079 = vadd.f32 0.0, %v2078
      %v2080 = vpop.f32.mrb[0].mxu0
      %2081 = vmatprep.mubr.bf16.mxu0 0
      %2082 = vmatmul.mubr.bf16.gmra.mrb[0].mxu0 %v1979
      %v2083 = vpop.f32.mrb[0].mxu0
      %v2084 = vadd.f32 0.0, %v2083
      %v2085 = vpop.f32.mrb[0].mxu0
      %v2086 = vpop.f32.mrb[0].mxu0
      %v2087 = vadd.f32 0.0, %v2086
      %v2088 = vpop.f32.mrb[0].mxu0
      %2089 = vmatprep.mubr.bf16.mxu0 0
      %2090 = vmatmul.mubr.bf16.gmra.mrb[0].mxu0 %v1980
      %v2091 = vpop.f32.mrb[0].mxu0
      %v2092 = vadd.f32 0.0, %v2091
      %v2093 = vpop.f32.mrb[0].mxu0
      %v2094 = vpop.f32.mrb[0].mxu0
      %v2095 = vadd.f32 0.0, %v2094
      %v2096 = vpop.f32.mrb[0].mxu0
      %2097 = vdwg.mxu0
      %v2098 = vadd.f32 %v1865, %v2068
      %v2099 = vadd.f32 %v1866, %v2071
      %v2100 = vadd.f32 %v1867, %v2076
      %v2101 = vadd.f32 %v1868, %v2079
      %v2102 = vadd.f32 %v1869, %v2084
      %v2103 = vadd.f32 %v1870, %v2087
      %v2104 = vadd.f32 %v1871, %v2092
      %v2105 = vadd.f32 %v1872, %v2095
      %v2106 = vld [vmem:[%s4] sm:$0x1]
      %v2108 = vlaneseq
      %v2109 = vshrl.u32 %v2108, 7
      %v2110 = vsub.s32 0, %v2109
      %v2111 = vrot.slane %v2106, %v2110
      %v2113 = vadd.f32 %v2098, %v2111
      %v2114 = vadd.f32 %v2099, %v2111
      %v2115 = vadd.f32 %v2100, %v2111
      %v2116 = vadd.f32 %v2101, %v2111
      %v2117 = vadd.f32 %v2102, %v2111
      %v2118 = vadd.f32 %v2103, %v2111
      %v2119 = vadd.f32 %v2104, %v2111
      %v2120 = vadd.f32 %v2105, %v2111
      %v2121 = vmax.f32 %v2113, 0.0
      %v2122 = vmax.f32 %v2114, 0.0
      %v2123 = vmax.f32 %v2115, 0.0
      %v2124 = vmax.f32 %v2116, 0.0
      %v2125 = vmax.f32 %v2117, 0.0
      %v2126 = vmax.f32 %v2118, 0.0
      %v2127 = vmax.f32 %v2119, 0.0
      %v2128 = vmax.f32 %v2120, 0.0
      %v2129 = vpack.c.bf16 %v2122, %v2121
      %v2130 = vpack.c.bf16 %v2124, %v2123
      %v2131 = vpack.c.bf16 %v2126, %v2125
      %v2132 = vpack.c.bf16 %v2128, %v2127
      %2133 = vst [vmem:[#allocation3] sm:$0xff] 0
      %2134 = vst [vmem:[#allocation3 + $0x8] sm:$0xff] 0
      %2135 = vst [vmem:[#allocation3 + $0x10] sm:$0xff] 0
      %2136 = vst [vmem:[#allocation3 + $0x18] sm:$0xff] 0
      %2137 = vst [vmem:[#allocation3 + $0x20] sm:$0xff] 0
      %2138 = vst [vmem:[#allocation3 + $0x28] sm:$0xff] 0
      %2139 = vst [vmem:[#allocation3 + $0x30] sm:$0xff] 0
      %2140 = vst [vmem:[#allocation3 + $0x38] sm:$0xff] 0
      %2141 = vst [vmem:[#allocation3 + $0x40] sm:$0xff] 0
      %2142 = vst [vmem:[#allocation3 + $0x48] sm:$0xff] 0
      %2143 = vst [vmem:[#allocation3 + $0x50] sm:$0xff] 0
      %2144 = vst [vmem:[#allocation3 + $0x58] sm:$0xff] 0
      %v2149 = vunpack.c.l.b16 %v2129
      %v2150 = vunpack.c.h.b16 %v2129
      %v2151 = vunpack.c.l.b16 %v2130
      %v2152 = vunpack.c.h.b16 %v2130
      %v2153 = vunpack.c.l.b16 %v2131
      %v2154 = vunpack.c.h.b16 %v2131
      %v2155 = vunpack.c.l.b16 %v2132
      %v2156 = vunpack.c.h.b16 %v2132
      %v2157 = vpack.c.b16 %v2149, %v2149
      %v2158 = vpack.c.b16 %v2150, %v2150
      %v2159 = vpack.c.b16 %v2151, %v2151
      %v2160 = vpack.c.b16 %v2152, %v2152
      %v2161 = vpack.c.b16 %v2153, %v2153
      %v2162 = vpack.c.b16 %v2154, %v2154
      %v2163 = vpack.c.b16 %v2155, %v2155
      %v2164 = vpack.c.b16 %v2156, %v2156
      %v2165 = vrot.slane %v2157, 7
      %v2166 = vrot.slane %v2158, 7
      %v2167 = vrot.slane %v2159, 7
      %v2168 = vrot.slane %v2160, 7
      %v2169 = vrot.slane %v2161, 7
      %v2170 = vrot.slane %v2162, 7
      %v2171 = vrot.slane %v2163, 7
      %v2172 = vrot.slane %v2164, 7
      %s2181 = scalar_lea.vmem [#allocation3], 16
      %2182 = vst [vmem:[%s2181] sm:$0x1e] %v2165
      %2183 = vst [vmem:[%s2181 + $0x8] sm:$0x1e] %v2166
      %2184 = vst [vmem:[%s2181 + $0x10] sm:$0x1e] %v2167
      %2185 = vst [vmem:[%s2181 + $0x18] sm:$0x1e] %v2168
      %2186 = vst [vmem:[%s2181 + $0x20] sm:$0x1e] %v2169
      %2187 = vst [vmem:[%s2181 + $0x28] sm:$0x1e] %v2170
      %2188 = vst [vmem:[%s2181 + $0x30] sm:$0x1e] %v2171
      %2189 = vst [vmem:[%s2181 + $0x38] sm:$0x1e] %v2172
      %v2190 = vld [vmem:[#allocation3] sm:$0xf]
      %v2191 = vld [vmem:[#allocation3 + $0x8] sm:$0xf]
      %v2192 = vld [vmem:[#allocation3 + $0x10] sm:$0xf]
      %v2193 = vld [vmem:[#allocation3 + $0x18] sm:$0xf]
      %v2194 = vld [vmem:[#allocation3 + $0x20] sm:$0xf]
      %v2195 = vld [vmem:[#allocation3 + $0x28] sm:$0xf]
      %v2196 = vld [vmem:[#allocation3 + $0x30] sm:$0xf]
      %v2197 = vld [vmem:[#allocation3 + $0x38] sm:$0xf]
      %v2198 = vld [vmem:[#allocation3] sm:$0x1e]
      %v2199 = vld [vmem:[#allocation3 + $0x8] sm:$0x1e]
      %v2200 = vld [vmem:[#allocation3 + $0x10] sm:$0x1e]
      %v2201 = vld [vmem:[#allocation3 + $0x18] sm:$0x1e]
      %v2202 = vld [vmem:[#allocation3 + $0x20] sm:$0x1e]
      %v2203 = vld [vmem:[#allocation3 + $0x28] sm:$0x1e]
      %v2204 = vld [vmem:[#allocation3 + $0x30] sm:$0x1e]
      %v2205 = vld [vmem:[#allocation3 + $0x38] sm:$0x1e]
      %v2214 = vunpack.c.l.b16 %v2198
      %v2215 = vunpack.c.h.b16 %v2198
      %v2216 = vunpack.c.l.b16 %v2199
      %v2217 = vunpack.c.h.b16 %v2199
      %v2218 = vunpack.c.l.b16 %v2200
      %v2219 = vunpack.c.h.b16 %v2200
      %v2220 = vunpack.c.l.b16 %v2201
      %v2221 = vunpack.c.h.b16 %v2201
      %v2222 = vunpack.c.l.b16 %v2202
      %v2223 = vunpack.c.h.b16 %v2202
      %v2224 = vunpack.c.l.b16 %v2203
      %v2225 = vunpack.c.h.b16 %v2203
      %v2226 = vunpack.c.l.b16 %v2204
      %v2227 = vunpack.c.h.b16 %v2204
      %v2228 = vunpack.c.l.b16 %v2205
      %v2229 = vunpack.c.h.b16 %v2205
      %v2230 = vpack.c.b16 %v2214, %v2214
      %v2231 = vpack.c.b16 %v2215, %v2215
      %v2232 = vpack.c.b16 %v2216, %v2216
      %v2233 = vpack.c.b16 %v2217, %v2217
      %v2234 = vpack.c.b16 %v2218, %v2218
      %v2235 = vpack.c.b16 %v2219, %v2219
      %v2236 = vpack.c.b16 %v2220, %v2220
      %v2237 = vpack.c.b16 %v2221, %v2221
      %v2238 = vpack.c.b16 %v2222, %v2222
      %v2239 = vpack.c.b16 %v2223, %v2223
      %v2240 = vpack.c.b16 %v2224, %v2224
      %v2241 = vpack.c.b16 %v2225, %v2225
      %v2242 = vpack.c.b16 %v2226, %v2226
      %v2243 = vpack.c.b16 %v2227, %v2227
      %v2244 = vpack.c.b16 %v2228, %v2228
      %v2245 = vpack.c.b16 %v2229, %v2229
      %v2246 = vrot.slane %v2230, 5
      %v2247 = vrot.slane %v2246, 4
      %v2248 = vrot.slane %v2231, 5
      %v2249 = vsel %vm560, %v2247, %v2248
      %v2250 = vrot.slane %v2232, 5
      %v2251 = vrot.slane %v2250, 4
      %v2252 = vrot.slane %v2233, 5
      %v2253 = vsel %vm560, %v2251, %v2252
      %v2254 = vrot.slane %v2234, 5
      %v2255 = vrot.slane %v2254, 4
      %v2256 = vrot.slane %v2235, 5
      %v2257 = vsel %vm560, %v2255, %v2256
      %v2258 = vrot.slane %v2236, 5
      %v2259 = vrot.slane %v2258, 4
      %v2260 = vrot.slane %v2237, 5
      %v2261 = vsel %vm560, %v2259, %v2260
      %v2262 = vrot.slane %v2238, 5
      %v2263 = vrot.slane %v2262, 4
      %v2264 = vrot.slane %v2239, 5
      %v2265 = vsel %vm560, %v2263, %v2264
      %v2266 = vrot.slane %v2240, 5
      %v2267 = vrot.slane %v2266, 4
      %v2268 = vrot.slane %v2241, 5
      %v2269 = vsel %vm560, %v2267, %v2268
      %v2270 = vrot.slane %v2242, 5
      %v2271 = vrot.slane %v2270, 4
      %v2272 = vrot.slane %v2243, 5
      %v2273 = vsel %vm560, %v2271, %v2272
      %v2274 = vrot.slane %v2244, 5
      %v2275 = vrot.slane %v2274, 4
      %v2276 = vrot.slane %v2245, 5
      %v2277 = vsel %vm560, %v2275, %v2276
      %v2286 = vunpack.c.l.b16 %v2190
      %v2287 = vunpack.c.l.b16 %v2191
      %v2288 = vunpack.c.l.b16 %v2192
      %v2289 = vunpack.c.l.b16 %v2193
      %v2290 = vunpack.c.l.b16 %v2194
      %v2291 = vunpack.c.l.b16 %v2195
      %v2292 = vunpack.c.l.b16 %v2196
      %v2293 = vunpack.c.l.b16 %v2197
      %v2294 = vpack.c.b16 %v2287, %v2286
      %v2295 = vpack.c.b16 %v2289, %v2288
      %v2296 = vpack.c.b16 %v2291, %v2290
      %v2297 = vpack.c.b16 %v2293, %v2292
      %v2302 = vunpack.c.l.b16 %v2249
      %v2303 = vunpack.c.l.b16 %v2253
      %v2304 = vunpack.c.l.b16 %v2257
      %v2305 = vunpack.c.l.b16 %v2261
      %v2306 = vunpack.c.l.b16 %v2265
      %v2307 = vunpack.c.l.b16 %v2269
      %v2308 = vunpack.c.l.b16 %v2273
      %v2309 = vunpack.c.l.b16 %v2277
      %v2310 = vpack.c.b16 %v2303, %v2302
      %v2311 = vpack.c.b16 %v2305, %v2304
      %v2312 = vpack.c.b16 %v2307, %v2306
      %v2313 = vpack.c.b16 %v2309, %v2308
      %v2318 = vld [vmem:[%s5] sm:$0xf]
      %v2319 = vld [vmem:[%s5 + $0x4] sm:$0xf]
      %v2320 = vld [vmem:[%s5 + $0x8] sm:$0xf]
      %v2321 = vld [vmem:[%s5 + $0xc] sm:$0xf]
      %v2322 = vld [vmem:[%s5 + $0x10] sm:$0xf]
      %v2323 = vld [vmem:[%s5 + $0x14] sm:$0xf]
      %v2324 = vld [vmem:[%s5 + $0x18] sm:$0xf]
      %v2325 = vld [vmem:[%s5 + $0x1c] sm:$0xf]
      %v2326 = vld [vmem:[%s5 + $0x20] sm:$0xf]
      %v2327 = vld [vmem:[%s5 + $0x24] sm:$0xf]
      %v2328 = vld [vmem:[%s5 + $0x28] sm:$0xf]
      %v2329 = vld [vmem:[%s5 + $0x2c] sm:$0xf]
      %v2330 = vld [vmem:[%s5 + $0x30] sm:$0xf]
      %v2331 = vld [vmem:[%s5 + $0x34] sm:$0xf]
      %v2332 = vld [vmem:[%s5 + $0x38] sm:$0xf]
      %v2333 = vld [vmem:[%s5 + $0x3c] sm:$0xf]
      %v2334 = vld [vmem:[%s5 + $0x40] sm:$0xf]
      %v2335 = vld [vmem:[%s5 + $0x44] sm:$0xf]
      %v2336 = vld [vmem:[%s5 + $0x48] sm:$0xf]
      %v2337 = vld [vmem:[%s5 + $0x4c] sm:$0xf]
      %v2338 = vld [vmem:[%s5 + $0x50] sm:$0xf]
      %v2339 = vld [vmem:[%s5 + $0x54] sm:$0xf]
      %v2340 = vld [vmem:[%s5 + $0x58] sm:$0xf]
      %v2341 = vld [vmem:[%s5 + $0x5c] sm:$0xf]
      %v2342 = vld [vmem:[%s5 + $0x60] sm:$0xf]
      %v2343 = vld [vmem:[%s5 + $0x64] sm:$0xf]
      %v2344 = vld [vmem:[%s5 + $0x68] sm:$0xf]
      %v2345 = vld [vmem:[%s5 + $0x6c] sm:$0xf]
      %v2346 = vld [vmem:[%s5 + $0x70] sm:$0xf]
      %v2347 = vld [vmem:[%s5 + $0x74] sm:$0xf]
      %v2348 = vld [vmem:[%s5 + $0x78] sm:$0xf]
      %v2349 = vld [vmem:[%s5 + $0x7c] sm:$0xf]
      %v2350 = vld [vmem:[#allocation3] sm:$0x3c]
      %v2351 = vld [vmem:[#allocation3 + $0x8] sm:$0x3c]
      %v2352 = vld [vmem:[#allocation3 + $0x10] sm:$0x3c]
      %v2353 = vld [vmem:[#allocation3 + $0x18] sm:$0x3c]
      %v2354 = vld [vmem:[#allocation3 + $0x20] sm:$0x3c]
      %v2355 = vld [vmem:[#allocation3 + $0x28] sm:$0x3c]
      %v2356 = vld [vmem:[#allocation3 + $0x30] sm:$0x3c]
      %v2357 = vld [vmem:[#allocation3 + $0x38] sm:$0x3c]
      %v2366 = vunpack.c.l.b16 %v2350
      %v2367 = vunpack.c.h.b16 %v2350
      %v2368 = vunpack.c.l.b16 %v2351
      %v2369 = vunpack.c.h.b16 %v2351
      %v2370 = vunpack.c.l.b16 %v2352
      %v2371 = vunpack.c.h.b16 %v2352
      %v2372 = vunpack.c.l.b16 %v2353
      %v2373 = vunpack.c.h.b16 %v2353
      %v2374 = vunpack.c.l.b16 %v2354
      %v2375 = vunpack.c.h.b16 %v2354
      %v2376 = vunpack.c.l.b16 %v2355
      %v2377 = vunpack.c.h.b16 %v2355
      %v2378 = vunpack.c.l.b16 %v2356
      %v2379 = vunpack.c.h.b16 %v2356
      %v2380 = vunpack.c.l.b16 %v2357
      %v2381 = vunpack.c.h.b16 %v2357
      %v2382 = vpack.c.b16 %v2366, %v2366
      %v2383 = vpack.c.b16 %v2367, %v2367
      %v2384 = vpack.c.b16 %v2368, %v2368
      %v2385 = vpack.c.b16 %v2369, %v2369
      %v2386 = vpack.c.b16 %v2370, %v2370
      %v2387 = vpack.c.b16 %v2371, %v2371
      %v2388 = vpack.c.b16 %v2372, %v2372
      %v2389 = vpack.c.b16 %v2373, %v2373
      %v2390 = vpack.c.b16 %v2374, %v2374
      %v2391 = vpack.c.b16 %v2375, %v2375
      %v2392 = vpack.c.b16 %v2376, %v2376
      %v2393 = vpack.c.b16 %v2377, %v2377
      %v2394 = vpack.c.b16 %v2378, %v2378
      %v2395 = vpack.c.b16 %v2379, %v2379
      %v2396 = vpack.c.b16 %v2380, %v2380
      %v2397 = vpack.c.b16 %v2381, %v2381
      %v2398 = vrot.slane %v2382, 6
      %v2399 = vrot.slane %v2398, 4
      %v2400 = vrot.slane %v2383, 6
      %v2401 = vsel %vm715, %v2399, %v2400
      %v2402 = vrot.slane %v2384, 6
      %v2403 = vrot.slane %v2402, 4
      %v2404 = vrot.slane %v2385, 6
      %v2405 = vsel %vm715, %v2403, %v2404
      %v2406 = vrot.slane %v2386, 6
      %v2407 = vrot.slane %v2406, 4
      %v2408 = vrot.slane %v2387, 6
      %v2409 = vsel %vm715, %v2407, %v2408
      %v2410 = vrot.slane %v2388, 6
      %v2411 = vrot.slane %v2410, 4
      %v2412 = vrot.slane %v2389, 6
      %v2413 = vsel %vm715, %v2411, %v2412
      %v2414 = vrot.slane %v2390, 6
      %v2415 = vrot.slane %v2414, 4
      %v2416 = vrot.slane %v2391, 6
      %v2417 = vsel %vm715, %v2415, %v2416
      %v2418 = vrot.slane %v2392, 6
      %v2419 = vrot.slane %v2418, 4
      %v2420 = vrot.slane %v2393, 6
      %v2421 = vsel %vm715, %v2419, %v2420
      %v2422 = vrot.slane %v2394, 6
      %v2423 = vrot.slane %v2422, 4
      %v2424 = vrot.slane %v2395, 6
      %v2425 = vsel %vm715, %v2423, %v2424
      %v2426 = vrot.slane %v2396, 6
      %v2427 = vrot.slane %v2426, 4
      %v2428 = vrot.slane %v2397, 6
      %v2429 = vsel %vm715, %v2427, %v2428
      %v2430 = vld [vmem:[%s2181] sm:$0xf]
      %v2431 = vld [vmem:[%s2181 + $0x8] sm:$0xf]
      %v2432 = vld [vmem:[%s2181 + $0x10] sm:$0xf]
      %v2433 = vld [vmem:[%s2181 + $0x18] sm:$0xf]
      %v2434 = vld [vmem:[%s2181 + $0x20] sm:$0xf]
      %v2435 = vld [vmem:[%s2181 + $0x28] sm:$0xf]
      %v2436 = vld [vmem:[%s2181 + $0x30] sm:$0xf]
      %v2437 = vld [vmem:[%s2181 + $0x38] sm:$0xf]
      %v2438 = vunpack.c.l.b16 %v2401
      %v2439 = vunpack.c.l.b16 %v2405
      %v2440 = vunpack.c.l.b16 %v2409
      %v2441 = vunpack.c.l.b16 %v2413
      %v2442 = vunpack.c.l.b16 %v2417
      %v2443 = vunpack.c.l.b16 %v2421
      %v2444 = vunpack.c.l.b16 %v2425
      %v2445 = vunpack.c.l.b16 %v2429
      %v2446 = vpack.c.b16 %v2439, %v2438
      %v2447 = vpack.c.b16 %v2441, %v2440
      %v2448 = vpack.c.b16 %v2443, %v2442
      %v2449 = vpack.c.b16 %v2445, %v2444
      %v2462 = vunpack.c.l.b16 %v2430
      %v2463 = vunpack.c.l.b16 %v2431
      %v2464 = vunpack.c.l.b16 %v2432
      %v2465 = vunpack.c.l.b16 %v2433
      %v2466 = vunpack.c.l.b16 %v2434
      %v2467 = vunpack.c.l.b16 %v2435
      %v2468 = vunpack.c.l.b16 %v2436
      %v2469 = vunpack.c.l.b16 %v2437
      %v2470 = vpack.c.b16 %v2463, %v2462
      %v2471 = vpack.c.b16 %v2465, %v2464
      %v2472 = vpack.c.b16 %v2467, %v2466
      %v2473 = vpack.c.b16 %v2469, %v2468
      %v2478 = vld [vmem:[%s5 + $0x80] sm:$0xf]
      %v2479 = vld [vmem:[%s5 + $0x84] sm:$0xf]
      %v2480 = vld [vmem:[%s5 + $0x88] sm:$0xf]
      %v2481 = vld [vmem:[%s5 + $0x8c] sm:$0xf]
      %v2482 = vld [vmem:[%s5 + $0x90] sm:$0xf]
      %v2483 = vld [vmem:[%s5 + $0x94] sm:$0xf]
      %v2484 = vld [vmem:[%s5 + $0x98] sm:$0xf]
      %v2485 = vld [vmem:[%s5 + $0x9c] sm:$0xf]
      %v2486 = vld [vmem:[%s5 + $0xa0] sm:$0xf]
      %v2487 = vld [vmem:[%s5 + $0xa4] sm:$0xf]
      %v2488 = vld [vmem:[%s5 + $0xa8] sm:$0xf]
      %v2489 = vld [vmem:[%s5 + $0xac] sm:$0xf]
      %v2490 = vld [vmem:[%s5 + $0xb0] sm:$0xf]
      %v2491 = vld [vmem:[%s5 + $0xb4] sm:$0xf]
      %v2492 = vld [vmem:[%s5 + $0xb8] sm:$0xf]
      %v2493 = vld [vmem:[%s5 + $0xbc] sm:$0xf]
      %v2494 = vld [vmem:[%s5 + $0xc0] sm:$0xf]
      %v2495 = vld [vmem:[%s5 + $0xc4] sm:$0xf]
      %v2496 = vld [vmem:[%s5 + $0xc8] sm:$0xf]
      %v2497 = vld [vmem:[%s5 + $0xcc] sm:$0xf]
      %v2498 = vld [vmem:[%s5 + $0xd0] sm:$0xf]
      %v2499 = vld [vmem:[%s5 + $0xd4] sm:$0xf]
      %v2500 = vld [vmem:[%s5 + $0xd8] sm:$0xf]
      %v2501 = vld [vmem:[%s5 + $0xdc] sm:$0xf]
      %v2502 = vld [vmem:[%s5 + $0xe0] sm:$0xf]
      %v2503 = vld [vmem:[%s5 + $0xe4] sm:$0xf]
      %v2504 = vld [vmem:[%s5 + $0xe8] sm:$0xf]
      %v2505 = vld [vmem:[%s5 + $0xec] sm:$0xf]
      %v2506 = vld [vmem:[%s5 + $0xf0] sm:$0xf]
      %v2507 = vld [vmem:[%s5 + $0xf4] sm:$0xf]
      %v2508 = vld [vmem:[%s5 + $0xf8] sm:$0xf]
      %v2509 = vld [vmem:[%s5 + $0xfc] sm:$0xf]
      %v2542 = vunpack.c.l.b16 %v2478
      %v2543 = vunpack.c.l.b16 %v2479
      %v2544 = vunpack.c.l.b16 %v2480
      %v2545 = vunpack.c.l.b16 %v2481
      %v2546 = vunpack.c.l.b16 %v2482
      %v2547 = vunpack.c.l.b16 %v2483
      %v2548 = vunpack.c.l.b16 %v2484
      %v2549 = vunpack.c.l.b16 %v2485
      %v2550 = vunpack.c.l.b16 %v2486
      %v2551 = vunpack.c.l.b16 %v2487
      %v2552 = vunpack.c.l.b16 %v2488
      %v2553 = vunpack.c.l.b16 %v2489
      %v2554 = vunpack.c.l.b16 %v2490
      %v2555 = vunpack.c.l.b16 %v2491
      %v2556 = vunpack.c.l.b16 %v2492
      %v2557 = vunpack.c.l.b16 %v2493
      %v2558 = vunpack.c.l.b16 %v2494
      %v2559 = vunpack.c.l.b16 %v2495
      %v2560 = vunpack.c.l.b16 %v2496
      %v2561 = vunpack.c.l.b16 %v2497
      %v2562 = vunpack.c.l.b16 %v2498
      %v2563 = vunpack.c.l.b16 %v2499
      %v2564 = vunpack.c.l.b16 %v2500
      %v2565 = vunpack.c.l.b16 %v2501
      %v2566 = vunpack.c.l.b16 %v2502
      %v2567 = vunpack.c.l.b16 %v2503
      %v2568 = vunpack.c.l.b16 %v2504
      %v2569 = vunpack.c.l.b16 %v2505
      %v2570 = vunpack.c.l.b16 %v2506
      %v2571 = vunpack.c.l.b16 %v2507
      %v2572 = vunpack.c.l.b16 %v2508
      %v2573 = vunpack.c.l.b16 %v2509
      %v2574 = vpack.c.b16 %v2543, %v2542
      %v2575 = vpack.c.b16 %v2545, %v2544
      %v2576 = vpack.c.b16 %v2547, %v2546
      %v2577 = vpack.c.b16 %v2549, %v2548
      %v2578 = vpack.c.b16 %v2551, %v2550
      %v2579 = vpack.c.b16 %v2553, %v2552
      %v2580 = vpack.c.b16 %v2555, %v2554
      %v2581 = vpack.c.b16 %v2557, %v2556
      %v2582 = vpack.c.b16 %v2559, %v2558
      %v2583 = vpack.c.b16 %v2561, %v2560
      %v2584 = vpack.c.b16 %v2563, %v2562
      %v2585 = vpack.c.b16 %v2565, %v2564
      %v2586 = vpack.c.b16 %v2567, %v2566
      %v2587 = vpack.c.b16 %v2569, %v2568
      %v2588 = vpack.c.b16 %v2571, %v2570
      %v2589 = vpack.c.b16 %v2573, %v2572
      %2606 = vmatprep.subr.bf16.mxu0 0
      %2607 = vmatpush1.bf16.msra.mxu0 %v2574
      %2608 = vmatprep.subr.bf16.mxu0 0
      %2609 = vmatpush1.bf16.msra.mxu0 %v2575
      %2610 = vmatprep.subr.bf16.mxu0 0
      %2611 = vmatpush1.bf16.msra.mxu0 %v2576
      %2612 = vmatprep.subr.bf16.mxu0 0
      %2613 = vmatpush1.bf16.msra.mxu0 %v2577
      %2614 = vmatprep.subr.bf16.mxu0 0
      %2615 = vmatpush1.bf16.msra.mxu0 %v2578
      %2616 = vmatprep.subr.bf16.mxu0 0
      %2617 = vmatpush1.bf16.msra.mxu0 %v2579
      %2618 = vmatprep.subr.bf16.mxu0 0
      %2619 = vmatpush1.bf16.msra.mxu0 %v2580
      %2620 = vmatprep.subr.bf16.mxu0 0
      %2621 = vmatpush1.bf16.msra.mxu0 %v2581
      %2622 = vmatprep.subr.bf16.mxu0 0
      %2623 = vmatpush1.bf16.msra.mxu0 %v2582
      %2624 = vmatprep.subr.bf16.mxu0 0
      %2625 = vmatpush1.bf16.msra.mxu0 %v2583
      %2626 = vmatprep.subr.bf16.mxu0 0
      %2627 = vmatpush1.bf16.msra.mxu0 %v2584
      %2628 = vmatprep.subr.bf16.mxu0 0
      %2629 = vmatpush1.bf16.msra.mxu0 %v2585
      %2630 = vmatprep.subr.bf16.mxu0 0
      %2631 = vmatpush1.bf16.msra.mxu0 %v2586
      %2632 = vmatprep.subr.bf16.mxu0 0
      %2633 = vmatpush1.bf16.msra.mxu0 %v2587
      %2634 = vmatprep.subr.bf16.mxu0 0
      %2635 = vmatpush1.bf16.msra.mxu0 %v2588
      %2636 = vmatprep.subr.bf16.mxu0 0
      %2637 = vmatpush1.bf16.msra.mxu0 %v2589
      %2638 = vmatprep.mubr.bf16.mxu0 %v2470
      %2639 = vmatmul.mubr.bf16.gmra.mrb[0].mxu0 %v2446
      %v2640 = vpop.f32.mrb[0].mxu0
      %v2641 = vadd.f32 0.0, %v2640
      %v2642 = vpop.f32.mrb[0].mxu0
      %v2643 = vpop.f32.mrb[0].mxu0
      %v2644 = vadd.f32 0.0, %v2643
      %v2645 = vpop.f32.mrb[0].mxu0
      %2646 = vmatprep.mubr.bf16.mxu0 %v2471
      %2647 = vmatmul.mubr.bf16.gmra.mrb[0].mxu0 %v2447
      %v2648 = vpop.f32.mrb[0].mxu0
      %v2649 = vadd.f32 0.0, %v2648
      %v2650 = vpop.f32.mrb[0].mxu0
      %v2651 = vpop.f32.mrb[0].mxu0
      %v2652 = vadd.f32 0.0, %v2651
      %v2653 = vpop.f32.mrb[0].mxu0
      %2654 = vmatprep.mubr.bf16.mxu0 %v2472
      %2655 = vmatmul.mubr.bf16.gmra.mrb[0].mxu0 %v2448
      %v2656 = vpop.f32.mrb[0].mxu0
      %v2657 = vadd.f32 0.0, %v2656
      %v2658 = vpop.f32.mrb[0].mxu0
      %v2659 = vpop.f32.mrb[0].mxu0
      %v2660 = vadd.f32 0.0, %v2659
      %v2661 = vpop.f32.mrb[0].mxu0
      %2662 = vmatprep.mubr.bf16.mxu0 %v2473
      %2663 = vmatmul.mubr.bf16.gmra.mrb[0].mxu0 %v2449
      %v2664 = vpop.f32.mrb[0].mxu0
      %v2665 = vadd.f32 0.0, %v2664
      %v2666 = vpop.f32.mrb[0].mxu0
      %v2667 = vpop.f32.mrb[0].mxu0
      %v2668 = vadd.f32 0.0, %v2667
      %v2669 = vpop.f32.mrb[0].mxu0
      %2670 = vdwg.mxu0
      %v2703 = vunpack.c.l.b16 %v2318
      %v2704 = vunpack.c.l.b16 %v2319
      %v2705 = vunpack.c.l.b16 %v2320
      %v2706 = vunpack.c.l.b16 %v2321
      %v2707 = vunpack.c.l.b16 %v2322
      %v2708 = vunpack.c.l.b16 %v2323
      %v2709 = vunpack.c.l.b16 %v2324
      %v2710 = vunpack.c.l.b16 %v2325
      %v2711 = vunpack.c.l.b16 %v2326
      %v2712 = vunpack.c.l.b16 %v2327
      %v2713 = vunpack.c.l.b16 %v2328
      %v2714 = vunpack.c.l.b16 %v2329
      %v2715 = vunpack.c.l.b16 %v2330
      %v2716 = vunpack.c.l.b16 %v2331
      %v2717 = vunpack.c.l.b16 %v2332
      %v2718 = vunpack.c.l.b16 %v2333
      %v2719 = vunpack.c.l.b16 %v2334
      %v2720 = vunpack.c.l.b16 %v2335
      %v2721 = vunpack.c.l.b16 %v2336
      %v2722 = vunpack.c.l.b16 %v2337
      %v2723 = vunpack.c.l.b16 %v2338
      %v2724 = vunpack.c.l.b16 %v2339
      %v2725 = vunpack.c.l.b16 %v2340
      %v2726 = vunpack.c.l.b16 %v2341
      %v2727 = vunpack.c.l.b16 %v2342
      %v2728 = vunpack.c.l.b16 %v2343
      %v2729 = vunpack.c.l.b16 %v2344
      %v2730 = vunpack.c.l.b16 %v2345
      %v2731 = vunpack.c.l.b16 %v2346
      %v2732 = vunpack.c.l.b16 %v2347
      %v2733 = vunpack.c.l.b16 %v2348
      %v2734 = vunpack.c.l.b16 %v2349
      %v2735 = vpack.c.b16 %v2704, %v2703
      %v2736 = vpack.c.b16 %v2706, %v2705
      %v2737 = vpack.c.b16 %v2708, %v2707
      %v2738 = vpack.c.b16 %v2710, %v2709
      %v2739 = vpack.c.b16 %v2712, %v2711
      %v2740 = vpack.c.b16 %v2714, %v2713
      %v2741 = vpack.c.b16 %v2716, %v2715
      %v2742 = vpack.c.b16 %v2718, %v2717
      %v2743 = vpack.c.b16 %v2720, %v2719
      %v2744 = vpack.c.b16 %v2722, %v2721
      %v2745 = vpack.c.b16 %v2724, %v2723
      %v2746 = vpack.c.b16 %v2726, %v2725
      %v2747 = vpack.c.b16 %v2728, %v2727
      %v2748 = vpack.c.b16 %v2730, %v2729
      %v2749 = vpack.c.b16 %v2732, %v2731
      %v2750 = vpack.c.b16 %v2734, %v2733
      %2767 = vmatprep.subr.bf16.mxu0 0
      %2768 = vmatpush1.bf16.msra.mxu0 %v2735
      %2769 = vmatprep.subr.bf16.mxu0 0
      %2770 = vmatpush1.bf16.msra.mxu0 %v2736
      %2771 = vmatprep.subr.bf16.mxu0 0
      %2772 = vmatpush1.bf16.msra.mxu0 %v2737
      %2773 = vmatprep.subr.bf16.mxu0 0
      %2774 = vmatpush1.bf16.msra.mxu0 %v2738
      %2775 = vmatprep.subr.bf16.mxu0 0
      %2776 = vmatpush1.bf16.msra.mxu0 %v2739
      %2777 = vmatprep.subr.bf16.mxu0 0
      %2778 = vmatpush1.bf16.msra.mxu0 %v2740
      %2779 = vmatprep.subr.bf16.mxu0 0
      %2780 = vmatpush1.bf16.msra.mxu0 %v2741
      %2781 = vmatprep.subr.bf16.mxu0 0
      %2782 = vmatpush1.bf16.msra.mxu0 %v2742
      %2783 = vmatprep.subr.bf16.mxu0 0
      %2784 = vmatpush1.bf16.msra.mxu0 %v2743
      %2785 = vmatprep.subr.bf16.mxu0 0
      %2786 = vmatpush1.bf16.msra.mxu0 %v2744
      %2787 = vmatprep.subr.bf16.mxu0 0
      %2788 = vmatpush1.bf16.msra.mxu0 %v2745
      %2789 = vmatprep.subr.bf16.mxu0 0
      %2790 = vmatpush1.bf16.msra.mxu0 %v2746
      %2791 = vmatprep.subr.bf16.mxu0 0
      %2792 = vmatpush1.bf16.msra.mxu0 %v2747
      %2793 = vmatprep.subr.bf16.mxu0 0
      %2794 = vmatpush1.bf16.msra.mxu0 %v2748
      %2795 = vmatprep.subr.bf16.mxu0 0
      %2796 = vmatpush1.bf16.msra.mxu0 %v2749
      %2797 = vmatprep.subr.bf16.mxu0 0
      %2798 = vmatpush1.bf16.msra.mxu0 %v2750
      %2799 = vmatprep.mubr.bf16.mxu0 %v2310
      %2800 = vmatmul.mubr.bf16.gmra.mrb[0].mxu0 %v2294
      %v2801 = vpop.f32.mrb[0].mxu0
      %v2802 = vadd.f32 %v2641, %v2801
      %v2803 = vpop.f32.mrb[0].mxu0
      %v2804 = vpop.f32.mrb[0].mxu0
      %v2805 = vadd.f32 %v2644, %v2804
      %v2806 = vpop.f32.mrb[0].mxu0
      %2807 = vmatprep.mubr.bf16.mxu0 %v2311
      %2808 = vmatmul.mubr.bf16.gmra.mrb[0].mxu0 %v2295
      %v2809 = vpop.f32.mrb[0].mxu0
      %v2810 = vadd.f32 %v2649, %v2809
      %v2811 = vpop.f32.mrb[0].mxu0
      %v2812 = vpop.f32.mrb[0].mxu0
      %v2813 = vadd.f32 %v2652, %v2812
      %v2814 = vpop.f32.mrb[0].mxu0
      %2815 = vmatprep.mubr.bf16.mxu0 %v2312
      %2816 = vmatmul.mubr.bf16.gmra.mrb[0].mxu0 %v2296
      %v2817 = vpop.f32.mrb[0].mxu0
      %v2818 = vadd.f32 %v2657, %v2817
      %v2819 = vpop.f32.mrb[0].mxu0
      %v2820 = vpop.f32.mrb[0].mxu0
      %v2821 = vadd.f32 %v2660, %v2820
      %v2822 = vpop.f32.mrb[0].mxu0
      %2823 = vmatprep.mubr.bf16.mxu0 %v2313
      %2824 = vmatmul.mubr.bf16.gmra.mrb[0].mxu0 %v2297
      %v2825 = vpop.f32.mrb[0].mxu0
      %v2826 = vadd.f32 %v2665, %v2825
      %v2827 = vpop.f32.mrb[0].mxu0
      %v2828 = vpop.f32.mrb[0].mxu0
      %v2829 = vadd.f32 %v2668, %v2828
      %v2830 = vpop.f32.mrb[0].mxu0
      %2831 = vdwg.mxu0
      %v2832 = vld [vmem:[%s2181] sm:$0x1e]
      %v2833 = vld [vmem:[%s2181 + $0x8] sm:$0x1e]
      %v2834 = vld [vmem:[%s2181 + $0x10] sm:$0x1e]
      %v2835 = vld [vmem:[%s2181 + $0x18] sm:$0x1e]
      %v2836 = vld [vmem:[%s2181 + $0x20] sm:$0x1e]
      %v2837 = vld [vmem:[%s2181 + $0x28] sm:$0x1e]
      %v2838 = vld [vmem:[%s2181 + $0x30] sm:$0x1e]
      %v2839 = vld [vmem:[%s2181 + $0x38] sm:$0x1e]
      %v2848 = vunpack.c.l.b16 %v2832
      %v2849 = vunpack.c.h.b16 %v2832
      %v2850 = vunpack.c.l.b16 %v2833
      %v2851 = vunpack.c.h.b16 %v2833
      %v2852 = vunpack.c.l.b16 %v2834
      %v2853 = vunpack.c.h.b16 %v2834
      %v2854 = vunpack.c.l.b16 %v2835
      %v2855 = vunpack.c.h.b16 %v2835
      %v2856 = vunpack.c.l.b16 %v2836
      %v2857 = vunpack.c.h.b16 %v2836
      %v2858 = vunpack.c.l.b16 %v2837
      %v2859 = vunpack.c.h.b16 %v2837
      %v2860 = vunpack.c.l.b16 %v2838
      %v2861 = vunpack.c.h.b16 %v2838
      %v2862 = vunpack.c.l.b16 %v2839
      %v2863 = vunpack.c.h.b16 %v2839
      %v2864 = vpack.c.b16 %v2848, %v2848
      %v2865 = vpack.c.b16 %v2849, %v2849
      %v2866 = vpack.c.b16 %v2850, %v2850
      %v2867 = vpack.c.b16 %v2851, %v2851
      %v2868 = vpack.c.b16 %v2852, %v2852
      %v2869 = vpack.c.b16 %v2853, %v2853
      %v2870 = vpack.c.b16 %v2854, %v2854
      %v2871 = vpack.c.b16 %v2855, %v2855
      %v2872 = vpack.c.b16 %v2856, %v2856
      %v2873 = vpack.c.b16 %v2857, %v2857
      %v2874 = vpack.c.b16 %v2858, %v2858
      %v2875 = vpack.c.b16 %v2859, %v2859
      %v2876 = vpack.c.b16 %v2860, %v2860
      %v2877 = vpack.c.b16 %v2861, %v2861
      %v2878 = vpack.c.b16 %v2862, %v2862
      %v2879 = vpack.c.b16 %v2863, %v2863
      %v2880 = vrot.slane %v2864, 5
      %v2881 = vrot.slane %v2880, 4
      %v2882 = vrot.slane %v2865, 5
      %v2883 = vsel %vm560, %v2881, %v2882
      %v2884 = vrot.slane %v2866, 5
      %v2885 = vrot.slane %v2884, 4
      %v2886 = vrot.slane %v2867, 5
      %v2887 = vsel %vm560, %v2885, %v2886
      %v2888 = vrot.slane %v2868, 5
      %v2889 = vrot.slane %v2888, 4
      %v2890 = vrot.slane %v2869, 5
      %v2891 = vsel %vm560, %v2889, %v2890
      %v2892 = vrot.slane %v2870, 5
      %v2893 = vrot.slane %v2892, 4
      %v2894 = vrot.slane %v2871, 5
      %v2895 = vsel %vm560, %v2893, %v2894
      %v2896 = vrot.slane %v2872, 5
      %v2897 = vrot.slane %v2896, 4
      %v2898 = vrot.slane %v2873, 5
      %v2899 = vsel %vm560, %v2897, %v2898
      %v2900 = vrot.slane %v2874, 5
      %v2901 = vrot.slane %v2900, 4
      %v2902 = vrot.slane %v2875, 5
      %v2903 = vsel %vm560, %v2901, %v2902
      %v2904 = vrot.slane %v2876, 5
      %v2905 = vrot.slane %v2904, 4
      %v2906 = vrot.slane %v2877, 5
      %v2907 = vsel %vm560, %v2905, %v2906
      %v2908 = vrot.slane %v2878, 5
      %v2909 = vrot.slane %v2908, 4
      %v2910 = vrot.slane %v2879, 5
      %v2911 = vsel %vm560, %v2909, %v2910
      %v2912 = vld [vmem:[%s2181] sm:$0x3c]
      %v2913 = vld [vmem:[%s2181 + $0x8] sm:$0x3c]
      %v2914 = vld [vmem:[%s2181 + $0x10] sm:$0x3c]
      %v2915 = vld [vmem:[%s2181 + $0x18] sm:$0x3c]
      %v2916 = vld [vmem:[%s2181 + $0x20] sm:$0x3c]
      %v2917 = vld [vmem:[%s2181 + $0x28] sm:$0x3c]
      %v2918 = vld [vmem:[%s2181 + $0x30] sm:$0x3c]
      %v2919 = vld [vmem:[%s2181 + $0x38] sm:$0x3c]
      %v2928 = vunpack.c.l.b16 %v2912
      %v2929 = vunpack.c.h.b16 %v2912
      %v2930 = vunpack.c.l.b16 %v2913
      %v2931 = vunpack.c.h.b16 %v2913
      %v2932 = vunpack.c.l.b16 %v2914
      %v2933 = vunpack.c.h.b16 %v2914
      %v2934 = vunpack.c.l.b16 %v2915
      %v2935 = vunpack.c.h.b16 %v2915
      %v2936 = vunpack.c.l.b16 %v2916
      %v2937 = vunpack.c.h.b16 %v2916
      %v2938 = vunpack.c.l.b16 %v2917
      %v2939 = vunpack.c.h.b16 %v2917
      %v2940 = vunpack.c.l.b16 %v2918
      %v2941 = vunpack.c.h.b16 %v2918
      %v2942 = vunpack.c.l.b16 %v2919
      %v2943 = vunpack.c.h.b16 %v2919
      %v2944 = vpack.c.b16 %v2928, %v2928
      %v2945 = vpack.c.b16 %v2929, %v2929
      %v2946 = vpack.c.b16 %v2930, %v2930
      %v2947 = vpack.c.b16 %v2931, %v2931
      %v2948 = vpack.c.b16 %v2932, %v2932
      %v2949 = vpack.c.b16 %v2933, %v2933
      %v2950 = vpack.c.b16 %v2934, %v2934
      %v2951 = vpack.c.b16 %v2935, %v2935
      %v2952 = vpack.c.b16 %v2936, %v2936
      %v2953 = vpack.c.b16 %v2937, %v2937
      %v2954 = vpack.c.b16 %v2938, %v2938
      %v2955 = vpack.c.b16 %v2939, %v2939
      %v2956 = vpack.c.b16 %v2940, %v2940
      %v2957 = vpack.c.b16 %v2941, %v2941
      %v2958 = vpack.c.b16 %v2942, %v2942
      %v2959 = vpack.c.b16 %v2943, %v2943
      %v2960 = vrot.slane %v2944, 6
      %v2961 = vrot.slane %v2960, 4
      %v2962 = vrot.slane %v2945, 6
      %v2963 = vsel %vm715, %v2961, %v2962
      %v2964 = vrot.slane %v2946, 6
      %v2965 = vrot.slane %v2964, 4
      %v2966 = vrot.slane %v2947, 6
      %v2967 = vsel %vm715, %v2965, %v2966
      %v2968 = vrot.slane %v2948, 6
      %v2969 = vrot.slane %v2968, 4
      %v2970 = vrot.slane %v2949, 6
      %v2971 = vsel %vm715, %v2969, %v2970
      %v2972 = vrot.slane %v2950, 6
      %v2973 = vrot.slane %v2972, 4
      %v2974 = vrot.slane %v2951, 6
      %v2975 = vsel %vm715, %v2973, %v2974
      %v2976 = vrot.slane %v2952, 6
      %v2977 = vrot.slane %v2976, 4
      %v2978 = vrot.slane %v2953, 6
      %v2979 = vsel %vm715, %v2977, %v2978
      %v2980 = vrot.slane %v2954, 6
      %v2981 = vrot.slane %v2980, 4
      %v2982 = vrot.slane %v2955, 6
      %v2983 = vsel %vm715, %v2981, %v2982
      %v2984 = vrot.slane %v2956, 6
      %v2985 = vrot.slane %v2984, 4
      %v2986 = vrot.slane %v2957, 6
      %v2987 = vsel %vm715, %v2985, %v2986
      %v2988 = vrot.slane %v2958, 6
      %v2989 = vrot.slane %v2988, 4
      %v2990 = vrot.slane %v2959, 6
      %v2991 = vsel %vm715, %v2989, %v2990
      %v2992 = vunpack.c.l.b16 %v2883
      %v2993 = vunpack.c.l.b16 %v2887
      %v2994 = vunpack.c.l.b16 %v2891
      %v2995 = vunpack.c.l.b16 %v2895
      %v2996 = vunpack.c.l.b16 %v2899
      %v2997 = vunpack.c.l.b16 %v2903
      %v2998 = vunpack.c.l.b16 %v2907
      %v2999 = vunpack.c.l.b16 %v2911
      %v3000 = vpack.c.b16 %v2993, %v2992
      %v3001 = vpack.c.b16 %v2995, %v2994
      %v3002 = vpack.c.b16 %v2997, %v2996
      %v3003 = vpack.c.b16 %v2999, %v2998
      %v3008 = vunpack.c.l.b16 %v2963
      %v3009 = vunpack.c.l.b16 %v2967
      %v3010 = vunpack.c.l.b16 %v2971
      %v3011 = vunpack.c.l.b16 %v2975
      %v3012 = vunpack.c.l.b16 %v2979
      %v3013 = vunpack.c.l.b16 %v2983
      %v3014 = vunpack.c.l.b16 %v2987
      %v3015 = vunpack.c.l.b16 %v2991
      %v3016 = vpack.c.b16 %v3009, %v3008
      %v3017 = vpack.c.b16 %v3011, %v3010
      %v3018 = vpack.c.b16 %v3013, %v3012
      %v3019 = vpack.c.b16 %v3015, %v3014
      %v3024 = vld [vmem:[%s5 + $0x100] sm:$0xf]
      %v3025 = vld [vmem:[%s5 + $0x104] sm:$0xf]
      %v3026 = vld [vmem:[%s5 + $0x108] sm:$0xf]
      %v3027 = vld [vmem:[%s5 + $0x10c] sm:$0xf]
      %v3028 = vld [vmem:[%s5 + $0x110] sm:$0xf]
      %v3029 = vld [vmem:[%s5 + $0x114] sm:$0xf]
      %v3030 = vld [vmem:[%s5 + $0x118] sm:$0xf]
      %v3031 = vld [vmem:[%s5 + $0x11c] sm:$0xf]
      %v3032 = vld [vmem:[%s5 + $0x120] sm:$0xf]
      %v3033 = vld [vmem:[%s5 + $0x124] sm:$0xf]
      %v3034 = vld [vmem:[%s5 + $0x128] sm:$0xf]
      %v3035 = vld [vmem:[%s5 + $0x12c] sm:$0xf]
      %v3036 = vld [vmem:[%s5 + $0x130] sm:$0xf]
      %v3037 = vld [vmem:[%s5 + $0x134] sm:$0xf]
      %v3038 = vld [vmem:[%s5 + $0x138] sm:$0xf]
      %v3039 = vld [vmem:[%s5 + $0x13c] sm:$0xf]
      %v3040 = vld [vmem:[%s5 + $0x140] sm:$0xf]
      %v3041 = vld [vmem:[%s5 + $0x144] sm:$0xf]
      %v3042 = vld [vmem:[%s5 + $0x148] sm:$0xf]
      %v3043 = vld [vmem:[%s5 + $0x14c] sm:$0xf]
      %v3044 = vld [vmem:[%s5 + $0x150] sm:$0xf]
      %v3045 = vld [vmem:[%s5 + $0x154] sm:$0xf]
      %v3046 = vld [vmem:[%s5 + $0x158] sm:$0xf]
      %v3047 = vld [vmem:[%s5 + $0x15c] sm:$0xf]
      %v3048 = vld [vmem:[%s5 + $0x160] sm:$0xf]
      %v3049 = vld [vmem:[%s5 + $0x164] sm:$0xf]
      %v3050 = vld [vmem:[%s5 + $0x168] sm:$0xf]
      %v3051 = vld [vmem:[%s5 + $0x16c] sm:$0xf]
      %v3052 = vld [vmem:[%s5 + $0x170] sm:$0xf]
      %v3053 = vld [vmem:[%s5 + $0x174] sm:$0xf]
      %v3054 = vld [vmem:[%s5 + $0x178] sm:$0xf]
      %v3055 = vld [vmem:[%s5 + $0x17c] sm:$0xf]
      %v3088 = vunpack.c.l.b16 %v3024
      %v3089 = vunpack.c.l.b16 %v3025
      %v3090 = vunpack.c.l.b16 %v3026
      %v3091 = vunpack.c.l.b16 %v3027
      %v3092 = vunpack.c.l.b16 %v3028
      %v3093 = vunpack.c.l.b16 %v3029
      %v3094 = vunpack.c.l.b16 %v3030
      %v3095 = vunpack.c.l.b16 %v3031
      %v3096 = vunpack.c.l.b16 %v3032
      %v3097 = vunpack.c.l.b16 %v3033
      %v3098 = vunpack.c.l.b16 %v3034
      %v3099 = vunpack.c.l.b16 %v3035
      %v3100 = vunpack.c.l.b16 %v3036
      %v3101 = vunpack.c.l.b16 %v3037
      %v3102 = vunpack.c.l.b16 %v3038
      %v3103 = vunpack.c.l.b16 %v3039
      %v3104 = vunpack.c.l.b16 %v3040
      %v3105 = vunpack.c.l.b16 %v3041
      %v3106 = vunpack.c.l.b16 %v3042
      %v3107 = vunpack.c.l.b16 %v3043
      %v3108 = vunpack.c.l.b16 %v3044
      %v3109 = vunpack.c.l.b16 %v3045
      %v3110 = vunpack.c.l.b16 %v3046
      %v3111 = vunpack.c.l.b16 %v3047
      %v3112 = vunpack.c.l.b16 %v3048
      %v3113 = vunpack.c.l.b16 %v3049
      %v3114 = vunpack.c.l.b16 %v3050
      %v3115 = vunpack.c.l.b16 %v3051
      %v3116 = vunpack.c.l.b16 %v3052
      %v3117 = vunpack.c.l.b16 %v3053
      %v3118 = vunpack.c.l.b16 %v3054
      %v3119 = vunpack.c.l.b16 %v3055
      %v3120 = vpack.c.b16 %v3089, %v3088
      %v3121 = vpack.c.b16 %v3091, %v3090
      %v3122 = vpack.c.b16 %v3093, %v3092
      %v3123 = vpack.c.b16 %v3095, %v3094
      %v3124 = vpack.c.b16 %v3097, %v3096
      %v3125 = vpack.c.b16 %v3099, %v3098
      %v3126 = vpack.c.b16 %v3101, %v3100
      %v3127 = vpack.c.b16 %v3103, %v3102
      %v3128 = vpack.c.b16 %v3105, %v3104
      %v3129 = vpack.c.b16 %v3107, %v3106
      %v3130 = vpack.c.b16 %v3109, %v3108
      %v3131 = vpack.c.b16 %v3111, %v3110
      %v3132 = vpack.c.b16 %v3113, %v3112
      %v3133 = vpack.c.b16 %v3115, %v3114
      %v3134 = vpack.c.b16 %v3117, %v3116
      %v3135 = vpack.c.b16 %v3119, %v3118
      %3152 = vmatprep.subr.bf16.mxu0 0
      %3153 = vmatpush1.bf16.msra.mxu0 %v3120
      %3154 = vmatprep.subr.bf16.mxu0 0
      %3155 = vmatpush1.bf16.msra.mxu0 %v3121
      %3156 = vmatprep.subr.bf16.mxu0 0
      %3157 = vmatpush1.bf16.msra.mxu0 %v3122
      %3158 = vmatprep.subr.bf16.mxu0 0
      %3159 = vmatpush1.bf16.msra.mxu0 %v3123
      %3160 = vmatprep.subr.bf16.mxu0 0
      %3161 = vmatpush1.bf16.msra.mxu0 %v3124
      %3162 = vmatprep.subr.bf16.mxu0 0
      %3163 = vmatpush1.bf16.msra.mxu0 %v3125
      %3164 = vmatprep.subr.bf16.mxu0 0
      %3165 = vmatpush1.bf16.msra.mxu0 %v3126
      %3166 = vmatprep.subr.bf16.mxu0 0
      %3167 = vmatpush1.bf16.msra.mxu0 %v3127
      %3168 = vmatprep.subr.bf16.mxu0 0
      %3169 = vmatpush1.bf16.msra.mxu0 %v3128
      %3170 = vmatprep.subr.bf16.mxu0 0
      %3171 = vmatpush1.bf16.msra.mxu0 %v3129
      %3172 = vmatprep.subr.bf16.mxu0 0
      %3173 = vmatpush1.bf16.msra.mxu0 %v3130
      %3174 = vmatprep.subr.bf16.mxu0 0
      %3175 = vmatpush1.bf16.msra.mxu0 %v3131
      %3176 = vmatprep.subr.bf16.mxu0 0
      %3177 = vmatpush1.bf16.msra.mxu0 %v3132
      %3178 = vmatprep.subr.bf16.mxu0 0
      %3179 = vmatpush1.bf16.msra.mxu0 %v3133
      %3180 = vmatprep.subr.bf16.mxu0 0
      %3181 = vmatpush1.bf16.msra.mxu0 %v3134
      %3182 = vmatprep.subr.bf16.mxu0 0
      %3183 = vmatpush1.bf16.msra.mxu0 %v3135
      %3184 = vmatprep.mubr.bf16.mxu0 %v3016
      %3185 = vmatmul.mubr.bf16.gmra.mrb[0].mxu0 %v3000
      %v3186 = vpop.f32.mrb[0].mxu0
      %v3187 = vadd.f32 0.0, %v3186
      %v3188 = vpop.f32.mrb[0].mxu0
      %v3189 = vpop.f32.mrb[0].mxu0
      %v3190 = vadd.f32 0.0, %v3189
      %v3191 = vpop.f32.mrb[0].mxu0
      %3192 = vmatprep.mubr.bf16.mxu0 %v3017
      %3193 = vmatmul.mubr.bf16.gmra.mrb[0].mxu0 %v3001
      %v3194 = vpop.f32.mrb[0].mxu0
      %v3195 = vadd.f32 0.0, %v3194
      %v3196 = vpop.f32.mrb[0].mxu0
      %v3197 = vpop.f32.mrb[0].mxu0
      %v3198 = vadd.f32 0.0, %v3197
      %v3199 = vpop.f32.mrb[0].mxu0
      %3200 = vmatprep.mubr.bf16.mxu0 %v3018
      %3201 = vmatmul.mubr.bf16.gmra.mrb[0].mxu0 %v3002
      %v3202 = vpop.f32.mrb[0].mxu0
      %v3203 = vadd.f32 0.0, %v3202
      %v3204 = vpop.f32.mrb[0].mxu0
      %v3205 = vpop.f32.mrb[0].mxu0
      %v3206 = vadd.f32 0.0, %v3205
      %v3207 = vpop.f32.mrb[0].mxu0
      %3208 = vmatprep.mubr.bf16.mxu0 %v3019
      %3209 = vmatmul.mubr.bf16.gmra.mrb[0].mxu0 %v3003
      %v3210 = vpop.f32.mrb[0].mxu0
      %v3211 = vadd.f32 0.0, %v3210
      %v3212 = vpop.f32.mrb[0].mxu0
      %v3213 = vpop.f32.mrb[0].mxu0
      %v3214 = vadd.f32 0.0, %v3213
      %v3215 = vpop.f32.mrb[0].mxu0
      %3216 = vdwg.mxu0
      %v3217 = vadd.f32 %v2802, %v3187
      %v3218 = vadd.f32 %v2805, %v3190
      %v3219 = vadd.f32 %v2810, %v3195
      %v3220 = vadd.f32 %v2813, %v3198
      %v3221 = vadd.f32 %v2818, %v3203
      %v3222 = vadd.f32 %v2821, %v3206
      %v3223 = vadd.f32 %v2826, %v3211
      %v3224 = vadd.f32 %v2829, %v3214
      %s3225 = scalar_lea.vmem [#allocation3], 32
      %v3226 = vld [vmem:[%s3225] sm:$0xf]
      %v3227 = vld [vmem:[%s3225 + $0x8] sm:$0xf]
      %v3228 = vld [vmem:[%s3225 + $0x10] sm:$0xf]
      %v3229 = vld [vmem:[%s3225 + $0x18] sm:$0xf]
      %v3230 = vld [vmem:[%s3225 + $0x20] sm:$0xf]
      %v3231 = vld [vmem:[%s3225 + $0x28] sm:$0xf]
      %v3232 = vld [vmem:[%s3225 + $0x30] sm:$0xf]
      %v3233 = vld [vmem:[%s3225 + $0x38] sm:$0xf]
      %v3234 = vld [vmem:[%s3225] sm:$0x1e]
      %v3235 = vld [vmem:[%s3225 + $0x8] sm:$0x1e]
      %v3236 = vld [vmem:[%s3225 + $0x10] sm:$0x1e]
      %v3237 = vld [vmem:[%s3225 + $0x18] sm:$0x1e]
      %v3238 = vld [vmem:[%s3225 + $0x20] sm:$0x1e]
      %v3239 = vld [vmem:[%s3225 + $0x28] sm:$0x1e]
      %v3240 = vld [vmem:[%s3225 + $0x30] sm:$0x1e]
      %v3241 = vld [vmem:[%s3225 + $0x38] sm:$0x1e]
      %v3250 = vunpack.c.l.b16 %v3234
      %v3251 = vunpack.c.h.b16 %v3234
      %v3252 = vunpack.c.l.b16 %v3235
      %v3253 = vunpack.c.h.b16 %v3235
      %v3254 = vunpack.c.l.b16 %v3236
      %v3255 = vunpack.c.h.b16 %v3236
      %v3256 = vunpack.c.l.b16 %v3237
      %v3257 = vunpack.c.h.b16 %v3237
      %v3258 = vunpack.c.l.b16 %v3238
      %v3259 = vunpack.c.h.b16 %v3238
      %v3260 = vunpack.c.l.b16 %v3239
      %v3261 = vunpack.c.h.b16 %v3239
      %v3262 = vunpack.c.l.b16 %v3240
      %v3263 = vunpack.c.h.b16 %v3240
      %v3264 = vunpack.c.l.b16 %v3241
      %v3265 = vunpack.c.h.b16 %v3241
      %v3266 = vpack.c.b16 %v3250, %v3250
      %v3267 = vpack.c.b16 %v3251, %v3251
      %v3268 = vpack.c.b16 %v3252, %v3252
      %v3269 = vpack.c.b16 %v3253, %v3253
      %v3270 = vpack.c.b16 %v3254, %v3254
      %v3271 = vpack.c.b16 %v3255, %v3255
      %v3272 = vpack.c.b16 %v3256, %v3256
      %v3273 = vpack.c.b16 %v3257, %v3257
      %v3274 = vpack.c.b16 %v3258, %v3258
      %v3275 = vpack.c.b16 %v3259, %v3259
      %v3276 = vpack.c.b16 %v3260, %v3260
      %v3277 = vpack.c.b16 %v3261, %v3261
      %v3278 = vpack.c.b16 %v3262, %v3262
      %v3279 = vpack.c.b16 %v3263, %v3263
      %v3280 = vpack.c.b16 %v3264, %v3264
      %v3281 = vpack.c.b16 %v3265, %v3265
      %v3282 = vrot.slane %v3266, 5
      %v3283 = vrot.slane %v3282, 4
      %v3284 = vrot.slane %v3267, 5
      %v3285 = vsel %vm560, %v3283, %v3284
      %v3286 = vrot.slane %v3268, 5
      %v3287 = vrot.slane %v3286, 4
      %v3288 = vrot.slane %v3269, 5
      %v3289 = vsel %vm560, %v3287, %v3288
      %v3290 = vrot.slane %v3270, 5
      %v3291 = vrot.slane %v3290, 4
      %v3292 = vrot.slane %v3271, 5
      %v3293 = vsel %vm560, %v3291, %v3292
      %v3294 = vrot.slane %v3272, 5
      %v3295 = vrot.slane %v3294, 4
      %v3296 = vrot.slane %v3273, 5
      %v3297 = vsel %vm560, %v3295, %v3296
      %v3298 = vrot.slane %v3274, 5
      %v3299 = vrot.slane %v3298, 4
      %v3300 = vrot.slane %v3275, 5
      %v3301 = vsel %vm560, %v3299, %v3300
      %v3302 = vrot.slane %v3276, 5
      %v3303 = vrot.slane %v3302, 4
      %v3304 = vrot.slane %v3277, 5
      %v3305 = vsel %vm560, %v3303, %v3304
      %v3306 = vrot.slane %v3278, 5
      %v3307 = vrot.slane %v3306, 4
      %v3308 = vrot.slane %v3279, 5
      %v3309 = vsel %vm560, %v3307, %v3308
      %v3310 = vrot.slane %v3280, 5
      %v3311 = vrot.slane %v3310, 4
      %v3312 = vrot.slane %v3281, 5
      %v3313 = vsel %vm560, %v3311, %v3312
      %v3322 = vunpack.c.l.b16 %v3226
      %v3323 = vunpack.c.l.b16 %v3227
      %v3324 = vunpack.c.l.b16 %v3228
      %v3325 = vunpack.c.l.b16 %v3229
      %v3326 = vunpack.c.l.b16 %v3230
      %v3327 = vunpack.c.l.b16 %v3231
      %v3328 = vunpack.c.l.b16 %v3232
      %v3329 = vunpack.c.l.b16 %v3233
      %v3330 = vpack.c.b16 %v3323, %v3322
      %v3331 = vpack.c.b16 %v3325, %v3324
      %v3332 = vpack.c.b16 %v3327, %v3326
      %v3333 = vpack.c.b16 %v3329, %v3328
      %v3338 = vunpack.c.l.b16 %v3285
      %v3339 = vunpack.c.l.b16 %v3289
      %v3340 = vunpack.c.l.b16 %v3293
      %v3341 = vunpack.c.l.b16 %v3297
      %v3342 = vunpack.c.l.b16 %v3301
      %v3343 = vunpack.c.l.b16 %v3305
      %v3344 = vunpack.c.l.b16 %v3309
      %v3345 = vunpack.c.l.b16 %v3313
      %v3346 = vpack.c.b16 %v3339, %v3338
      %v3347 = vpack.c.b16 %v3341, %v3340
      %v3348 = vpack.c.b16 %v3343, %v3342
      %v3349 = vpack.c.b16 %v3345, %v3344
      %v3354 = vld [vmem:[%s5 + $0x180] sm:$0xf]
      %v3355 = vld [vmem:[%s5 + $0x184] sm:$0xf]
      %v3356 = vld [vmem:[%s5 + $0x188] sm:$0xf]
      %v3357 = vld [vmem:[%s5 + $0x18c] sm:$0xf]
      %v3358 = vld [vmem:[%s5 + $0x190] sm:$0xf]
      %v3359 = vld [vmem:[%s5 + $0x194] sm:$0xf]
      %v3360 = vld [vmem:[%s5 + $0x198] sm:$0xf]
      %v3361 = vld [vmem:[%s5 + $0x19c] sm:$0xf]
      %v3362 = vld [vmem:[%s5 + $0x1a0] sm:$0xf]
      %v3363 = vld [vmem:[%s5 + $0x1a4] sm:$0xf]
      %v3364 = vld [vmem:[%s5 + $0x1a8] sm:$0xf]
      %v3365 = vld [vmem:[%s5 + $0x1ac] sm:$0xf]
      %v3366 = vld [vmem:[%s5 + $0x1b0] sm:$0xf]
      %v3367 = vld [vmem:[%s5 + $0x1b4] sm:$0xf]
      %v3368 = vld [vmem:[%s5 + $0x1b8] sm:$0xf]
      %v3369 = vld [vmem:[%s5 + $0x1bc] sm:$0xf]
      %v3370 = vld [vmem:[%s5 + $0x1c0] sm:$0xf]
      %v3371 = vld [vmem:[%s5 + $0x1c4] sm:$0xf]
      %v3372 = vld [vmem:[%s5 + $0x1c8] sm:$0xf]
      %v3373 = vld [vmem:[%s5 + $0x1cc] sm:$0xf]
      %v3374 = vld [vmem:[%s5 + $0x1d0] sm:$0xf]
      %v3375 = vld [vmem:[%s5 + $0x1d4] sm:$0xf]
      %v3376 = vld [vmem:[%s5 + $0x1d8] sm:$0xf]
      %v3377 = vld [vmem:[%s5 + $0x1dc] sm:$0xf]
      %v3378 = vld [vmem:[%s5 + $0x1e0] sm:$0xf]
      %v3379 = vld [vmem:[%s5 + $0x1e4] sm:$0xf]
      %v3380 = vld [vmem:[%s5 + $0x1e8] sm:$0xf]
      %v3381 = vld [vmem:[%s5 + $0x1ec] sm:$0xf]
      %v3382 = vld [vmem:[%s5 + $0x1f0] sm:$0xf]
      %v3383 = vld [vmem:[%s5 + $0x1f4] sm:$0xf]
      %v3384 = vld [vmem:[%s5 + $0x1f8] sm:$0xf]
      %v3385 = vld [vmem:[%s5 + $0x1fc] sm:$0xf]
      %v3418 = vunpack.c.l.b16 %v3354
      %v3419 = vunpack.c.l.b16 %v3355
      %v3420 = vunpack.c.l.b16 %v3356
      %v3421 = vunpack.c.l.b16 %v3357
      %v3422 = vunpack.c.l.b16 %v3358
      %v3423 = vunpack.c.l.b16 %v3359
      %v3424 = vunpack.c.l.b16 %v3360
      %v3425 = vunpack.c.l.b16 %v3361
      %v3426 = vunpack.c.l.b16 %v3362
      %v3427 = vunpack.c.l.b16 %v3363
      %v3428 = vunpack.c.l.b16 %v3364
      %v3429 = vunpack.c.l.b16 %v3365
      %v3430 = vunpack.c.l.b16 %v3366
      %v3431 = vunpack.c.l.b16 %v3367
      %v3432 = vunpack.c.l.b16 %v3368
      %v3433 = vunpack.c.l.b16 %v3369
      %v3434 = vunpack.c.l.b16 %v3370
      %v3435 = vunpack.c.l.b16 %v3371
      %v3436 = vunpack.c.l.b16 %v3372
      %v3437 = vunpack.c.l.b16 %v3373
      %v3438 = vunpack.c.l.b16 %v3374
      %v3439 = vunpack.c.l.b16 %v3375
      %v3440 = vunpack.c.l.b16 %v3376
      %v3441 = vunpack.c.l.b16 %v3377
      %v3442 = vunpack.c.l.b16 %v3378
      %v3443 = vunpack.c.l.b16 %v3379
      %v3444 = vunpack.c.l.b16 %v3380
      %v3445 = vunpack.c.l.b16 %v3381
      %v3446 = vunpack.c.l.b16 %v3382
      %v3447 = vunpack.c.l.b16 %v3383
      %v3448 = vunpack.c.l.b16 %v3384
      %v3449 = vunpack.c.l.b16 %v3385
      %v3450 = vpack.c.b16 %v3419, %v3418
      %v3451 = vpack.c.b16 %v3421, %v3420
      %v3452 = vpack.c.b16 %v3423, %v3422
      %v3453 = vpack.c.b16 %v3425, %v3424
      %v3454 = vpack.c.b16 %v3427, %v3426
      %v3455 = vpack.c.b16 %v3429, %v3428
      %v3456 = vpack.c.b16 %v3431, %v3430
      %v3457 = vpack.c.b16 %v3433, %v3432
      %v3458 = vpack.c.b16 %v3435, %v3434
      %v3459 = vpack.c.b16 %v3437, %v3436
      %v3460 = vpack.c.b16 %v3439, %v3438
      %v3461 = vpack.c.b16 %v3441, %v3440
      %v3462 = vpack.c.b16 %v3443, %v3442
      %v3463 = vpack.c.b16 %v3445, %v3444
      %v3464 = vpack.c.b16 %v3447, %v3446
      %v3465 = vpack.c.b16 %v3449, %v3448
      %3482 = vmatprep.subr.bf16.mxu0 0
      %3483 = vmatpush1.bf16.msra.mxu0 %v3450
      %3484 = vmatprep.subr.bf16.mxu0 0
      %3485 = vmatpush1.bf16.msra.mxu0 %v3451
      %3486 = vmatprep.subr.bf16.mxu0 0
      %3487 = vmatpush1.bf16.msra.mxu0 %v3452
      %3488 = vmatprep.subr.bf16.mxu0 0
      %3489 = vmatpush1.bf16.msra.mxu0 %v3453
      %3490 = vmatprep.subr.bf16.mxu0 0
      %3491 = vmatpush1.bf16.msra.mxu0 %v3454
      %3492 = vmatprep.subr.bf16.mxu0 0
      %3493 = vmatpush1.bf16.msra.mxu0 %v3455
      %3494 = vmatprep.subr.bf16.mxu0 0
      %3495 = vmatpush1.bf16.msra.mxu0 %v3456
      %3496 = vmatprep.subr.bf16.mxu0 0
      %3497 = vmatpush1.bf16.msra.mxu0 %v3457
      %3498 = vmatprep.subr.bf16.mxu0 0
      %3499 = vmatpush1.bf16.msra.mxu0 %v3458
      %3500 = vmatprep.subr.bf16.mxu0 0
      %3501 = vmatpush1.bf16.msra.mxu0 %v3459
      %3502 = vmatprep.subr.bf16.mxu0 0
      %3503 = vmatpush1.bf16.msra.mxu0 %v3460
      %3504 = vmatprep.subr.bf16.mxu0 0
      %3505 = vmatpush1.bf16.msra.mxu0 %v3461
      %3506 = vmatprep.subr.bf16.mxu0 0
      %3507 = vmatpush1.bf16.msra.mxu0 %v3462
      %3508 = vmatprep.subr.bf16.mxu0 0
      %3509 = vmatpush1.bf16.msra.mxu0 %v3463
      %3510 = vmatprep.subr.bf16.mxu0 0
      %3511 = vmatpush1.bf16.msra.mxu0 %v3464
      %3512 = vmatprep.subr.bf16.mxu0 0
      %3513 = vmatpush1.bf16.msra.mxu0 %v3465
      %3514 = vmatprep.mubr.bf16.mxu0 %v3346
      %3515 = vmatmul.mubr.bf16.gmra.mrb[0].mxu0 %v3330
      %v3516 = vpop.f32.mrb[0].mxu0
      %v3517 = vadd.f32 0.0, %v3516
      %v3518 = vpop.f32.mrb[0].mxu0
      %v3519 = vpop.f32.mrb[0].mxu0
      %v3520 = vadd.f32 0.0, %v3519
      %v3521 = vpop.f32.mrb[0].mxu0
      %3522 = vmatprep.mubr.bf16.mxu0 %v3347
      %3523 = vmatmul.mubr.bf16.gmra.mrb[0].mxu0 %v3331
      %v3524 = vpop.f32.mrb[0].mxu0
      %v3525 = vadd.f32 0.0, %v3524
      %v3526 = vpop.f32.mrb[0].mxu0
      %v3527 = vpop.f32.mrb[0].mxu0
      %v3528 = vadd.f32 0.0, %v3527
      %v3529 = vpop.f32.mrb[0].mxu0
      %3530 = vmatprep.mubr.bf16.mxu0 %v3348
      %3531 = vmatmul.mubr.bf16.gmra.mrb[0].mxu0 %v3332
      %v3532 = vpop.f32.mrb[0].mxu0
      %v3533 = vadd.f32 0.0, %v3532
      %v3534 = vpop.f32.mrb[0].mxu0
      %v3535 = vpop.f32.mrb[0].mxu0
      %v3536 = vadd.f32 0.0, %v3535
      %v3537 = vpop.f32.mrb[0].mxu0
      %3538 = vmatprep.mubr.bf16.mxu0 %v3349
      %3539 = vmatmul.mubr.bf16.gmra.mrb[0].mxu0 %v3333
      %v3540 = vpop.f32.mrb[0].mxu0
      %v3541 = vadd.f32 0.0, %v3540
      %v3542 = vpop.f32.mrb[0].mxu0
      %v3543 = vpop.f32.mrb[0].mxu0
      %v3544 = vadd.f32 0.0, %v3543
      %v3545 = vpop.f32.mrb[0].mxu0
      %3546 = vdwg.mxu0
      %v3547 = vadd.f32 %v3217, %v3517
      %v3548 = vadd.f32 %v3218, %v3520
      %v3549 = vadd.f32 %v3219, %v3525
      %v3550 = vadd.f32 %v3220, %v3528
      %v3551 = vadd.f32 %v3221, %v3533
      %v3552 = vadd.f32 %v3222, %v3536
      %v3553 = vadd.f32 %v3223, %v3541
      %v3554 = vadd.f32 %v3224, %v3544
      %v3555 = vld [vmem:[%s3225] sm:$0x3c]
      %v3556 = vld [vmem:[%s3225 + $0x8] sm:$0x3c]
      %v3557 = vld [vmem:[%s3225 + $0x10] sm:$0x3c]
      %v3558 = vld [vmem:[%s3225 + $0x18] sm:$0x3c]
      %v3559 = vld [vmem:[%s3225 + $0x20] sm:$0x3c]
      %v3560 = vld [vmem:[%s3225 + $0x28] sm:$0x3c]
      %v3561 = vld [vmem:[%s3225 + $0x30] sm:$0x3c]
      %v3562 = vld [vmem:[%s3225 + $0x38] sm:$0x3c]
      %v3571 = vunpack.c.l.b16 %v3555
      %v3572 = vunpack.c.h.b16 %v3555
      %v3573 = vunpack.c.l.b16 %v3556
      %v3574 = vunpack.c.h.b16 %v3556
      %v3575 = vunpack.c.l.b16 %v3557
      %v3576 = vunpack.c.h.b16 %v3557
      %v3577 = vunpack.c.l.b16 %v3558
      %v3578 = vunpack.c.h.b16 %v3558
      %v3579 = vunpack.c.l.b16 %v3559
      %v3580 = vunpack.c.h.b16 %v3559
      %v3581 = vunpack.c.l.b16 %v3560
      %v3582 = vunpack.c.h.b16 %v3560
      %v3583 = vunpack.c.l.b16 %v3561
      %v3584 = vunpack.c.h.b16 %v3561
      %v3585 = vunpack.c.l.b16 %v3562
      %v3586 = vunpack.c.h.b16 %v3562
      %v3587 = vpack.c.b16 %v3571, %v3571
      %v3588 = vpack.c.b16 %v3572, %v3572
      %v3589 = vpack.c.b16 %v3573, %v3573
      %v3590 = vpack.c.b16 %v3574, %v3574
      %v3591 = vpack.c.b16 %v3575, %v3575
      %v3592 = vpack.c.b16 %v3576, %v3576
      %v3593 = vpack.c.b16 %v3577, %v3577
      %v3594 = vpack.c.b16 %v3578, %v3578
      %v3595 = vpack.c.b16 %v3579, %v3579
      %v3596 = vpack.c.b16 %v3580, %v3580
      %v3597 = vpack.c.b16 %v3581, %v3581
      %v3598 = vpack.c.b16 %v3582, %v3582
      %v3599 = vpack.c.b16 %v3583, %v3583
      %v3600 = vpack.c.b16 %v3584, %v3584
      %v3601 = vpack.c.b16 %v3585, %v3585
      %v3602 = vpack.c.b16 %v3586, %v3586
      %v3603 = vrot.slane %v3587, 6
      %v3604 = vrot.slane %v3603, 4
      %v3605 = vrot.slane %v3588, 6
      %v3606 = vsel %vm715, %v3604, %v3605
      %v3607 = vrot.slane %v3589, 6
      %v3608 = vrot.slane %v3607, 4
      %v3609 = vrot.slane %v3590, 6
      %v3610 = vsel %vm715, %v3608, %v3609
      %v3611 = vrot.slane %v3591, 6
      %v3612 = vrot.slane %v3611, 4
      %v3613 = vrot.slane %v3592, 6
      %v3614 = vsel %vm715, %v3612, %v3613
      %v3615 = vrot.slane %v3593, 6
      %v3616 = vrot.slane %v3615, 4
      %v3617 = vrot.slane %v3594, 6
      %v3618 = vsel %vm715, %v3616, %v3617
      %v3619 = vrot.slane %v3595, 6
      %v3620 = vrot.slane %v3619, 4
      %v3621 = vrot.slane %v3596, 6
      %v3622 = vsel %vm715, %v3620, %v3621
      %v3623 = vrot.slane %v3597, 6
      %v3624 = vrot.slane %v3623, 4
      %v3625 = vrot.slane %v3598, 6
      %v3626 = vsel %vm715, %v3624, %v3625
      %v3627 = vrot.slane %v3599, 6
      %v3628 = vrot.slane %v3627, 4
      %v3629 = vrot.slane %v3600, 6
      %v3630 = vsel %vm715, %v3628, %v3629
      %v3631 = vrot.slane %v3601, 6
      %v3632 = vrot.slane %v3631, 4
      %v3633 = vrot.slane %v3602, 6
      %v3634 = vsel %vm715, %v3632, %v3633
      %v3635 = vld [vmem:[%s5 + $0x200] sm:$0xf]
      %v3636 = vld [vmem:[%s5 + $0x204] sm:$0xf]
      %v3637 = vld [vmem:[%s5 + $0x208] sm:$0xf]
      %v3638 = vld [vmem:[%s5 + $0x20c] sm:$0xf]
      %v3639 = vld [vmem:[%s5 + $0x210] sm:$0xf]
      %v3640 = vld [vmem:[%s5 + $0x214] sm:$0xf]
      %v3641 = vld [vmem:[%s5 + $0x218] sm:$0xf]
      %v3642 = vld [vmem:[%s5 + $0x21c] sm:$0xf]
      %v3643 = vld [vmem:[%s5 + $0x220] sm:$0xf]
      %v3644 = vld [vmem:[%s5 + $0x224] sm:$0xf]
      %v3645 = vld [vmem:[%s5 + $0x228] sm:$0xf]
      %v3646 = vld [vmem:[%s5 + $0x22c] sm:$0xf]
      %v3647 = vld [vmem:[%s5 + $0x230] sm:$0xf]
      %v3648 = vld [vmem:[%s5 + $0x234] sm:$0xf]
      %v3649 = vld [vmem:[%s5 + $0x238] sm:$0xf]
      %v3650 = vld [vmem:[%s5 + $0x23c] sm:$0xf]
      %v3651 = vunpack.c.l.b16 %v3606
      %v3652 = vunpack.c.l.b16 %v3610
      %v3653 = vunpack.c.l.b16 %v3614
      %v3654 = vunpack.c.l.b16 %v3618
      %v3655 = vunpack.c.l.b16 %v3622
      %v3656 = vunpack.c.l.b16 %v3626
      %v3657 = vunpack.c.l.b16 %v3630
      %v3658 = vunpack.c.l.b16 %v3634
      %v3659 = vpack.c.b16 %v3652, %v3651
      %v3660 = vpack.c.b16 %v3654, %v3653
      %v3661 = vpack.c.b16 %v3656, %v3655
      %v3662 = vpack.c.b16 %v3658, %v3657
      %v3683 = vunpack.c.l.b16 %v3635
      %v3684 = vunpack.c.l.b16 %v3636
      %v3685 = vunpack.c.l.b16 %v3637
      %v3686 = vunpack.c.l.b16 %v3638
      %v3687 = vunpack.c.l.b16 %v3639
      %v3688 = vunpack.c.l.b16 %v3640
      %v3689 = vunpack.c.l.b16 %v3641
      %v3690 = vunpack.c.l.b16 %v3642
      %v3691 = vunpack.c.l.b16 %v3643
      %v3692 = vunpack.c.l.b16 %v3644
      %v3693 = vunpack.c.l.b16 %v3645
      %v3694 = vunpack.c.l.b16 %v3646
      %v3695 = vunpack.c.l.b16 %v3647
      %v3696 = vunpack.c.l.b16 %v3648
      %v3697 = vunpack.c.l.b16 %v3649
      %v3698 = vunpack.c.l.b16 %v3650
      %v3699 = vpack.c.b16 %v3684, %v3683
      %v3700 = vpack.c.b16 %v3686, %v3685
      %v3701 = vpack.c.b16 %v3688, %v3687
      %v3702 = vpack.c.b16 %v3690, %v3689
      %v3703 = vpack.c.b16 %v3692, %v3691
      %v3704 = vpack.c.b16 %v3694, %v3693
      %v3705 = vpack.c.b16 %v3696, %v3695
      %v3706 = vpack.c.b16 %v3698, %v3697
      %3715 = vmatprep.subr.bf16.mxu0 0
      %3716 = vmatpush1.bf16.msra.mxu0 %v3699
      %3717 = vmatprep.subr.bf16.mxu0 0
      %3718 = vmatpush1.bf16.msra.mxu0 %v3700
      %3719 = vmatprep.subr.bf16.mxu0 0
      %3720 = vmatpush1.bf16.msra.mxu0 %v3701
      %3721 = vmatprep.subr.bf16.mxu0 0
      %3722 = vmatpush1.bf16.msra.mxu0 %v3702
      %3723 = vmatprep.subr.bf16.mxu0 0
      %3724 = vmatpush1.bf16.msra.mxu0 %v3703
      %3725 = vmatprep.subr.bf16.mxu0 0
      %3726 = vmatpush1.bf16.msra.mxu0 %v3704
      %3727 = vmatprep.subr.bf16.mxu0 0
      %3728 = vmatpush1.bf16.msra.mxu0 %v3705
      %3729 = vmatprep.subr.bf16.mxu0 0
      %3730 = vmatpush1.bf16.msra.mxu0 %v3706
      %3731 = vmatprep.subr.bf16.mxu0 0
      %3732 = vmatpush1.bf16.msra.mxu0 0
      %3733 = vmatprep.subr.bf16.mxu0 0
      %3734 = vmatpush1.bf16.msra.mxu0 0
      %3735 = vmatprep.subr.bf16.mxu0 0
      %3736 = vmatpush1.bf16.msra.mxu0 0
      %3737 = vmatprep.subr.bf16.mxu0 0
      %3738 = vmatpush1.bf16.msra.mxu0 0
      %3739 = vmatprep.subr.bf16.mxu0 0
      %3740 = vmatpush1.bf16.msra.mxu0 0
      %3741 = vmatprep.subr.bf16.mxu0 0
      %3742 = vmatpush1.bf16.msra.mxu0 0
      %3743 = vmatprep.subr.bf16.mxu0 0
      %3744 = vmatpush1.bf16.msra.mxu0 0
      %3745 = vmatprep.subr.bf16.mxu0 0
      %3746 = vmatpush1.bf16.msra.mxu0 0
      %3747 = vmatprep.mubr.bf16.mxu0 0
      %3748 = vmatmul.mubr.bf16.gmra.mrb[0].mxu0 %v3659
      %v3749 = vpop.f32.mrb[0].mxu0
      %v3750 = vadd.f32 0.0, %v3749
      %v3751 = vpop.f32.mrb[0].mxu0
      %v3752 = vpop.f32.mrb[0].mxu0
      %v3753 = vadd.f32 0.0, %v3752
      %v3754 = vpop.f32.mrb[0].mxu0
      %3755 = vmatprep.mubr.bf16.mxu0 0
      %3756 = vmatmul.mubr.bf16.gmra.mrb[0].mxu0 %v3660
      %v3757 = vpop.f32.mrb[0].mxu0
      %v3758 = vadd.f32 0.0, %v3757
      %v3759 = vpop.f32.mrb[0].mxu0
      %v3760 = vpop.f32.mrb[0].mxu0
      %v3761 = vadd.f32 0.0, %v3760
      %v3762 = vpop.f32.mrb[0].mxu0
      %3763 = vmatprep.mubr.bf16.mxu0 0
      %3764 = vmatmul.mubr.bf16.gmra.mrb[0].mxu0 %v3661
      %v3765 = vpop.f32.mrb[0].mxu0
      %v3766 = vadd.f32 0.0, %v3765
      %v3767 = vpop.f32.mrb[0].mxu0
      %v3768 = vpop.f32.mrb[0].mxu0
      %v3769 = vadd.f32 0.0, %v3768
      %v3770 = vpop.f32.mrb[0].mxu0
      %3771 = vmatprep.mubr.bf16.mxu0 0
      %3772 = vmatmul.mubr.bf16.gmra.mrb[0].mxu0 %v3662
      %v3773 = vpop.f32.mrb[0].mxu0
      %v3774 = vadd.f32 0.0, %v3773
      %v3775 = vpop.f32.mrb[0].mxu0
      %v3776 = vpop.f32.mrb[0].mxu0
      %v3777 = vadd.f32 0.0, %v3776
      %v3778 = vpop.f32.mrb[0].mxu0
      %3779 = vdwg.mxu0
      %v3780 = vadd.f32 %v3547, %v3750
      %v3781 = vadd.f32 %v3548, %v3753
      %v3782 = vadd.f32 %v3549, %v3758
      %v3783 = vadd.f32 %v3550, %v3761
      %v3784 = vadd.f32 %v3551, %v3766
      %v3785 = vadd.f32 %v3552, %v3769
      %v3786 = vadd.f32 %v3553, %v3774
      %v3787 = vadd.f32 %v3554, %v3777
      %v3788 = vld [vmem:[%s6] sm:$0x1]
      %v3790 = vlaneseq
      %v3791 = vshrl.u32 %v3790, 7
      %v3792 = vsub.s32 0, %v3791
      %v3793 = vrot.slane %v3788, %v3792
      %v3795 = vadd.f32 %v3780, %v3793
      %v3796 = vadd.f32 %v3781, %v3793
      %v3797 = vadd.f32 %v3782, %v3793
      %v3798 = vadd.f32 %v3783, %v3793
      %v3799 = vadd.f32 %v3784, %v3793
      %v3800 = vadd.f32 %v3785, %v3793
      %v3801 = vadd.f32 %v3786, %v3793
      %v3802 = vadd.f32 %v3787, %v3793
      %3803 = vst [vmem:[%s278] sm:$0xff] %v3795
      %3804 = vst [vmem:[%s278 + $0x8] sm:$0xff] %v3796
      %3805 = vst [vmem:[%s278 + $0x10] sm:$0xff] %v3797
      %3806 = vst [vmem:[%s278 + $0x18] sm:$0xff] %v3798
      %3807 = vst [vmem:[%s278 + $0x20] sm:$0xff] %v3799
      %3808 = vst [vmem:[%s278 + $0x28] sm:$0xff] %v3800
      %3809 = vst [vmem:[%s278 + $0x30] sm:$0xff] %v3801
      %3810 = vst [vmem:[%s278 + $0x38] sm:$0xff] %v3802
      %p3811 = scmp.lt.s32.totalorder %s18, 1
      %s3812 = scalar_select %p3811, %s18, 1
      %s3813 = smul.addr %s3812, 8
      %s3814 = smul.addr %s3813, 8
      %s3815 = scalar_lea.vmem %s7, %s3814
      // Predicated region
      $region49: #{block_aa_forward.1} parent=47 // pred_check
        %p3816 = pneg %p188
      $region50: #{block_aa_forward.1} parent=47 // pred_check_branch
        %3818 = sbr.rel (%p3816) target = $region52
      $region51: #{block_aa_forward.1} parent=47 // pred_region
        _
      $region52: #{block_aa_forward.1} parent=47 // pred_fallthru
        _
    $region48: #{block_aa_forward.1} parent=5 // pred_fallthru
      _
    %p3819 = scmp.le.s32.totalorder 2, %s13
    // Predicated region
    $region53: #{block_aa_forward.1} parent=5 // pred_check
      %p3820 = pneg %p3819
    $region54: #{block_aa_forward.1} parent=5 // pred_check_branch
      %3822 = sbr.rel (%p3820) target = $region56
    $region55: #{block_aa_forward.1} parent=5 // pred_region
      %s3823 = ssub.s32 %s13, 2
      // Predicated region
      $region57: #{block_aa_forward.1} parent=55 // pred_check
        %p3824 = pneg %p194
      $region58: #{block_aa_forward.1} parent=55 // pred_check_branch
        %3826 = sbr.rel (%p3824) target = $region60
      $region59: #{block_aa_forward.1} parent=55 // pred_region
        %p3827 = scmp.lt.s32.totalorder %s19, 1
        %s3828 = scalar_select %p3827, %s19, 1
        %s3829 = smul.addr %s3828, 8
        %s3830 = smul.addr %s3829, 8
        %s3831 = scalar_lea.vmem %s7, %s3830
      $region60: #{block_aa_forward.1} parent=55 // pred_fallthru
        _
    $region56: #{block_aa_forward.1} parent=5 // pred_fallthru
      _
  $region6: #{block_aa_forward.1} parent=0 // loop_footer
    %s17 = sadd.s32 1, %s13
  $region7: #{block_aa_forward.1} parent=0 // loop_footer_branch
    %12 = sbr.rel target = $region3
  $region8: #{block_aa_forward.1} parent=0 // loop_exit
    _

</llo_original>
